<compile_context>
chip_gen: v7x
topology: tpu7x:2x2x1
jax: 0.10.0
libtpu: 0.0.40
codegen_flags: <defaults>
</compile_context>

<pallas_src>
import functools

import numpy as np
import jax
import jax.numpy as jnp
from jax.experimental import pallas as pl
from jax.experimental.pallas import tpu as pltpu


def _pyramid_kernel(x_ref, w_ref, b_ref, o_ref, *, n_batch, l_in, k_eff, l_out):
    """Single composed valid conv, batch stacked along lanes.

    x_ref : (N, C_in, L)        channels-first input (PyTorch NCL, no transpose)
    w_ref : (K_eff, C_out, C_in) composed conv weight, one (C_out, C_in) tap per k
    b_ref : (C_out, 1)           composed bias
    o_ref : (N, C_out, L_out)    channels-first output
    """
    c_out = o_ref.shape[1]
    n_lanes = n_batch * l_in  # 2 * 64 = 128 -> exactly one vreg row of lanes

    # Stack the batch along the lane axis: (C_in, N * L).  One cheap lane
    # concat instead of per-batch loops everywhere below.
    x_all = jnp.concatenate([x_ref[n] for n in range(n_batch)], axis=1)

    # acc[o, n*L + l] = sum_{k, i} W[k, o, i] * x[n, i, l + k]
    # Valid output lanes per batch block are [n*L, n*L + L_out); the roll's
    # wrap-around only pollutes lanes >= n*L + L_out, which are never stored.
    acc = jnp.zeros((c_out, n_lanes), jnp.float32)
    for k in range(k_eff):
        # Shifted window via an XLU lane rotate (no misaligned slices/copies).
        xk = x_all if k == 0 else pltpu.roll(x_all, shift=n_lanes - k, axis=1)
        acc = acc + jnp.dot(w_ref[k], xk, preferred_element_type=jnp.float32)
    acc = acc + b_ref[...]  # (C_out, 1) broadcasts along lanes

    # Extract the valid L_out prefix of each batch's 64-lane block.
    for n in range(n_batch):
        o_ref[n, :, :] = acc[:, n * l_in:n * l_in + l_out]


def pyramid_forward_pallas(x_ncl, w_taps, b_col):
    """x_ncl: (N, C_in, L) f32.  Returns (N, C_out, L_out) f32."""
    n_batch, _, l_in = x_ncl.shape
    k_eff, c_out, _ = w_taps.shape
    l_out = l_in - k_eff + 1

    kernel = functools.partial(
        _pyramid_kernel, n_batch=n_batch, l_in=l_in, k_eff=k_eff, l_out=l_out)

    return pl.pallas_call(
        kernel,
        out_shape=jax.ShapeDtypeStruct((n_batch, c_out, l_out), jnp.float32),
        # No grid: the whole problem (input + composed taps + output ~ 160 KB)
        # is fully VMEM resident and the body runs exactly once.
        in_specs=[pl.BlockSpec(memory_space=pltpu.MemorySpace.VMEM)] * 3,
        out_specs=pl.BlockSpec(memory_space=pltpu.MemorySpace.VMEM),
    )(x_ncl, w_taps, b_col)


def _compose_conv_chain(weights, biases):
    """Compose a chain of valid Conv1d (cross-correlation) layers into one.

    weights[i]: (C_{i+1}, C_i, K_i) PyTorch layout.  Returns
    (C_last, C_0, K_eff) and (C_last,) in float64.
    """
    w_eff = np.asarray(weights[0], dtype=np.float64)
    b_eff = np.asarray(biases[0], dtype=np.float64)
    for w, b in zip(weights[1:], biases[1:]):
        w = np.asarray(w, dtype=np.float64)   # (C_next, C_prev, K_new)
        b = np.asarray(b, dtype=np.float64)
        c_next, _, k_new = w.shape
        c0 = w_eff.shape[1]
        k_old = w_eff.shape[2]
        new_w = np.zeros((c_next, c0, k_old + k_new - 1), dtype=np.float64)
        for k in range(k_new):
            new_w[:, :, k:k + k_old] += np.einsum('om,mct->oct', w[:, :, k], w_eff)
        b_eff = b + np.einsum('omk,m->o', w, b_eff)
        w_eff = new_w
    return w_eff, b_eff


class PyramidPallas:
    """JAX/Pallas port of Pyramid: a chain of valid Conv1d layers (no activations)."""

    def __init__(self, key, input_chans=4, output_chans=8,
                 layer_filters=(16, 32, 32, 64),
                 kernel_sizes=(16, 8, 8, 4, 4)):
        self.input_chans = input_chans
        self.output_chans = output_chans
        self.layer_filters = list(layer_filters)
        self.kernel_sizes = list(kernel_sizes)

        chans = [input_chans] + self.layer_filters + [output_chans]
        assert len(self.kernel_sizes) == len(chans) - 1

        self.weights = []   # PyTorch layout (C_out, C_in, K) -- kept for the reference
        self.biases = []
        for i, k in enumerate(self.kernel_sizes):
            c_in, c_out = chans[i], chans[i + 1]
            key, wk, bk = jax.random.split(key, 3)
            fan_in = c_in * k
            bound = 1.0 / float(fan_in) ** 0.5
            w = jax.random.uniform(wk, (c_out, c_in, k), jnp.float32, -bound, bound)
            b = jax.random.uniform(bk, (c_out,), jnp.float32, -bound, bound)
            self.weights.append(w)
            self.biases.append(b)

        # Compose all activation-free conv layers into one conv (host, float64).
        w_eff, b_eff = _compose_conv_chain(self.weights, self.biases)
        self.k_eff = w_eff.shape[2]          # sum(K) - (n_layers - 1)
        # (C_out, C_in, K_eff) -> (K_eff, C_out, C_in): one tap slab per k so the
        # kernel fetches w_ref[k] with a free leading-axis index.
        self.w_taps = jnp.asarray(np.transpose(w_eff, (2, 0, 1)), dtype=jnp.float32)
        self.b_col = jnp.asarray(b_eff, dtype=jnp.float32).reshape(-1, 1)

    def __call__(self, x_ncl):
        # x_ncl: (N, C, L) like the PyTorch module; output (N, C_out, L_out).
        x = x_ncl.astype(jnp.float32)
        return pyramid_forward_pallas(x, self.w_taps, self.b_col)


def conv1d_ref(x_ncl, w, b):
    # Pure-JAX reference for one valid Conv1d (NCL, PyTorch weight layout).
    K = w.shape[2]
    L_out = x_ncl.shape[2] - K + 1
    cols = jnp.stack([x_ncl[:, :, k:k + L_out] for k in range(K)], axis=-1)  # (N, Ci, Lo, K)
    return jnp.einsum('nilk,oik->nol', cols, w,
                      precision=jax.lax.Precision.HIGHEST) + b[None, :, None]


def pyramid_ref(model, x_ncl):
    x = x_ncl.astype(jnp.float32)
    for w, b in zip(model.weights, model.biases):
        x = conv1d_ref(x, w, b)
    return x


if __name__ == "__main__":
    key = jax.random.PRNGKey(0)
    k_param, k_x = jax.random.split(key)

    # Small shapes consistent with the module structure (scaled-down Pyramid).
    N, C_IN, L = 2, 4, 64
    model = PyramidPallas(k_param, input_chans=C_IN, output_chans=8,
                          layer_filters=(16, 32, 32, 64),
                          kernel_sizes=(16, 8, 8, 4, 4))

    x = jax.random.normal(k_x, (N, C_IN, L), jnp.float32)

    out = model(x)
    out = jax.block_until_ready(out)

    ref = pyramid_ref(model, x)
    # receptive field = sum(kernel_sizes) - len(kernel_sizes) = 40 - 5 = 35
    assert out.shape == (N, 8, L - 35), out.shape
    assert jnp.allclose(out, ref, rtol=1e-4, atol=1e-4), "mismatch vs reference"

    print("KERNEL_OK")
</pallas_src>

<mosaic_0001>
module attributes {stable_mosaic.version = 11 : i64} {
  func.func @_pyramid_kernel(%arg0: memref<2x4x64xf32, #tpu.memory_space<vmem>>, %arg1: memref<36x8x4xf32, #tpu.memory_space<vmem>>, %arg2: memref<8x1xf32, #tpu.memory_space<vmem>>, %arg3: memref<2x8x29xf32, #tpu.memory_space<vmem>>) attributes {dimension_semantics = [], scalar_prefetch = 0 : i64, scratch_operands = 0 : i64, tpu.core_type = #tpu.core_type<tc>} {
    %c0 = arith.constant 0 : index
    %c0_0 = arith.constant 0 : index
    %c0_1 = arith.constant 0 : index
    %0 = vector.load %arg0[%c0, %c0_0, %c0_1] : memref<2x4x64xf32, #tpu.memory_space<vmem>>, vector<1x4x64xf32>
    %1 = vector.shape_cast %0 : vector<1x4x64xf32> to vector<4x64xf32>
    %c1 = arith.constant 1 : index
    %c0_2 = arith.constant 0 : index
    %c0_3 = arith.constant 0 : index
    %2 = vector.load %arg0[%c1, %c0_2, %c0_3] : memref<2x4x64xf32, #tpu.memory_space<vmem>>, vector<1x4x64xf32>
    %3 = vector.shape_cast %2 : vector<1x4x64xf32> to vector<4x64xf32>
    %4 = tpu.concatenate %1, %3 in 1 : vector<4x64xf32>, vector<4x64xf32> -> vector<4x128xf32>
    %cst = arith.constant 0.000000e+00 : f32
    %5 = vector.broadcast %cst : f32 to vector<8x128xf32>
    %c0_4 = arith.constant 0 : index
    %c0_5 = arith.constant 0 : index
    %c0_6 = arith.constant 0 : index
    %6 = vector.load %arg1[%c0_4, %c0_5, %c0_6] : memref<36x8x4xf32, #tpu.memory_space<vmem>>, vector<1x8x4xf32>
    %7 = vector.shape_cast %6 : vector<1x8x4xf32> to vector<8x4xf32>
    %cst_7 = arith.constant dense<0.000000e+00> : vector<8x128xf32>
    %8 = tpu.matmul %7, %4, %cst_7 {dimension_numbers = #tpu.dot_dimension_numbers<[1], [0], [0], [1], [0, 0, 1, 1], [], []>} : vector<8x4xf32>, vector<4x128xf32>, vector<8x128xf32> -> vector<8x128xf32>
    %9 = arith.addf %5, %8 : vector<8x128xf32>
    %c127_i32 = arith.constant 127 : i32
    %10 = tpu.dynamic_rotate %4 by %c127_i32 dim 1 : vector<4x128xf32>, i32 -> vector<4x128xf32>
    %c1_8 = arith.constant 1 : index
    %c0_9 = arith.constant 0 : index
    %c0_10 = arith.constant 0 : index
    %11 = vector.load %arg1[%c1_8, %c0_9, %c0_10] : memref<36x8x4xf32, #tpu.memory_space<vmem>>, vector<1x8x4xf32>
    %12 = vector.shape_cast %11 : vector<1x8x4xf32> to vector<8x4xf32>
    %cst_11 = arith.constant dense<0.000000e+00> : vector<8x128xf32>
    %13 = tpu.matmul %12, %10, %cst_11 {dimension_numbers = #tpu.dot_dimension_numbers<[1], [0], [0], [1], [0, 0, 1, 1], [], []>} : vector<8x4xf32>, vector<4x128xf32>, vector<8x128xf32> -> vector<8x128xf32>
    %14 = arith.addf %9, %13 : vector<8x128xf32>
    %c126_i32 = arith.constant 126 : i32
    %15 = tpu.dynamic_rotate %4 by %c126_i32 dim 1 : vector<4x128xf32>, i32 -> vector<4x128xf32>
    %c2 = arith.constant 2 : index
    %c0_12 = arith.constant 0 : index
    %c0_13 = arith.constant 0 : index
    %16 = vector.load %arg1[%c2, %c0_12, %c0_13] : memref<36x8x4xf32, #tpu.memory_space<vmem>>, vector<1x8x4xf32>
    %17 = vector.shape_cast %16 : vector<1x8x4xf32> to vector<8x4xf32>
    %cst_14 = arith.constant dense<0.000000e+00> : vector<8x128xf32>
    %18 = tpu.matmul %17, %15, %cst_14 {dimension_numbers = #tpu.dot_dimension_numbers<[1], [0], [0], [1], [0, 0, 1, 1], [], []>} : vector<8x4xf32>, vector<4x128xf32>, vector<8x128xf32> -> vector<8x128xf32>
    %19 = arith.addf %14, %18 : vector<8x128xf32>
    %c125_i32 = arith.constant 125 : i32
    %20 = tpu.dynamic_rotate %4 by %c125_i32 dim 1 : vector<4x128xf32>, i32 -> vector<4x128xf32>
    %c3 = arith.constant 3 : index
    %c0_15 = arith.constant 0 : index
    %c0_16 = arith.constant 0 : index
    %21 = vector.load %arg1[%c3, %c0_15, %c0_16] : memref<36x8x4xf32, #tpu.memory_space<vmem>>, vector<1x8x4xf32>
    %22 = vector.shape_cast %21 : vector<1x8x4xf32> to vector<8x4xf32>
    %cst_17 = arith.constant dense<0.000000e+00> : vector<8x128xf32>
    %23 = tpu.matmul %22, %20, %cst_17 {dimension_numbers = #tpu.dot_dimension_numbers<[1], [0], [0], [1], [0, 0, 1, 1], [], []>} : vector<8x4xf32>, vector<4x128xf32>, vector<8x128xf32> -> vector<8x128xf32>
    %24 = arith.addf %19, %23 : vector<8x128xf32>
    %c124_i32 = arith.constant 124 : i32
    %25 = tpu.dynamic_rotate %4 by %c124_i32 dim 1 : vector<4x128xf32>, i32 -> vector<4x128xf32>
    %c4 = arith.constant 4 : index
    %c0_18 = arith.constant 0 : index
    %c0_19 = arith.constant 0 : index
    %26 = vector.load %arg1[%c4, %c0_18, %c0_19] : memref<36x8x4xf32, #tpu.memory_space<vmem>>, vector<1x8x4xf32>
    %27 = vector.shape_cast %26 : vector<1x8x4xf32> to vector<8x4xf32>
    %cst_20 = arith.constant dense<0.000000e+00> : vector<8x128xf32>
    %28 = tpu.matmul %27, %25, %cst_20 {dimension_numbers = #tpu.dot_dimension_numbers<[1], [0], [0], [1], [0, 0, 1, 1], [], []>} : vector<8x4xf32>, vector<4x128xf32>, vector<8x128xf32> -> vector<8x128xf32>
    %29 = arith.addf %24, %28 : vector<8x128xf32>
    %c123_i32 = arith.constant 123 : i32
    %30 = tpu.dynamic_rotate %4 by %c123_i32 dim 1 : vector<4x128xf32>, i32 -> vector<4x128xf32>
    %c5 = arith.constant 5 : index
    %c0_21 = arith.constant 0 : index
    %c0_22 = arith.constant 0 : index
    %31 = vector.load %arg1[%c5, %c0_21, %c0_22] : memref<36x8x4xf32, #tpu.memory_space<vmem>>, vector<1x8x4xf32>
    %32 = vector.shape_cast %31 : vector<1x8x4xf32> to vector<8x4xf32>
    %cst_23 = arith.constant dense<0.000000e+00> : vector<8x128xf32>
    %33 = tpu.matmul %32, %30, %cst_23 {dimension_numbers = #tpu.dot_dimension_numbers<[1], [0], [0], [1], [0, 0, 1, 1], [], []>} : vector<8x4xf32>, vector<4x128xf32>, vector<8x128xf32> -> vector<8x128xf32>
    %34 = arith.addf %29, %33 : vector<8x128xf32>
    %c122_i32 = arith.constant 122 : i32
    %35 = tpu.dynamic_rotate %4 by %c122_i32 dim 1 : vector<4x128xf32>, i32 -> vector<4x128xf32>
    %c6 = arith.constant 6 : index
    %c0_24 = arith.constant 0 : index
    %c0_25 = arith.constant 0 : index
    %36 = vector.load %arg1[%c6, %c0_24, %c0_25] : memref<36x8x4xf32, #tpu.memory_space<vmem>>, vector<1x8x4xf32>
    %37 = vector.shape_cast %36 : vector<1x8x4xf32> to vector<8x4xf32>
    %cst_26 = arith.constant dense<0.000000e+00> : vector<8x128xf32>
    %38 = tpu.matmul %37, %35, %cst_26 {dimension_numbers = #tpu.dot_dimension_numbers<[1], [0], [0], [1], [0, 0, 1, 1], [], []>} : vector<8x4xf32>, vector<4x128xf32>, vector<8x128xf32> -> vector<8x128xf32>
    %39 = arith.addf %34, %38 : vector<8x128xf32>
    %c121_i32 = arith.constant 121 : i32
    %40 = tpu.dynamic_rotate %4 by %c121_i32 dim 1 : vector<4x128xf32>, i32 -> vector<4x128xf32>
    %c7 = arith.constant 7 : index
    %c0_27 = arith.constant 0 : index
    %c0_28 = arith.constant 0 : index
    %41 = vector.load %arg1[%c7, %c0_27, %c0_28] : memref<36x8x4xf32, #tpu.memory_space<vmem>>, vector<1x8x4xf32>
    %42 = vector.shape_cast %41 : vector<1x8x4xf32> to vector<8x4xf32>
    %cst_29 = arith.constant dense<0.000000e+00> : vector<8x128xf32>
    %43 = tpu.matmul %42, %40, %cst_29 {dimension_numbers = #tpu.dot_dimension_numbers<[1], [0], [0], [1], [0, 0, 1, 1], [], []>} : vector<8x4xf32>, vector<4x128xf32>, vector<8x128xf32> -> vector<8x128xf32>
    %44 = arith.addf %39, %43 : vector<8x128xf32>
    %c120_i32 = arith.constant 120 : i32
    %45 = tpu.dynamic_rotate %4 by %c120_i32 dim 1 : vector<4x128xf32>, i32 -> vector<4x128xf32>
    %c8 = arith.constant 8 : index
    %c0_30 = arith.constant 0 : index
    %c0_31 = arith.constant 0 : index
    %46 = vector.load %arg1[%c8, %c0_30, %c0_31] : memref<36x8x4xf32, #tpu.memory_space<vmem>>, vector<1x8x4xf32>
    %47 = vector.shape_cast %46 : vector<1x8x4xf32> to vector<8x4xf32>
    %cst_32 = arith.constant dense<0.000000e+00> : vector<8x128xf32>
    %48 = tpu.matmul %47, %45, %cst_32 {dimension_numbers = #tpu.dot_dimension_numbers<[1], [0], [0], [1], [0, 0, 1, 1], [], []>} : vector<8x4xf32>, vector<4x128xf32>, vector<8x128xf32> -> vector<8x128xf32>
    %49 = arith.addf %44, %48 : vector<8x128xf32>
    %c119_i32 = arith.constant 119 : i32
    %50 = tpu.dynamic_rotate %4 by %c119_i32 dim 1 : vector<4x128xf32>, i32 -> vector<4x128xf32>
    %c9 = arith.constant 9 : index
    %c0_33 = arith.constant 0 : index
    %c0_34 = arith.constant 0 : index
    %51 = vector.load %arg1[%c9, %c0_33, %c0_34] : memref<36x8x4xf32, #tpu.memory_space<vmem>>, vector<1x8x4xf32>
    %52 = vector.shape_cast %51 : vector<1x8x4xf32> to vector<8x4xf32>
    %cst_35 = arith.constant dense<0.000000e+00> : vector<8x128xf32>
    %53 = tpu.matmul %52, %50, %cst_35 {dimension_numbers = #tpu.dot_dimension_numbers<[1], [0], [0], [1], [0, 0, 1, 1], [], []>} : vector<8x4xf32>, vector<4x128xf32>, vector<8x128xf32> -> vector<8x128xf32>
    %54 = arith.addf %49, %53 : vector<8x128xf32>
    %c118_i32 = arith.constant 118 : i32
    %55 = tpu.dynamic_rotate %4 by %c118_i32 dim 1 : vector<4x128xf32>, i32 -> vector<4x128xf32>
    %c10 = arith.constant 10 : index
    %c0_36 = arith.constant 0 : index
    %c0_37 = arith.constant 0 : index
    %56 = vector.load %arg1[%c10, %c0_36, %c0_37] : memref<36x8x4xf32, #tpu.memory_space<vmem>>, vector<1x8x4xf32>
    %57 = vector.shape_cast %56 : vector<1x8x4xf32> to vector<8x4xf32>
    %cst_38 = arith.constant dense<0.000000e+00> : vector<8x128xf32>
    %58 = tpu.matmul %57, %55, %cst_38 {dimension_numbers = #tpu.dot_dimension_numbers<[1], [0], [0], [1], [0, 0, 1, 1], [], []>} : vector<8x4xf32>, vector<4x128xf32>, vector<8x128xf32> -> vector<8x128xf32>
    %59 = arith.addf %54, %58 : vector<8x128xf32>
    %c117_i32 = arith.constant 117 : i32
    %60 = tpu.dynamic_rotate %4 by %c117_i32 dim 1 : vector<4x128xf32>, i32 -> vector<4x128xf32>
    %c11 = arith.constant 11 : index
    %c0_39 = arith.constant 0 : index
    %c0_40 = arith.constant 0 : index
    %61 = vector.load %arg1[%c11, %c0_39, %c0_40] : memref<36x8x4xf32, #tpu.memory_space<vmem>>, vector<1x8x4xf32>
    %62 = vector.shape_cast %61 : vector<1x8x4xf32> to vector<8x4xf32>
    %cst_41 = arith.constant dense<0.000000e+00> : vector<8x128xf32>
    %63 = tpu.matmul %62, %60, %cst_41 {dimension_numbers = #tpu.dot_dimension_numbers<[1], [0], [0], [1], [0, 0, 1, 1], [], []>} : vector<8x4xf32>, vector<4x128xf32>, vector<8x128xf32> -> vector<8x128xf32>
    %64 = arith.addf %59, %63 : vector<8x128xf32>
    %c116_i32 = arith.constant 116 : i32
    %65 = tpu.dynamic_rotate %4 by %c116_i32 dim 1 : vector<4x128xf32>, i32 -> vector<4x128xf32>
    %c12 = arith.constant 12 : index
    %c0_42 = arith.constant 0 : index
    %c0_43 = arith.constant 0 : index
    %66 = vector.load %arg1[%c12, %c0_42, %c0_43] : memref<36x8x4xf32, #tpu.memory_space<vmem>>, vector<1x8x4xf32>
    %67 = vector.shape_cast %66 : vector<1x8x4xf32> to vector<8x4xf32>
    %cst_44 = arith.constant dense<0.000000e+00> : vector<8x128xf32>
    %68 = tpu.matmul %67, %65, %cst_44 {dimension_numbers = #tpu.dot_dimension_numbers<[1], [0], [0], [1], [0, 0, 1, 1], [], []>} : vector<8x4xf32>, vector<4x128xf32>, vector<8x128xf32> -> vector<8x128xf32>
    %69 = arith.addf %64, %68 : vector<8x128xf32>
    %c115_i32 = arith.constant 115 : i32
    %70 = tpu.dynamic_rotate %4 by %c115_i32 dim 1 : vector<4x128xf32>, i32 -> vector<4x128xf32>
    %c13 = arith.constant 13 : index
    %c0_45 = arith.constant 0 : index
    %c0_46 = arith.constant 0 : index
    %71 = vector.load %arg1[%c13, %c0_45, %c0_46] : memref<36x8x4xf32, #tpu.memory_space<vmem>>, vector<1x8x4xf32>
    %72 = vector.shape_cast %71 : vector<1x8x4xf32> to vector<8x4xf32>
    %cst_47 = arith.constant dense<0.000000e+00> : vector<8x128xf32>
    %73 = tpu.matmul %72, %70, %cst_47 {dimension_numbers = #tpu.dot_dimension_numbers<[1], [0], [0], [1], [0, 0, 1, 1], [], []>} : vector<8x4xf32>, vector<4x128xf32>, vector<8x128xf32> -> vector<8x128xf32>
    %74 = arith.addf %69, %73 : vector<8x128xf32>
    %c114_i32 = arith.constant 114 : i32
    %75 = tpu.dynamic_rotate %4 by %c114_i32 dim 1 : vector<4x128xf32>, i32 -> vector<4x128xf32>
    %c14 = arith.constant 14 : index
    %c0_48 = arith.constant 0 : index
    %c0_49 = arith.constant 0 : index
    %76 = vector.load %arg1[%c14, %c0_48, %c0_49] : memref<36x8x4xf32, #tpu.memory_space<vmem>>, vector<1x8x4xf32>
    %77 = vector.shape_cast %76 : vector<1x8x4xf32> to vector<8x4xf32>
    %cst_50 = arith.constant dense<0.000000e+00> : vector<8x128xf32>
    %78 = tpu.matmul %77, %75, %cst_50 {dimension_numbers = #tpu.dot_dimension_numbers<[1], [0], [0], [1], [0, 0, 1, 1], [], []>} : vector<8x4xf32>, vector<4x128xf32>, vector<8x128xf32> -> vector<8x128xf32>
    %79 = arith.addf %74, %78 : vector<8x128xf32>
    %c113_i32 = arith.constant 113 : i32
    %80 = tpu.dynamic_rotate %4 by %c113_i32 dim 1 : vector<4x128xf32>, i32 -> vector<4x128xf32>
    %c15 = arith.constant 15 : index
    %c0_51 = arith.constant 0 : index
    %c0_52 = arith.constant 0 : index
    %81 = vector.load %arg1[%c15, %c0_51, %c0_52] : memref<36x8x4xf32, #tpu.memory_space<vmem>>, vector<1x8x4xf32>
    %82 = vector.shape_cast %81 : vector<1x8x4xf32> to vector<8x4xf32>
    %cst_53 = arith.constant dense<0.000000e+00> : vector<8x128xf32>
    %83 = tpu.matmul %82, %80, %cst_53 {dimension_numbers = #tpu.dot_dimension_numbers<[1], [0], [0], [1], [0, 0, 1, 1], [], []>} : vector<8x4xf32>, vector<4x128xf32>, vector<8x128xf32> -> vector<8x128xf32>
    %84 = arith.addf %79, %83 : vector<8x128xf32>
    %c112_i32 = arith.constant 112 : i32
    %85 = tpu.dynamic_rotate %4 by %c112_i32 dim 1 : vector<4x128xf32>, i32 -> vector<4x128xf32>
    %c16 = arith.constant 16 : index
    %c0_54 = arith.constant 0 : index
    %c0_55 = arith.constant 0 : index
    %86 = vector.load %arg1[%c16, %c0_54, %c0_55] : memref<36x8x4xf32, #tpu.memory_space<vmem>>, vector<1x8x4xf32>
    %87 = vector.shape_cast %86 : vector<1x8x4xf32> to vector<8x4xf32>
    %cst_56 = arith.constant dense<0.000000e+00> : vector<8x128xf32>
    %88 = tpu.matmul %87, %85, %cst_56 {dimension_numbers = #tpu.dot_dimension_numbers<[1], [0], [0], [1], [0, 0, 1, 1], [], []>} : vector<8x4xf32>, vector<4x128xf32>, vector<8x128xf32> -> vector<8x128xf32>
    %89 = arith.addf %84, %88 : vector<8x128xf32>
    %c111_i32 = arith.constant 111 : i32
    %90 = tpu.dynamic_rotate %4 by %c111_i32 dim 1 : vector<4x128xf32>, i32 -> vector<4x128xf32>
    %c17 = arith.constant 17 : index
    %c0_57 = arith.constant 0 : index
    %c0_58 = arith.constant 0 : index
    %91 = vector.load %arg1[%c17, %c0_57, %c0_58] : memref<36x8x4xf32, #tpu.memory_space<vmem>>, vector<1x8x4xf32>
    %92 = vector.shape_cast %91 : vector<1x8x4xf32> to vector<8x4xf32>
    %cst_59 = arith.constant dense<0.000000e+00> : vector<8x128xf32>
    %93 = tpu.matmul %92, %90, %cst_59 {dimension_numbers = #tpu.dot_dimension_numbers<[1], [0], [0], [1], [0, 0, 1, 1], [], []>} : vector<8x4xf32>, vector<4x128xf32>, vector<8x128xf32> -> vector<8x128xf32>
    %94 = arith.addf %89, %93 : vector<8x128xf32>
    %c110_i32 = arith.constant 110 : i32
    %95 = tpu.dynamic_rotate %4 by %c110_i32 dim 1 : vector<4x128xf32>, i32 -> vector<4x128xf32>
    %c18 = arith.constant 18 : index
    %c0_60 = arith.constant 0 : index
    %c0_61 = arith.constant 0 : index
    %96 = vector.load %arg1[%c18, %c0_60, %c0_61] : memref<36x8x4xf32, #tpu.memory_space<vmem>>, vector<1x8x4xf32>
    %97 = vector.shape_cast %96 : vector<1x8x4xf32> to vector<8x4xf32>
    %cst_62 = arith.constant dense<0.000000e+00> : vector<8x128xf32>
    %98 = tpu.matmul %97, %95, %cst_62 {dimension_numbers = #tpu.dot_dimension_numbers<[1], [0], [0], [1], [0, 0, 1, 1], [], []>} : vector<8x4xf32>, vector<4x128xf32>, vector<8x128xf32> -> vector<8x128xf32>
    %99 = arith.addf %94, %98 : vector<8x128xf32>
    %c109_i32 = arith.constant 109 : i32
    %100 = tpu.dynamic_rotate %4 by %c109_i32 dim 1 : vector<4x128xf32>, i32 -> vector<4x128xf32>
    %c19 = arith.constant 19 : index
    %c0_63 = arith.constant 0 : index
    %c0_64 = arith.constant 0 : index
    %101 = vector.load %arg1[%c19, %c0_63, %c0_64] : memref<36x8x4xf32, #tpu.memory_space<vmem>>, vector<1x8x4xf32>
    %102 = vector.shape_cast %101 : vector<1x8x4xf32> to vector<8x4xf32>
    %cst_65 = arith.constant dense<0.000000e+00> : vector<8x128xf32>
    %103 = tpu.matmul %102, %100, %cst_65 {dimension_numbers = #tpu.dot_dimension_numbers<[1], [0], [0], [1], [0, 0, 1, 1], [], []>} : vector<8x4xf32>, vector<4x128xf32>, vector<8x128xf32> -> vector<8x128xf32>
    %104 = arith.addf %99, %103 : vector<8x128xf32>
    %c108_i32 = arith.constant 108 : i32
    %105 = tpu.dynamic_rotate %4 by %c108_i32 dim 1 : vector<4x128xf32>, i32 -> vector<4x128xf32>
    %c20 = arith.constant 20 : index
    %c0_66 = arith.constant 0 : index
    %c0_67 = arith.constant 0 : index
    %106 = vector.load %arg1[%c20, %c0_66, %c0_67] : memref<36x8x4xf32, #tpu.memory_space<vmem>>, vector<1x8x4xf32>
    %107 = vector.shape_cast %106 : vector<1x8x4xf32> to vector<8x4xf32>
    %cst_68 = arith.constant dense<0.000000e+00> : vector<8x128xf32>
    %108 = tpu.matmul %107, %105, %cst_68 {dimension_numbers = #tpu.dot_dimension_numbers<[1], [0], [0], [1], [0, 0, 1, 1], [], []>} : vector<8x4xf32>, vector<4x128xf32>, vector<8x128xf32> -> vector<8x128xf32>
    %109 = arith.addf %104, %108 : vector<8x128xf32>
    %c107_i32 = arith.constant 107 : i32
    %110 = tpu.dynamic_rotate %4 by %c107_i32 dim 1 : vector<4x128xf32>, i32 -> vector<4x128xf32>
    %c21 = arith.constant 21 : index
    %c0_69 = arith.constant 0 : index
    %c0_70 = arith.constant 0 : index
    %111 = vector.load %arg1[%c21, %c0_69, %c0_70] : memref<36x8x4xf32, #tpu.memory_space<vmem>>, vector<1x8x4xf32>
    %112 = vector.shape_cast %111 : vector<1x8x4xf32> to vector<8x4xf32>
    %cst_71 = arith.constant dense<0.000000e+00> : vector<8x128xf32>
    %113 = tpu.matmul %112, %110, %cst_71 {dimension_numbers = #tpu.dot_dimension_numbers<[1], [0], [0], [1], [0, 0, 1, 1], [], []>} : vector<8x4xf32>, vector<4x128xf32>, vector<8x128xf32> -> vector<8x128xf32>
    %114 = arith.addf %109, %113 : vector<8x128xf32>
    %c106_i32 = arith.constant 106 : i32
    %115 = tpu.dynamic_rotate %4 by %c106_i32 dim 1 : vector<4x128xf32>, i32 -> vector<4x128xf32>
    %c22 = arith.constant 22 : index
    %c0_72 = arith.constant 0 : index
    %c0_73 = arith.constant 0 : index
    %116 = vector.load %arg1[%c22, %c0_72, %c0_73] : memref<36x8x4xf32, #tpu.memory_space<vmem>>, vector<1x8x4xf32>
    %117 = vector.shape_cast %116 : vector<1x8x4xf32> to vector<8x4xf32>
    %cst_74 = arith.constant dense<0.000000e+00> : vector<8x128xf32>
    %118 = tpu.matmul %117, %115, %cst_74 {dimension_numbers = #tpu.dot_dimension_numbers<[1], [0], [0], [1], [0, 0, 1, 1], [], []>} : vector<8x4xf32>, vector<4x128xf32>, vector<8x128xf32> -> vector<8x128xf32>
    %119 = arith.addf %114, %118 : vector<8x128xf32>
    %c105_i32 = arith.constant 105 : i32
    %120 = tpu.dynamic_rotate %4 by %c105_i32 dim 1 : vector<4x128xf32>, i32 -> vector<4x128xf32>
    %c23 = arith.constant 23 : index
    %c0_75 = arith.constant 0 : index
    %c0_76 = arith.constant 0 : index
    %121 = vector.load %arg1[%c23, %c0_75, %c0_76] : memref<36x8x4xf32, #tpu.memory_space<vmem>>, vector<1x8x4xf32>
    %122 = vector.shape_cast %121 : vector<1x8x4xf32> to vector<8x4xf32>
    %cst_77 = arith.constant dense<0.000000e+00> : vector<8x128xf32>
    %123 = tpu.matmul %122, %120, %cst_77 {dimension_numbers = #tpu.dot_dimension_numbers<[1], [0], [0], [1], [0, 0, 1, 1], [], []>} : vector<8x4xf32>, vector<4x128xf32>, vector<8x128xf32> -> vector<8x128xf32>
    %124 = arith.addf %119, %123 : vector<8x128xf32>
    %c104_i32 = arith.constant 104 : i32
    %125 = tpu.dynamic_rotate %4 by %c104_i32 dim 1 : vector<4x128xf32>, i32 -> vector<4x128xf32>
    %c24 = arith.constant 24 : index
    %c0_78 = arith.constant 0 : index
    %c0_79 = arith.constant 0 : index
    %126 = vector.load %arg1[%c24, %c0_78, %c0_79] : memref<36x8x4xf32, #tpu.memory_space<vmem>>, vector<1x8x4xf32>
    %127 = vector.shape_cast %126 : vector<1x8x4xf32> to vector<8x4xf32>
    %cst_80 = arith.constant dense<0.000000e+00> : vector<8x128xf32>
    %128 = tpu.matmul %127, %125, %cst_80 {dimension_numbers = #tpu.dot_dimension_numbers<[1], [0], [0], [1], [0, 0, 1, 1], [], []>} : vector<8x4xf32>, vector<4x128xf32>, vector<8x128xf32> -> vector<8x128xf32>
    %129 = arith.addf %124, %128 : vector<8x128xf32>
    %c103_i32 = arith.constant 103 : i32
    %130 = tpu.dynamic_rotate %4 by %c103_i32 dim 1 : vector<4x128xf32>, i32 -> vector<4x128xf32>
    %c25 = arith.constant 25 : index
    %c0_81 = arith.constant 0 : index
    %c0_82 = arith.constant 0 : index
    %131 = vector.load %arg1[%c25, %c0_81, %c0_82] : memref<36x8x4xf32, #tpu.memory_space<vmem>>, vector<1x8x4xf32>
    %132 = vector.shape_cast %131 : vector<1x8x4xf32> to vector<8x4xf32>
    %cst_83 = arith.constant dense<0.000000e+00> : vector<8x128xf32>
    %133 = tpu.matmul %132, %130, %cst_83 {dimension_numbers = #tpu.dot_dimension_numbers<[1], [0], [0], [1], [0, 0, 1, 1], [], []>} : vector<8x4xf32>, vector<4x128xf32>, vector<8x128xf32> -> vector<8x128xf32>
    %134 = arith.addf %129, %133 : vector<8x128xf32>
    %c102_i32 = arith.constant 102 : i32
    %135 = tpu.dynamic_rotate %4 by %c102_i32 dim 1 : vector<4x128xf32>, i32 -> vector<4x128xf32>
    %c26 = arith.constant 26 : index
    %c0_84 = arith.constant 0 : index
    %c0_85 = arith.constant 0 : index
    %136 = vector.load %arg1[%c26, %c0_84, %c0_85] : memref<36x8x4xf32, #tpu.memory_space<vmem>>, vector<1x8x4xf32>
    %137 = vector.shape_cast %136 : vector<1x8x4xf32> to vector<8x4xf32>
    %cst_86 = arith.constant dense<0.000000e+00> : vector<8x128xf32>
    %138 = tpu.matmul %137, %135, %cst_86 {dimension_numbers = #tpu.dot_dimension_numbers<[1], [0], [0], [1], [0, 0, 1, 1], [], []>} : vector<8x4xf32>, vector<4x128xf32>, vector<8x128xf32> -> vector<8x128xf32>
    %139 = arith.addf %134, %138 : vector<8x128xf32>
    %c101_i32 = arith.constant 101 : i32
    %140 = tpu.dynamic_rotate %4 by %c101_i32 dim 1 : vector<4x128xf32>, i32 -> vector<4x128xf32>
    %c27 = arith.constant 27 : index
    %c0_87 = arith.constant 0 : index
    %c0_88 = arith.constant 0 : index
    %141 = vector.load %arg1[%c27, %c0_87, %c0_88] : memref<36x8x4xf32, #tpu.memory_space<vmem>>, vector<1x8x4xf32>
    %142 = vector.shape_cast %141 : vector<1x8x4xf32> to vector<8x4xf32>
    %cst_89 = arith.constant dense<0.000000e+00> : vector<8x128xf32>
    %143 = tpu.matmul %142, %140, %cst_89 {dimension_numbers = #tpu.dot_dimension_numbers<[1], [0], [0], [1], [0, 0, 1, 1], [], []>} : vector<8x4xf32>, vector<4x128xf32>, vector<8x128xf32> -> vector<8x128xf32>
    %144 = arith.addf %139, %143 : vector<8x128xf32>
    %c100_i32 = arith.constant 100 : i32
    %145 = tpu.dynamic_rotate %4 by %c100_i32 dim 1 : vector<4x128xf32>, i32 -> vector<4x128xf32>
    %c28 = arith.constant 28 : index
    %c0_90 = arith.constant 0 : index
    %c0_91 = arith.constant 0 : index
    %146 = vector.load %arg1[%c28, %c0_90, %c0_91] : memref<36x8x4xf32, #tpu.memory_space<vmem>>, vector<1x8x4xf32>
    %147 = vector.shape_cast %146 : vector<1x8x4xf32> to vector<8x4xf32>
    %cst_92 = arith.constant dense<0.000000e+00> : vector<8x128xf32>
    %148 = tpu.matmul %147, %145, %cst_92 {dimension_numbers = #tpu.dot_dimension_numbers<[1], [0], [0], [1], [0, 0, 1, 1], [], []>} : vector<8x4xf32>, vector<4x128xf32>, vector<8x128xf32> -> vector<8x128xf32>
    %149 = arith.addf %144, %148 : vector<8x128xf32>
    %c99_i32 = arith.constant 99 : i32
    %150 = tpu.dynamic_rotate %4 by %c99_i32 dim 1 : vector<4x128xf32>, i32 -> vector<4x128xf32>
    %c29 = arith.constant 29 : index
    %c0_93 = arith.constant 0 : index
    %c0_94 = arith.constant 0 : index
    %151 = vector.load %arg1[%c29, %c0_93, %c0_94] : memref<36x8x4xf32, #tpu.memory_space<vmem>>, vector<1x8x4xf32>
    %152 = vector.shape_cast %151 : vector<1x8x4xf32> to vector<8x4xf32>
    %cst_95 = arith.constant dense<0.000000e+00> : vector<8x128xf32>
    %153 = tpu.matmul %152, %150, %cst_95 {dimension_numbers = #tpu.dot_dimension_numbers<[1], [0], [0], [1], [0, 0, 1, 1], [], []>} : vector<8x4xf32>, vector<4x128xf32>, vector<8x128xf32> -> vector<8x128xf32>
    %154 = arith.addf %149, %153 : vector<8x128xf32>
    %c98_i32 = arith.constant 98 : i32
    %155 = tpu.dynamic_rotate %4 by %c98_i32 dim 1 : vector<4x128xf32>, i32 -> vector<4x128xf32>
    %c30 = arith.constant 30 : index
    %c0_96 = arith.constant 0 : index
    %c0_97 = arith.constant 0 : index
    %156 = vector.load %arg1[%c30, %c0_96, %c0_97] : memref<36x8x4xf32, #tpu.memory_space<vmem>>, vector<1x8x4xf32>
    %157 = vector.shape_cast %156 : vector<1x8x4xf32> to vector<8x4xf32>
    %cst_98 = arith.constant dense<0.000000e+00> : vector<8x128xf32>
    %158 = tpu.matmul %157, %155, %cst_98 {dimension_numbers = #tpu.dot_dimension_numbers<[1], [0], [0], [1], [0, 0, 1, 1], [], []>} : vector<8x4xf32>, vector<4x128xf32>, vector<8x128xf32> -> vector<8x128xf32>
    %159 = arith.addf %154, %158 : vector<8x128xf32>
    %c97_i32 = arith.constant 97 : i32
    %160 = tpu.dynamic_rotate %4 by %c97_i32 dim 1 : vector<4x128xf32>, i32 -> vector<4x128xf32>
    %c31 = arith.constant 31 : index
    %c0_99 = arith.constant 0 : index
    %c0_100 = arith.constant 0 : index
    %161 = vector.load %arg1[%c31, %c0_99, %c0_100] : memref<36x8x4xf32, #tpu.memory_space<vmem>>, vector<1x8x4xf32>
    %162 = vector.shape_cast %161 : vector<1x8x4xf32> to vector<8x4xf32>
    %cst_101 = arith.constant dense<0.000000e+00> : vector<8x128xf32>
    %163 = tpu.matmul %162, %160, %cst_101 {dimension_numbers = #tpu.dot_dimension_numbers<[1], [0], [0], [1], [0, 0, 1, 1], [], []>} : vector<8x4xf32>, vector<4x128xf32>, vector<8x128xf32> -> vector<8x128xf32>
    %164 = arith.addf %159, %163 : vector<8x128xf32>
    %c96_i32 = arith.constant 96 : i32
    %165 = tpu.dynamic_rotate %4 by %c96_i32 dim 1 : vector<4x128xf32>, i32 -> vector<4x128xf32>
    %c32 = arith.constant 32 : index
    %c0_102 = arith.constant 0 : index
    %c0_103 = arith.constant 0 : index
    %166 = vector.load %arg1[%c32, %c0_102, %c0_103] : memref<36x8x4xf32, #tpu.memory_space<vmem>>, vector<1x8x4xf32>
    %167 = vector.shape_cast %166 : vector<1x8x4xf32> to vector<8x4xf32>
    %cst_104 = arith.constant dense<0.000000e+00> : vector<8x128xf32>
    %168 = tpu.matmul %167, %165, %cst_104 {dimension_numbers = #tpu.dot_dimension_numbers<[1], [0], [0], [1], [0, 0, 1, 1], [], []>} : vector<8x4xf32>, vector<4x128xf32>, vector<8x128xf32> -> vector<8x128xf32>
    %169 = arith.addf %164, %168 : vector<8x128xf32>
    %c95_i32 = arith.constant 95 : i32
    %170 = tpu.dynamic_rotate %4 by %c95_i32 dim 1 : vector<4x128xf32>, i32 -> vector<4x128xf32>
    %c33 = arith.constant 33 : index
    %c0_105 = arith.constant 0 : index
    %c0_106 = arith.constant 0 : index
    %171 = vector.load %arg1[%c33, %c0_105, %c0_106] : memref<36x8x4xf32, #tpu.memory_space<vmem>>, vector<1x8x4xf32>
    %172 = vector.shape_cast %171 : vector<1x8x4xf32> to vector<8x4xf32>
    %cst_107 = arith.constant dense<0.000000e+00> : vector<8x128xf32>
    %173 = tpu.matmul %172, %170, %cst_107 {dimension_numbers = #tpu.dot_dimension_numbers<[1], [0], [0], [1], [0, 0, 1, 1], [], []>} : vector<8x4xf32>, vector<4x128xf32>, vector<8x128xf32> -> vector<8x128xf32>
    %174 = arith.addf %169, %173 : vector<8x128xf32>
    %c94_i32 = arith.constant 94 : i32
    %175 = tpu.dynamic_rotate %4 by %c94_i32 dim 1 : vector<4x128xf32>, i32 -> vector<4x128xf32>
    %c34 = arith.constant 34 : index
    %c0_108 = arith.constant 0 : index
    %c0_109 = arith.constant 0 : index
    %176 = vector.load %arg1[%c34, %c0_108, %c0_109] : memref<36x8x4xf32, #tpu.memory_space<vmem>>, vector<1x8x4xf32>
    %177 = vector.shape_cast %176 : vector<1x8x4xf32> to vector<8x4xf32>
    %cst_110 = arith.constant dense<0.000000e+00> : vector<8x128xf32>
    %178 = tpu.matmul %177, %175, %cst_110 {dimension_numbers = #tpu.dot_dimension_numbers<[1], [0], [0], [1], [0, 0, 1, 1], [], []>} : vector<8x4xf32>, vector<4x128xf32>, vector<8x128xf32> -> vector<8x128xf32>
    %179 = arith.addf %174, %178 : vector<8x128xf32>
    %c93_i32 = arith.constant 93 : i32
    %180 = tpu.dynamic_rotate %4 by %c93_i32 dim 1 : vector<4x128xf32>, i32 -> vector<4x128xf32>
    %c35 = arith.constant 35 : index
    %c0_111 = arith.constant 0 : index
    %c0_112 = arith.constant 0 : index
    %181 = vector.load %arg1[%c35, %c0_111, %c0_112] : memref<36x8x4xf32, #tpu.memory_space<vmem>>, vector<1x8x4xf32>
    %182 = vector.shape_cast %181 : vector<1x8x4xf32> to vector<8x4xf32>
    %cst_113 = arith.constant dense<0.000000e+00> : vector<8x128xf32>
    %183 = tpu.matmul %182, %180, %cst_113 {dimension_numbers = #tpu.dot_dimension_numbers<[1], [0], [0], [1], [0, 0, 1, 1], [], []>} : vector<8x4xf32>, vector<4x128xf32>, vector<8x128xf32> -> vector<8x128xf32>
    %184 = arith.addf %179, %183 : vector<8x128xf32>
    %c0_114 = arith.constant 0 : index
    %c0_115 = arith.constant 0 : index
    %185 = vector.load %arg2[%c0_114, %c0_115] : memref<8x1xf32, #tpu.memory_space<vmem>>, vector<8x1xf32>
    %186 = vector.broadcast %185 : vector<8x1xf32> to vector<8x128xf32>
    %187 = arith.addf %184, %186 : vector<8x128xf32>
    %188 = vector.extract_strided_slice %187 {offsets = [0, 0], sizes = [8, 29], strides = [1, 1]} : vector<8x128xf32> to vector<8x29xf32>
    %c0_116 = arith.constant 0 : index
    %c0_117 = arith.constant 0 : index
    %c0_118 = arith.constant 0 : index
    %189 = vector.load %arg3[%c0_116, %c0_117, %c0_118] : memref<2x8x29xf32, #tpu.memory_space<vmem>>, vector<1x8x29xf32>
    %190 = vector.shape_cast %189 : vector<1x8x29xf32> to vector<8x29xf32>
    %191 = vector.shape_cast %188 : vector<8x29xf32> to vector<1x8x29xf32>
    tpu.vector_store %arg3[%c0_116, %c0_117, %c0_118], %191 {strides = array<i32>} : memref<2x8x29xf32, #tpu.memory_space<vmem>>, vector<1x8x29xf32>,
    %192 = vector.extract_strided_slice %187 {offsets = [0, 64], sizes = [8, 29], strides = [1, 1]} : vector<8x128xf32> to vector<8x29xf32>
    %c1_119 = arith.constant 1 : index
    %c0_120 = arith.constant 0 : index
    %c0_121 = arith.constant 0 : index
    %193 = vector.load %arg3[%c1_119, %c0_120, %c0_121] : memref<2x8x29xf32, #tpu.memory_space<vmem>>, vector<1x8x29xf32>
    %194 = vector.shape_cast %193 : vector<1x8x29xf32> to vector<8x29xf32>
    %195 = vector.shape_cast %192 : vector<8x29xf32> to vector<1x8x29xf32>
    tpu.vector_store %arg3[%c1_119, %c0_120, %c0_121], %195 {strides = array<i32>} : memref<2x8x29xf32, #tpu.memory_space<vmem>>, vector<1x8x29xf32>,
    return
  }
}

</mosaic_0001>

<llo_original>
// kernel: tpu_custom_call.1
$region0: #{tpu_custom_call.1}
  #allocation0 [shape = 'u32[]', space=smem, size = 0x4, offset = 0x4, fixed_abs, tag = 'smem constant byte address 0x4 - core index']
  #allocation1 [shape = 'u32[144,128]{1,0:T(1,128)}', space=vmem, size = 0x12000, scoped, tag = 'internal scratch']
  %s0 = inlined_call_operand.vmem [shape: f32[2,4,64], index: 0, kind: input, shape index: {}]
  %s1 = inlined_call_operand.vmem [shape: f32[36,8,4], index: 1, kind: input, shape index: {}]
  %s2 = inlined_call_operand.vmem [shape: f32[8,1], index: 2, kind: input, shape index: {}]
  %s3 = inlined_call_operand.hbm [shape: f32[2,8,29], index: 3, kind: output, shape index: {}]
  %s4 = sld [smem:[#allocation0]]
  $region22: #{tpu_custom_call.1} parent=0
    _
  %s6 = ssub.s32 1, %s4
  %s7 = scalar_select 0, %s6, %s4
  $region1: #{tpu_custom_call.1} parent=0
    #allocation2 [shape = 'u8[8192]{0}', space=vmem, size = 0x2000, scoped, tag = 'output window, operand 0, single buffered']
    #allocation3 [shape = 's32[1]{0}', space=sflag, size = 0x4, scoped, tag = 'scoped memory for tpu_custom_call.1']
    %8 = vsyncpa [#allocation3], 0
    // Predicated region
    $region2: #{tpu_custom_call.1} parent=1 // pred_check
      _
    $region3: #{tpu_custom_call.1} parent=1 // pred_check_branch
      %10 = sbr.rel (0) target = $region5
    $region4: #{tpu_custom_call.1} parent=1 // pred_region
      _
    $region5: #{tpu_custom_call.1} parent=1 // pred_fallthru
      _
    // Predicated region
    $region6: #{tpu_custom_call.1} parent=1 // pred_check
      _
    $region7: #{tpu_custom_call.1} parent=1 // pred_check_branch
      %12 = sbr.rel (0) target = $region9
    $region8: #{tpu_custom_call.1} parent=1 // pred_region
      _
    $region9: #{tpu_custom_call.1} parent=1 // pred_fallthru
      _
    // Predicated region
    $region10: #{tpu_custom_call.1} parent=1 // pred_check
      _
    $region11: #{tpu_custom_call.1} parent=1 // pred_check_branch
      %14 = sbr.rel (0) target = $region13
    $region12: #{tpu_custom_call.1} parent=1 // pred_region
      _
    $region13: #{tpu_custom_call.1} parent=1 // pred_fallthru
      _
    %v15 = vld [vmem:[%s0] sm:$0xf]
    %s16 = scalar_lea.vmem %s0, 4
    %v17 = vld [vmem:[%s16] sm:$0xf]
    %19 = vrot.lane.b32.xlu0 %v17, 64
    %v20 = vpop.permute.xlu0 %19
    %vm22 = vcmask 523264
    %v23 = vsel %vm22, %v15, %v20
    %v24 = vld [vmem:[%s1] sm:$0xff]
    %25 = vrot.lane.b32.xlu0 %v23, 127
    %v26 = vpop.permute.xlu0 %25
    %s27 = scalar_lea.vmem %s1, 8
    %v28 = vld [vmem:[%s27] sm:$0xff]
    %vm29 = vcmask 31744
    %v31 = vsel %vm29, %v28, 0
    %vm33 = vcmask 1043456
    %v35 = vsel %vm33, %v26, 0
    %37 = vmatprep.subr.mxu0 0.0
    %38 = vmatpush1.msra.mxu0 %v35
    %39 = vmatprep.subr.mxu0 0.0
    %40 = vmatpush1.msra.mxu0 0.0
    %41 = vmatprep.subr.mxu0 0.0
    %42 = vmatpush1.msra.mxu0 0.0
    %43 = vmatprep.subr.mxu0 0.0
    %44 = vmatpush1.msra.mxu0 0.0
    %45 = vmatprep.subr.mxu0 0.0
    %46 = vmatpush1.msra.mxu0 0.0
    %47 = vmatprep.subr.mxu0 0.0
    %48 = vmatpush1.msra.mxu0 0.0
    %49 = vmatprep.subr.mxu0 0.0
    %50 = vmatpush1.msra.mxu0 0.0
    %51 = vmatprep.subr.mxu0 0.0
    %52 = vmatpush1.msra.mxu0 0.0
    %53 = vmatprep.subr.mxu0 0.0
    %54 = vmatpush1.msra.mxu0 0.0
    %55 = vmatprep.subr.mxu0 0.0
    %56 = vmatpush1.msra.mxu0 0.0
    %57 = vmatprep.subr.mxu0 0.0
    %58 = vmatpush1.msra.mxu0 0.0
    %59 = vmatprep.subr.mxu0 0.0
    %60 = vmatpush1.msra.mxu0 0.0
    %61 = vmatprep.subr.mxu0 0.0
    %62 = vmatpush1.msra.mxu0 0.0
    %63 = vmatprep.subr.mxu0 0.0
    %64 = vmatpush1.msra.mxu0 0.0
    %65 = vmatprep.subr.mxu0 0.0
    %66 = vmatpush1.msra.mxu0 0.0
    %67 = vmatprep.subr.mxu0 0.0
    %68 = vmatpush1.msra.mxu0 0.0
    %69 = vmatprep.subr.mxu0 0.0
    %70 = vmatpush1.msra.mxu0 0.0
    %71 = vmatprep.subr.mxu0 0.0
    %72 = vmatpush1.msra.mxu0 0.0
    %73 = vmatprep.subr.mxu0 0.0
    %74 = vmatpush1.msra.mxu0 0.0
    %75 = vmatprep.subr.mxu0 0.0
    %76 = vmatpush1.msra.mxu0 0.0
    %77 = vmatprep.subr.mxu0 0.0
    %78 = vmatpush1.msra.mxu0 0.0
    %79 = vmatprep.subr.mxu0 0.0
    %80 = vmatpush1.msra.mxu0 0.0
    %81 = vmatprep.subr.mxu0 0.0
    %82 = vmatpush1.msra.mxu0 0.0
    %83 = vmatprep.subr.mxu0 0.0
    %84 = vmatpush1.msra.mxu0 0.0
    %85 = vmatprep.subr.mxu0 0.0
    %86 = vmatpush1.msra.mxu0 0.0
    %87 = vmatprep.subr.mxu0 0.0
    %88 = vmatpush1.msra.mxu0 0.0
    %89 = vmatprep.subr.mxu0 0.0
    %90 = vmatpush1.msra.mxu0 0.0
    %91 = vmatprep.subr.mxu0 0.0
    %92 = vmatpush1.msra.mxu0 0.0
    %93 = vmatprep.subr.mxu0 0.0
    %94 = vmatpush1.msra.mxu0 0.0
    %95 = vmatprep.subr.mxu0 0.0
    %96 = vmatpush1.msra.mxu0 0.0
    %97 = vmatprep.subr.mxu0 0.0
    %98 = vmatpush1.msra.mxu0 0.0
    %99 = vmatprep.subr.mxu0 0.0
    %100 = vmatpush1.msra.mxu0 0.0
    %101 = vmatprep.mubr.f32.mxu0 0.0
    %102 = vmatmul.mubr.f32.gmra.mrb[0].mxu0 %v31
    %v103 = vpop.f32.mrb[0].mxu0
    %v104 = vadd.f32 0.0, %v103
    %v105 = vpop.f32.mrb[0].mxu0
    %106 = vdwg.mxu0
    %v108 = vsel %vm29, %v24, 0
    %v111 = vsel %vm33, %v23, 0
    %113 = vmatprep.subr.mxu0 0.0
    %114 = vmatpush1.msra.mxu0 %v111
    %115 = vmatprep.subr.mxu0 0.0
    %116 = vmatpush1.msra.mxu0 0.0
    %117 = vmatprep.subr.mxu0 0.0
    %118 = vmatpush1.msra.mxu0 0.0
    %119 = vmatprep.subr.mxu0 0.0
    %120 = vmatpush1.msra.mxu0 0.0
    %121 = vmatprep.subr.mxu0 0.0
    %122 = vmatpush1.msra.mxu0 0.0
    %123 = vmatprep.subr.mxu0 0.0
    %124 = vmatpush1.msra.mxu0 0.0
    %125 = vmatprep.subr.mxu0 0.0
    %126 = vmatpush1.msra.mxu0 0.0
    %127 = vmatprep.subr.mxu0 0.0
    %128 = vmatpush1.msra.mxu0 0.0
    %129 = vmatprep.subr.mxu0 0.0
    %130 = vmatpush1.msra.mxu0 0.0
    %131 = vmatprep.subr.mxu0 0.0
    %132 = vmatpush1.msra.mxu0 0.0
    %133 = vmatprep.subr.mxu0 0.0
    %134 = vmatpush1.msra.mxu0 0.0
    %135 = vmatprep.subr.mxu0 0.0
    %136 = vmatpush1.msra.mxu0 0.0
    %137 = vmatprep.subr.mxu0 0.0
    %138 = vmatpush1.msra.mxu0 0.0
    %139 = vmatprep.subr.mxu0 0.0
    %140 = vmatpush1.msra.mxu0 0.0
    %141 = vmatprep.subr.mxu0 0.0
    %142 = vmatpush1.msra.mxu0 0.0
    %143 = vmatprep.subr.mxu0 0.0
    %144 = vmatpush1.msra.mxu0 0.0
    %145 = vmatprep.subr.mxu0 0.0
    %146 = vmatpush1.msra.mxu0 0.0
    %147 = vmatprep.subr.mxu0 0.0
    %148 = vmatpush1.msra.mxu0 0.0
    %149 = vmatprep.subr.mxu0 0.0
    %150 = vmatpush1.msra.mxu0 0.0
    %151 = vmatprep.subr.mxu0 0.0
    %152 = vmatpush1.msra.mxu0 0.0
    %153 = vmatprep.subr.mxu0 0.0
    %154 = vmatpush1.msra.mxu0 0.0
    %155 = vmatprep.subr.mxu0 0.0
    %156 = vmatpush1.msra.mxu0 0.0
    %157 = vmatprep.subr.mxu0 0.0
    %158 = vmatpush1.msra.mxu0 0.0
    %159 = vmatprep.subr.mxu0 0.0
    %160 = vmatpush1.msra.mxu0 0.0
    %161 = vmatprep.subr.mxu0 0.0
    %162 = vmatpush1.msra.mxu0 0.0
    %163 = vmatprep.subr.mxu0 0.0
    %164 = vmatpush1.msra.mxu0 0.0
    %165 = vmatprep.subr.mxu0 0.0
    %166 = vmatpush1.msra.mxu0 0.0
    %167 = vmatprep.subr.mxu0 0.0
    %168 = vmatpush1.msra.mxu0 0.0
    %169 = vmatprep.subr.mxu0 0.0
    %170 = vmatpush1.msra.mxu0 0.0
    %171 = vmatprep.subr.mxu0 0.0
    %172 = vmatpush1.msra.mxu0 0.0
    %173 = vmatprep.subr.mxu0 0.0
    %174 = vmatpush1.msra.mxu0 0.0
    %175 = vmatprep.subr.mxu0 0.0
    %176 = vmatpush1.msra.mxu0 0.0
    %177 = vmatprep.mubr.f32.mxu0 0.0
    %178 = vmatmul.mubr.f32.gmra.mrb[0].mxu0 %v108
    %v179 = vpop.f32.mrb[0].mxu0
    %v180 = vadd.f32 %v104, %v179
    %v181 = vpop.f32.mrb[0].mxu0
    %182 = vdwg.mxu0
    %183 = vrot.lane.b32.xlu0 %v23, 126
    %v184 = vpop.permute.xlu0 %183
    %s185 = scalar_lea.vmem %s1, 16
    %v186 = vld [vmem:[%s185] sm:$0xff]
    %v188 = vsel %vm29, %v186, 0
    %v191 = vsel %vm33, %v184, 0
    %193 = vmatprep.subr.mxu0 0.0
    %194 = vmatpush1.msra.mxu0 %v191
    %195 = vmatprep.subr.mxu0 0.0
    %196 = vmatpush1.msra.mxu0 0.0
    %197 = vmatprep.subr.mxu0 0.0
    %198 = vmatpush1.msra.mxu0 0.0
    %199 = vmatprep.subr.mxu0 0.0
    %200 = vmatpush1.msra.mxu0 0.0
    %201 = vmatprep.subr.mxu0 0.0
    %202 = vmatpush1.msra.mxu0 0.0
    %203 = vmatprep.subr.mxu0 0.0
    %204 = vmatpush1.msra.mxu0 0.0
    %205 = vmatprep.subr.mxu0 0.0
    %206 = vmatpush1.msra.mxu0 0.0
    %207 = vmatprep.subr.mxu0 0.0
    %208 = vmatpush1.msra.mxu0 0.0
    %209 = vmatprep.subr.mxu0 0.0
    %210 = vmatpush1.msra.mxu0 0.0
    %211 = vmatprep.subr.mxu0 0.0
    %212 = vmatpush1.msra.mxu0 0.0
    %213 = vmatprep.subr.mxu0 0.0
    %214 = vmatpush1.msra.mxu0 0.0
    %215 = vmatprep.subr.mxu0 0.0
    %216 = vmatpush1.msra.mxu0 0.0
    %217 = vmatprep.subr.mxu0 0.0
    %218 = vmatpush1.msra.mxu0 0.0
    %219 = vmatprep.subr.mxu0 0.0
    %220 = vmatpush1.msra.mxu0 0.0
    %221 = vmatprep.subr.mxu0 0.0
    %222 = vmatpush1.msra.mxu0 0.0
    %223 = vmatprep.subr.mxu0 0.0
    %224 = vmatpush1.msra.mxu0 0.0
    %225 = vmatprep.subr.mxu0 0.0
    %226 = vmatpush1.msra.mxu0 0.0
    %227 = vmatprep.subr.mxu0 0.0
    %228 = vmatpush1.msra.mxu0 0.0
    %229 = vmatprep.subr.mxu0 0.0
    %230 = vmatpush1.msra.mxu0 0.0
    %231 = vmatprep.subr.mxu0 0.0
    %232 = vmatpush1.msra.mxu0 0.0
    %233 = vmatprep.subr.mxu0 0.0
    %234 = vmatpush1.msra.mxu0 0.0
    %235 = vmatprep.subr.mxu0 0.0
    %236 = vmatpush1.msra.mxu0 0.0
    %237 = vmatprep.subr.mxu0 0.0
    %238 = vmatpush1.msra.mxu0 0.0
    %239 = vmatprep.subr.mxu0 0.0
    %240 = vmatpush1.msra.mxu0 0.0
    %241 = vmatprep.subr.mxu0 0.0
    %242 = vmatpush1.msra.mxu0 0.0
    %243 = vmatprep.subr.mxu0 0.0
    %244 = vmatpush1.msra.mxu0 0.0
    %245 = vmatprep.subr.mxu0 0.0
    %246 = vmatpush1.msra.mxu0 0.0
    %247 = vmatprep.subr.mxu0 0.0
    %248 = vmatpush1.msra.mxu0 0.0
    %249 = vmatprep.subr.mxu0 0.0
    %250 = vmatpush1.msra.mxu0 0.0
    %251 = vmatprep.subr.mxu0 0.0
    %252 = vmatpush1.msra.mxu0 0.0
    %253 = vmatprep.subr.mxu0 0.0
    %254 = vmatpush1.msra.mxu0 0.0
    %255 = vmatprep.subr.mxu0 0.0
    %256 = vmatpush1.msra.mxu0 0.0
    %257 = vmatprep.mubr.f32.mxu0 0.0
    %258 = vmatmul.mubr.f32.gmra.mrb[0].mxu0 %v188
    %v259 = vpop.f32.mrb[0].mxu0
    %v260 = vadd.f32 0.0, %v259
    %v261 = vpop.f32.mrb[0].mxu0
    %262 = vdwg.mxu0
    %v263 = vadd.f32 %v180, %v260
    %264 = vrot.lane.b32.xlu0 %v23, 125
    %v265 = vpop.permute.xlu0 %264
    %s266 = scalar_lea.vmem %s1, 24
    %v267 = vld [vmem:[%s266] sm:$0xff]
    %v269 = vsel %vm29, %v267, 0
    %v272 = vsel %vm33, %v265, 0
    %274 = vmatprep.subr.mxu0 0.0
    %275 = vmatpush1.msra.mxu0 %v272
    %276 = vmatprep.subr.mxu0 0.0
    %277 = vmatpush1.msra.mxu0 0.0
    %278 = vmatprep.subr.mxu0 0.0
    %279 = vmatpush1.msra.mxu0 0.0
    %280 = vmatprep.subr.mxu0 0.0
    %281 = vmatpush1.msra.mxu0 0.0
    %282 = vmatprep.subr.mxu0 0.0
    %283 = vmatpush1.msra.mxu0 0.0
    %284 = vmatprep.subr.mxu0 0.0
    %285 = vmatpush1.msra.mxu0 0.0
    %286 = vmatprep.subr.mxu0 0.0
    %287 = vmatpush1.msra.mxu0 0.0
    %288 = vmatprep.subr.mxu0 0.0
    %289 = vmatpush1.msra.mxu0 0.0
    %290 = vmatprep.subr.mxu0 0.0
    %291 = vmatpush1.msra.mxu0 0.0
    %292 = vmatprep.subr.mxu0 0.0
    %293 = vmatpush1.msra.mxu0 0.0
    %294 = vmatprep.subr.mxu0 0.0
    %295 = vmatpush1.msra.mxu0 0.0
    %296 = vmatprep.subr.mxu0 0.0
    %297 = vmatpush1.msra.mxu0 0.0
    %298 = vmatprep.subr.mxu0 0.0
    %299 = vmatpush1.msra.mxu0 0.0
    %300 = vmatprep.subr.mxu0 0.0
    %301 = vmatpush1.msra.mxu0 0.0
    %302 = vmatprep.subr.mxu0 0.0
    %303 = vmatpush1.msra.mxu0 0.0
    %304 = vmatprep.subr.mxu0 0.0
    %305 = vmatpush1.msra.mxu0 0.0
    %306 = vmatprep.subr.mxu0 0.0
    %307 = vmatpush1.msra.mxu0 0.0
    %308 = vmatprep.subr.mxu0 0.0
    %309 = vmatpush1.msra.mxu0 0.0
    %310 = vmatprep.subr.mxu0 0.0
    %311 = vmatpush1.msra.mxu0 0.0
    %312 = vmatprep.subr.mxu0 0.0
    %313 = vmatpush1.msra.mxu0 0.0
    %314 = vmatprep.subr.mxu0 0.0
    %315 = vmatpush1.msra.mxu0 0.0
    %316 = vmatprep.subr.mxu0 0.0
    %317 = vmatpush1.msra.mxu0 0.0
    %318 = vmatprep.subr.mxu0 0.0
    %319 = vmatpush1.msra.mxu0 0.0
    %320 = vmatprep.subr.mxu0 0.0
    %321 = vmatpush1.msra.mxu0 0.0
    %322 = vmatprep.subr.mxu0 0.0
    %323 = vmatpush1.msra.mxu0 0.0
    %324 = vmatprep.subr.mxu0 0.0
    %325 = vmatpush1.msra.mxu0 0.0
    %326 = vmatprep.subr.mxu0 0.0
    %327 = vmatpush1.msra.mxu0 0.0
    %328 = vmatprep.subr.mxu0 0.0
    %329 = vmatpush1.msra.mxu0 0.0
    %330 = vmatprep.subr.mxu0 0.0
    %331 = vmatpush1.msra.mxu0 0.0
    %332 = vmatprep.subr.mxu0 0.0
    %333 = vmatpush1.msra.mxu0 0.0
    %334 = vmatprep.subr.mxu0 0.0
    %335 = vmatpush1.msra.mxu0 0.0
    %336 = vmatprep.subr.mxu0 0.0
    %337 = vmatpush1.msra.mxu0 0.0
    %338 = vmatprep.mubr.f32.mxu0 0.0
    %339 = vmatmul.mubr.f32.gmra.mrb[0].mxu0 %v269
    %v340 = vpop.f32.mrb[0].mxu0
    %v341 = vadd.f32 0.0, %v340
    %v342 = vpop.f32.mrb[0].mxu0
    %343 = vdwg.mxu0
    %v344 = vadd.f32 %v263, %v341
    %345 = vrot.lane.b32.xlu0 %v23, 124
    %v346 = vpop.permute.xlu0 %345
    %s347 = scalar_lea.vmem %s1, 32
    %v348 = vld [vmem:[%s347] sm:$0xff]
    %v350 = vsel %vm29, %v348, 0
    %v353 = vsel %vm33, %v346, 0
    %355 = vmatprep.subr.mxu0 0.0
    %356 = vmatpush1.msra.mxu0 %v353
    %357 = vmatprep.subr.mxu0 0.0
    %358 = vmatpush1.msra.mxu0 0.0
    %359 = vmatprep.subr.mxu0 0.0
    %360 = vmatpush1.msra.mxu0 0.0
    %361 = vmatprep.subr.mxu0 0.0
    %362 = vmatpush1.msra.mxu0 0.0
    %363 = vmatprep.subr.mxu0 0.0
    %364 = vmatpush1.msra.mxu0 0.0
    %365 = vmatprep.subr.mxu0 0.0
    %366 = vmatpush1.msra.mxu0 0.0
    %367 = vmatprep.subr.mxu0 0.0
    %368 = vmatpush1.msra.mxu0 0.0
    %369 = vmatprep.subr.mxu0 0.0
    %370 = vmatpush1.msra.mxu0 0.0
    %371 = vmatprep.subr.mxu0 0.0
    %372 = vmatpush1.msra.mxu0 0.0
    %373 = vmatprep.subr.mxu0 0.0
    %374 = vmatpush1.msra.mxu0 0.0
    %375 = vmatprep.subr.mxu0 0.0
    %376 = vmatpush1.msra.mxu0 0.0
    %377 = vmatprep.subr.mxu0 0.0
    %378 = vmatpush1.msra.mxu0 0.0
    %379 = vmatprep.subr.mxu0 0.0
    %380 = vmatpush1.msra.mxu0 0.0
    %381 = vmatprep.subr.mxu0 0.0
    %382 = vmatpush1.msra.mxu0 0.0
    %383 = vmatprep.subr.mxu0 0.0
    %384 = vmatpush1.msra.mxu0 0.0
    %385 = vmatprep.subr.mxu0 0.0
    %386 = vmatpush1.msra.mxu0 0.0
    %387 = vmatprep.subr.mxu0 0.0
    %388 = vmatpush1.msra.mxu0 0.0
    %389 = vmatprep.subr.mxu0 0.0
    %390 = vmatpush1.msra.mxu0 0.0
    %391 = vmatprep.subr.mxu0 0.0
    %392 = vmatpush1.msra.mxu0 0.0
    %393 = vmatprep.subr.mxu0 0.0
    %394 = vmatpush1.msra.mxu0 0.0
    %395 = vmatprep.subr.mxu0 0.0
    %396 = vmatpush1.msra.mxu0 0.0
    %397 = vmatprep.subr.mxu0 0.0
    %398 = vmatpush1.msra.mxu0 0.0
    %399 = vmatprep.subr.mxu0 0.0
    %400 = vmatpush1.msra.mxu0 0.0
    %401 = vmatprep.subr.mxu0 0.0
    %402 = vmatpush1.msra.mxu0 0.0
    %403 = vmatprep.subr.mxu0 0.0
    %404 = vmatpush1.msra.mxu0 0.0
    %405 = vmatprep.subr.mxu0 0.0
    %406 = vmatpush1.msra.mxu0 0.0
    %407 = vmatprep.subr.mxu0 0.0
    %408 = vmatpush1.msra.mxu0 0.0
    %409 = vmatprep.subr.mxu0 0.0
    %410 = vmatpush1.msra.mxu0 0.0
    %411 = vmatprep.subr.mxu0 0.0
    %412 = vmatpush1.msra.mxu0 0.0
    %413 = vmatprep.subr.mxu0 0.0
    %414 = vmatpush1.msra.mxu0 0.0
    %415 = vmatprep.subr.mxu0 0.0
    %416 = vmatpush1.msra.mxu0 0.0
    %417 = vmatprep.subr.mxu0 0.0
    %418 = vmatpush1.msra.mxu0 0.0
    %419 = vmatprep.mubr.f32.mxu0 0.0
    %420 = vmatmul.mubr.f32.gmra.mrb[0].mxu0 %v350
    %v421 = vpop.f32.mrb[0].mxu0
    %v422 = vadd.f32 0.0, %v421
    %v423 = vpop.f32.mrb[0].mxu0
    %424 = vdwg.mxu0
    %v425 = vadd.f32 %v344, %v422
    %426 = vrot.lane.b32.xlu0 %v23, 123
    %v427 = vpop.permute.xlu0 %426
    %s428 = scalar_lea.vmem %s1, 40
    %v429 = vld [vmem:[%s428] sm:$0xff]
    %v431 = vsel %vm29, %v429, 0
    %v434 = vsel %vm33, %v427, 0
    %436 = vmatprep.subr.mxu0 0.0
    %437 = vmatpush1.msra.mxu0 %v434
    %438 = vmatprep.subr.mxu0 0.0
    %439 = vmatpush1.msra.mxu0 0.0
    %440 = vmatprep.subr.mxu0 0.0
    %441 = vmatpush1.msra.mxu0 0.0
    %442 = vmatprep.subr.mxu0 0.0
    %443 = vmatpush1.msra.mxu0 0.0
    %444 = vmatprep.subr.mxu0 0.0
    %445 = vmatpush1.msra.mxu0 0.0
    %446 = vmatprep.subr.mxu0 0.0
    %447 = vmatpush1.msra.mxu0 0.0
    %448 = vmatprep.subr.mxu0 0.0
    %449 = vmatpush1.msra.mxu0 0.0
    %450 = vmatprep.subr.mxu0 0.0
    %451 = vmatpush1.msra.mxu0 0.0
    %452 = vmatprep.subr.mxu0 0.0
    %453 = vmatpush1.msra.mxu0 0.0
    %454 = vmatprep.subr.mxu0 0.0
    %455 = vmatpush1.msra.mxu0 0.0
    %456 = vmatprep.subr.mxu0 0.0
    %457 = vmatpush1.msra.mxu0 0.0
    %458 = vmatprep.subr.mxu0 0.0
    %459 = vmatpush1.msra.mxu0 0.0
    %460 = vmatprep.subr.mxu0 0.0
    %461 = vmatpush1.msra.mxu0 0.0
    %462 = vmatprep.subr.mxu0 0.0
    %463 = vmatpush1.msra.mxu0 0.0
    %464 = vmatprep.subr.mxu0 0.0
    %465 = vmatpush1.msra.mxu0 0.0
    %466 = vmatprep.subr.mxu0 0.0
    %467 = vmatpush1.msra.mxu0 0.0
    %468 = vmatprep.subr.mxu0 0.0
    %469 = vmatpush1.msra.mxu0 0.0
    %470 = vmatprep.subr.mxu0 0.0
    %471 = vmatpush1.msra.mxu0 0.0
    %472 = vmatprep.subr.mxu0 0.0
    %473 = vmatpush1.msra.mxu0 0.0
    %474 = vmatprep.subr.mxu0 0.0
    %475 = vmatpush1.msra.mxu0 0.0
    %476 = vmatprep.subr.mxu0 0.0
    %477 = vmatpush1.msra.mxu0 0.0
    %478 = vmatprep.subr.mxu0 0.0
    %479 = vmatpush1.msra.mxu0 0.0
    %480 = vmatprep.subr.mxu0 0.0
    %481 = vmatpush1.msra.mxu0 0.0
    %482 = vmatprep.subr.mxu0 0.0
    %483 = vmatpush1.msra.mxu0 0.0
    %484 = vmatprep.subr.mxu0 0.0
    %485 = vmatpush1.msra.mxu0 0.0
    %486 = vmatprep.subr.mxu0 0.0
    %487 = vmatpush1.msra.mxu0 0.0
    %488 = vmatprep.subr.mxu0 0.0
    %489 = vmatpush1.msra.mxu0 0.0
    %490 = vmatprep.subr.mxu0 0.0
    %491 = vmatpush1.msra.mxu0 0.0
    %492 = vmatprep.subr.mxu0 0.0
    %493 = vmatpush1.msra.mxu0 0.0
    %494 = vmatprep.subr.mxu0 0.0
    %495 = vmatpush1.msra.mxu0 0.0
    %496 = vmatprep.subr.mxu0 0.0
    %497 = vmatpush1.msra.mxu0 0.0
    %498 = vmatprep.subr.mxu0 0.0
    %499 = vmatpush1.msra.mxu0 0.0
    %500 = vmatprep.mubr.f32.mxu0 0.0
    %501 = vmatmul.mubr.f32.gmra.mrb[0].mxu0 %v431
    %v502 = vpop.f32.mrb[0].mxu0
    %v503 = vadd.f32 0.0, %v502
    %v504 = vpop.f32.mrb[0].mxu0
    %505 = vdwg.mxu0
    %v506 = vadd.f32 %v425, %v503
    %507 = vrot.lane.b32.xlu0 %v23, 122
    %v508 = vpop.permute.xlu0 %507
    %s509 = scalar_lea.vmem %s1, 48
    %v510 = vld [vmem:[%s509] sm:$0xff]
    %v512 = vsel %vm29, %v510, 0
    %v515 = vsel %vm33, %v508, 0
    %517 = vmatprep.subr.mxu0 0.0
    %518 = vmatpush1.msra.mxu0 %v515
    %519 = vmatprep.subr.mxu0 0.0
    %520 = vmatpush1.msra.mxu0 0.0
    %521 = vmatprep.subr.mxu0 0.0
    %522 = vmatpush1.msra.mxu0 0.0
    %523 = vmatprep.subr.mxu0 0.0
    %524 = vmatpush1.msra.mxu0 0.0
    %525 = vmatprep.subr.mxu0 0.0
    %526 = vmatpush1.msra.mxu0 0.0
    %527 = vmatprep.subr.mxu0 0.0
    %528 = vmatpush1.msra.mxu0 0.0
    %529 = vmatprep.subr.mxu0 0.0
    %530 = vmatpush1.msra.mxu0 0.0
    %531 = vmatprep.subr.mxu0 0.0
    %532 = vmatpush1.msra.mxu0 0.0
    %533 = vmatprep.subr.mxu0 0.0
    %534 = vmatpush1.msra.mxu0 0.0
    %535 = vmatprep.subr.mxu0 0.0
    %536 = vmatpush1.msra.mxu0 0.0
    %537 = vmatprep.subr.mxu0 0.0
    %538 = vmatpush1.msra.mxu0 0.0
    %539 = vmatprep.subr.mxu0 0.0
    %540 = vmatpush1.msra.mxu0 0.0
    %541 = vmatprep.subr.mxu0 0.0
    %542 = vmatpush1.msra.mxu0 0.0
    %543 = vmatprep.subr.mxu0 0.0
    %544 = vmatpush1.msra.mxu0 0.0
    %545 = vmatprep.subr.mxu0 0.0
    %546 = vmatpush1.msra.mxu0 0.0
    %547 = vmatprep.subr.mxu0 0.0
    %548 = vmatpush1.msra.mxu0 0.0
    %549 = vmatprep.subr.mxu0 0.0
    %550 = vmatpush1.msra.mxu0 0.0
    %551 = vmatprep.subr.mxu0 0.0
    %552 = vmatpush1.msra.mxu0 0.0
    %553 = vmatprep.subr.mxu0 0.0
    %554 = vmatpush1.msra.mxu0 0.0
    %555 = vmatprep.subr.mxu0 0.0
    %556 = vmatpush1.msra.mxu0 0.0
    %557 = vmatprep.subr.mxu0 0.0
    %558 = vmatpush1.msra.mxu0 0.0
    %559 = vmatprep.subr.mxu0 0.0
    %560 = vmatpush1.msra.mxu0 0.0
    %561 = vmatprep.subr.mxu0 0.0
    %562 = vmatpush1.msra.mxu0 0.0
    %563 = vmatprep.subr.mxu0 0.0
    %564 = vmatpush1.msra.mxu0 0.0
    %565 = vmatprep.subr.mxu0 0.0
    %566 = vmatpush1.msra.mxu0 0.0
    %567 = vmatprep.subr.mxu0 0.0
    %568 = vmatpush1.msra.mxu0 0.0
    %569 = vmatprep.subr.mxu0 0.0
    %570 = vmatpush1.msra.mxu0 0.0
    %571 = vmatprep.subr.mxu0 0.0
    %572 = vmatpush1.msra.mxu0 0.0
    %573 = vmatprep.subr.mxu0 0.0
    %574 = vmatpush1.msra.mxu0 0.0
    %575 = vmatprep.subr.mxu0 0.0
    %576 = vmatpush1.msra.mxu0 0.0
    %577 = vmatprep.subr.mxu0 0.0
    %578 = vmatpush1.msra.mxu0 0.0
    %579 = vmatprep.subr.mxu0 0.0
    %580 = vmatpush1.msra.mxu0 0.0
    %581 = vmatprep.mubr.f32.mxu0 0.0
    %582 = vmatmul.mubr.f32.gmra.mrb[0].mxu0 %v512
    %v583 = vpop.f32.mrb[0].mxu0
    %v584 = vadd.f32 0.0, %v583
    %v585 = vpop.f32.mrb[0].mxu0
    %586 = vdwg.mxu0
    %v587 = vadd.f32 %v506, %v584
    %588 = vrot.lane.b32.xlu0 %v23, 121
    %v589 = vpop.permute.xlu0 %588
    %s590 = scalar_lea.vmem %s1, 56
    %v591 = vld [vmem:[%s590] sm:$0xff]
    %v593 = vsel %vm29, %v591, 0
    %v596 = vsel %vm33, %v589, 0
    %598 = vmatprep.subr.mxu0 0.0
    %599 = vmatpush1.msra.mxu0 %v596
    %600 = vmatprep.subr.mxu0 0.0
    %601 = vmatpush1.msra.mxu0 0.0
    %602 = vmatprep.subr.mxu0 0.0
    %603 = vmatpush1.msra.mxu0 0.0
    %604 = vmatprep.subr.mxu0 0.0
    %605 = vmatpush1.msra.mxu0 0.0
    %606 = vmatprep.subr.mxu0 0.0
    %607 = vmatpush1.msra.mxu0 0.0
    %608 = vmatprep.subr.mxu0 0.0
    %609 = vmatpush1.msra.mxu0 0.0
    %610 = vmatprep.subr.mxu0 0.0
    %611 = vmatpush1.msra.mxu0 0.0
    %612 = vmatprep.subr.mxu0 0.0
    %613 = vmatpush1.msra.mxu0 0.0
    %614 = vmatprep.subr.mxu0 0.0
    %615 = vmatpush1.msra.mxu0 0.0
    %616 = vmatprep.subr.mxu0 0.0
    %617 = vmatpush1.msra.mxu0 0.0
    %618 = vmatprep.subr.mxu0 0.0
    %619 = vmatpush1.msra.mxu0 0.0
    %620 = vmatprep.subr.mxu0 0.0
    %621 = vmatpush1.msra.mxu0 0.0
    %622 = vmatprep.subr.mxu0 0.0
    %623 = vmatpush1.msra.mxu0 0.0
    %624 = vmatprep.subr.mxu0 0.0
    %625 = vmatpush1.msra.mxu0 0.0
    %626 = vmatprep.subr.mxu0 0.0
    %627 = vmatpush1.msra.mxu0 0.0
    %628 = vmatprep.subr.mxu0 0.0
    %629 = vmatpush1.msra.mxu0 0.0
    %630 = vmatprep.subr.mxu0 0.0
    %631 = vmatpush1.msra.mxu0 0.0
    %632 = vmatprep.subr.mxu0 0.0
    %633 = vmatpush1.msra.mxu0 0.0
    %634 = vmatprep.subr.mxu0 0.0
    %635 = vmatpush1.msra.mxu0 0.0
    %636 = vmatprep.subr.mxu0 0.0
    %637 = vmatpush1.msra.mxu0 0.0
    %638 = vmatprep.subr.mxu0 0.0
    %639 = vmatpush1.msra.mxu0 0.0
    %640 = vmatprep.subr.mxu0 0.0
    %641 = vmatpush1.msra.mxu0 0.0
    %642 = vmatprep.subr.mxu0 0.0
    %643 = vmatpush1.msra.mxu0 0.0
    %644 = vmatprep.subr.mxu0 0.0
    %645 = vmatpush1.msra.mxu0 0.0
    %646 = vmatprep.subr.mxu0 0.0
    %647 = vmatpush1.msra.mxu0 0.0
    %648 = vmatprep.subr.mxu0 0.0
    %649 = vmatpush1.msra.mxu0 0.0
    %650 = vmatprep.subr.mxu0 0.0
    %651 = vmatpush1.msra.mxu0 0.0
    %652 = vmatprep.subr.mxu0 0.0
    %653 = vmatpush1.msra.mxu0 0.0
    %654 = vmatprep.subr.mxu0 0.0
    %655 = vmatpush1.msra.mxu0 0.0
    %656 = vmatprep.subr.mxu0 0.0
    %657 = vmatpush1.msra.mxu0 0.0
    %658 = vmatprep.subr.mxu0 0.0
    %659 = vmatpush1.msra.mxu0 0.0
    %660 = vmatprep.subr.mxu0 0.0
    %661 = vmatpush1.msra.mxu0 0.0
    %662 = vmatprep.mubr.f32.mxu0 0.0
    %663 = vmatmul.mubr.f32.gmra.mrb[0].mxu0 %v593
    %v664 = vpop.f32.mrb[0].mxu0
    %v665 = vadd.f32 0.0, %v664
    %v666 = vpop.f32.mrb[0].mxu0
    %667 = vdwg.mxu0
    %v668 = vadd.f32 %v587, %v665
    %669 = vrot.lane.b32.xlu0 %v23, 120
    %v670 = vpop.permute.xlu0 %669
    %s671 = scalar_lea.vmem %s1, 64
    %v672 = vld [vmem:[%s671] sm:$0xff]
    %v674 = vsel %vm29, %v672, 0
    %v677 = vsel %vm33, %v670, 0
    %679 = vmatprep.subr.mxu0 0.0
    %680 = vmatpush1.msra.mxu0 %v677
    %681 = vmatprep.subr.mxu0 0.0
    %682 = vmatpush1.msra.mxu0 0.0
    %683 = vmatprep.subr.mxu0 0.0
    %684 = vmatpush1.msra.mxu0 0.0
    %685 = vmatprep.subr.mxu0 0.0
    %686 = vmatpush1.msra.mxu0 0.0
    %687 = vmatprep.subr.mxu0 0.0
    %688 = vmatpush1.msra.mxu0 0.0
    %689 = vmatprep.subr.mxu0 0.0
    %690 = vmatpush1.msra.mxu0 0.0
    %691 = vmatprep.subr.mxu0 0.0
    %692 = vmatpush1.msra.mxu0 0.0
    %693 = vmatprep.subr.mxu0 0.0
    %694 = vmatpush1.msra.mxu0 0.0
    %695 = vmatprep.subr.mxu0 0.0
    %696 = vmatpush1.msra.mxu0 0.0
    %697 = vmatprep.subr.mxu0 0.0
    %698 = vmatpush1.msra.mxu0 0.0
    %699 = vmatprep.subr.mxu0 0.0
    %700 = vmatpush1.msra.mxu0 0.0
    %701 = vmatprep.subr.mxu0 0.0
    %702 = vmatpush1.msra.mxu0 0.0
    %703 = vmatprep.subr.mxu0 0.0
    %704 = vmatpush1.msra.mxu0 0.0
    %705 = vmatprep.subr.mxu0 0.0
    %706 = vmatpush1.msra.mxu0 0.0
    %707 = vmatprep.subr.mxu0 0.0
    %708 = vmatpush1.msra.mxu0 0.0
    %709 = vmatprep.subr.mxu0 0.0
    %710 = vmatpush1.msra.mxu0 0.0
    %711 = vmatprep.subr.mxu0 0.0
    %712 = vmatpush1.msra.mxu0 0.0
    %713 = vmatprep.subr.mxu0 0.0
    %714 = vmatpush1.msra.mxu0 0.0
    %715 = vmatprep.subr.mxu0 0.0
    %716 = vmatpush1.msra.mxu0 0.0
    %717 = vmatprep.subr.mxu0 0.0
    %718 = vmatpush1.msra.mxu0 0.0
    %719 = vmatprep.subr.mxu0 0.0
    %720 = vmatpush1.msra.mxu0 0.0
    %721 = vmatprep.subr.mxu0 0.0
    %722 = vmatpush1.msra.mxu0 0.0
    %723 = vmatprep.subr.mxu0 0.0
    %724 = vmatpush1.msra.mxu0 0.0
    %725 = vmatprep.subr.mxu0 0.0
    %726 = vmatpush1.msra.mxu0 0.0
    %727 = vmatprep.subr.mxu0 0.0
    %728 = vmatpush1.msra.mxu0 0.0
    %729 = vmatprep.subr.mxu0 0.0
    %730 = vmatpush1.msra.mxu0 0.0
    %731 = vmatprep.subr.mxu0 0.0
    %732 = vmatpush1.msra.mxu0 0.0
    %733 = vmatprep.subr.mxu0 0.0
    %734 = vmatpush1.msra.mxu0 0.0
    %735 = vmatprep.subr.mxu0 0.0
    %736 = vmatpush1.msra.mxu0 0.0
    %737 = vmatprep.subr.mxu0 0.0
    %738 = vmatpush1.msra.mxu0 0.0
    %739 = vmatprep.subr.mxu0 0.0
    %740 = vmatpush1.msra.mxu0 0.0
    %741 = vmatprep.subr.mxu0 0.0
    %742 = vmatpush1.msra.mxu0 0.0
    %743 = vmatprep.mubr.f32.mxu0 0.0
    %744 = vmatmul.mubr.f32.gmra.mrb[0].mxu0 %v674
    %v745 = vpop.f32.mrb[0].mxu0
    %v746 = vadd.f32 0.0, %v745
    %v747 = vpop.f32.mrb[0].mxu0
    %748 = vdwg.mxu0
    %v749 = vadd.f32 %v668, %v746
    %750 = vrot.lane.b32.xlu0 %v23, 119
    %v751 = vpop.permute.xlu0 %750
    %s752 = scalar_lea.vmem %s1, 72
    %v753 = vld [vmem:[%s752] sm:$0xff]
    %v755 = vsel %vm29, %v753, 0
    %v758 = vsel %vm33, %v751, 0
    %760 = vmatprep.subr.mxu0 0.0
    %761 = vmatpush1.msra.mxu0 %v758
    %762 = vmatprep.subr.mxu0 0.0
    %763 = vmatpush1.msra.mxu0 0.0
    %764 = vmatprep.subr.mxu0 0.0
    %765 = vmatpush1.msra.mxu0 0.0
    %766 = vmatprep.subr.mxu0 0.0
    %767 = vmatpush1.msra.mxu0 0.0
    %768 = vmatprep.subr.mxu0 0.0
    %769 = vmatpush1.msra.mxu0 0.0
    %770 = vmatprep.subr.mxu0 0.0
    %771 = vmatpush1.msra.mxu0 0.0
    %772 = vmatprep.subr.mxu0 0.0
    %773 = vmatpush1.msra.mxu0 0.0
    %774 = vmatprep.subr.mxu0 0.0
    %775 = vmatpush1.msra.mxu0 0.0
    %776 = vmatprep.subr.mxu0 0.0
    %777 = vmatpush1.msra.mxu0 0.0
    %778 = vmatprep.subr.mxu0 0.0
    %779 = vmatpush1.msra.mxu0 0.0
    %780 = vmatprep.subr.mxu0 0.0
    %781 = vmatpush1.msra.mxu0 0.0
    %782 = vmatprep.subr.mxu0 0.0
    %783 = vmatpush1.msra.mxu0 0.0
    %784 = vmatprep.subr.mxu0 0.0
    %785 = vmatpush1.msra.mxu0 0.0
    %786 = vmatprep.subr.mxu0 0.0
    %787 = vmatpush1.msra.mxu0 0.0
    %788 = vmatprep.subr.mxu0 0.0
    %789 = vmatpush1.msra.mxu0 0.0
    %790 = vmatprep.subr.mxu0 0.0
    %791 = vmatpush1.msra.mxu0 0.0
    %792 = vmatprep.subr.mxu0 0.0
    %793 = vmatpush1.msra.mxu0 0.0
    %794 = vmatprep.subr.mxu0 0.0
    %795 = vmatpush1.msra.mxu0 0.0
    %796 = vmatprep.subr.mxu0 0.0
    %797 = vmatpush1.msra.mxu0 0.0
    %798 = vmatprep.subr.mxu0 0.0
    %799 = vmatpush1.msra.mxu0 0.0
    %800 = vmatprep.subr.mxu0 0.0
    %801 = vmatpush1.msra.mxu0 0.0
    %802 = vmatprep.subr.mxu0 0.0
    %803 = vmatpush1.msra.mxu0 0.0
    %804 = vmatprep.subr.mxu0 0.0
    %805 = vmatpush1.msra.mxu0 0.0
    %806 = vmatprep.subr.mxu0 0.0
    %807 = vmatpush1.msra.mxu0 0.0
    %808 = vmatprep.subr.mxu0 0.0
    %809 = vmatpush1.msra.mxu0 0.0
    %810 = vmatprep.subr.mxu0 0.0
    %811 = vmatpush1.msra.mxu0 0.0
    %812 = vmatprep.subr.mxu0 0.0
    %813 = vmatpush1.msra.mxu0 0.0
    %814 = vmatprep.subr.mxu0 0.0
    %815 = vmatpush1.msra.mxu0 0.0
    %816 = vmatprep.subr.mxu0 0.0
    %817 = vmatpush1.msra.mxu0 0.0
    %818 = vmatprep.subr.mxu0 0.0
    %819 = vmatpush1.msra.mxu0 0.0
    %820 = vmatprep.subr.mxu0 0.0
    %821 = vmatpush1.msra.mxu0 0.0
    %822 = vmatprep.subr.mxu0 0.0
    %823 = vmatpush1.msra.mxu0 0.0
    %824 = vmatprep.mubr.f32.mxu0 0.0
    %825 = vmatmul.mubr.f32.gmra.mrb[0].mxu0 %v755
    %v826 = vpop.f32.mrb[0].mxu0
    %v827 = vadd.f32 0.0, %v826
    %v828 = vpop.f32.mrb[0].mxu0
    %829 = vdwg.mxu0
    %v830 = vadd.f32 %v749, %v827
    %831 = vrot.lane.b32.xlu0 %v23, 118
    %v832 = vpop.permute.xlu0 %831
    %s833 = scalar_lea.vmem %s1, 80
    %v834 = vld [vmem:[%s833] sm:$0xff]
    %v836 = vsel %vm29, %v834, 0
    %v839 = vsel %vm33, %v832, 0
    %841 = vmatprep.subr.mxu0 0.0
    %842 = vmatpush1.msra.mxu0 %v839
    %843 = vmatprep.subr.mxu0 0.0
    %844 = vmatpush1.msra.mxu0 0.0
    %845 = vmatprep.subr.mxu0 0.0
    %846 = vmatpush1.msra.mxu0 0.0
    %847 = vmatprep.subr.mxu0 0.0
    %848 = vmatpush1.msra.mxu0 0.0
    %849 = vmatprep.subr.mxu0 0.0
    %850 = vmatpush1.msra.mxu0 0.0
    %851 = vmatprep.subr.mxu0 0.0
    %852 = vmatpush1.msra.mxu0 0.0
    %853 = vmatprep.subr.mxu0 0.0
    %854 = vmatpush1.msra.mxu0 0.0
    %855 = vmatprep.subr.mxu0 0.0
    %856 = vmatpush1.msra.mxu0 0.0
    %857 = vmatprep.subr.mxu0 0.0
    %858 = vmatpush1.msra.mxu0 0.0
    %859 = vmatprep.subr.mxu0 0.0
    %860 = vmatpush1.msra.mxu0 0.0
    %861 = vmatprep.subr.mxu0 0.0
    %862 = vmatpush1.msra.mxu0 0.0
    %863 = vmatprep.subr.mxu0 0.0
    %864 = vmatpush1.msra.mxu0 0.0
    %865 = vmatprep.subr.mxu0 0.0
    %866 = vmatpush1.msra.mxu0 0.0
    %867 = vmatprep.subr.mxu0 0.0
    %868 = vmatpush1.msra.mxu0 0.0
    %869 = vmatprep.subr.mxu0 0.0
    %870 = vmatpush1.msra.mxu0 0.0
    %871 = vmatprep.subr.mxu0 0.0
    %872 = vmatpush1.msra.mxu0 0.0
    %873 = vmatprep.subr.mxu0 0.0
    %874 = vmatpush1.msra.mxu0 0.0
    %875 = vmatprep.subr.mxu0 0.0
    %876 = vmatpush1.msra.mxu0 0.0
    %877 = vmatprep.subr.mxu0 0.0
    %878 = vmatpush1.msra.mxu0 0.0
    %879 = vmatprep.subr.mxu0 0.0
    %880 = vmatpush1.msra.mxu0 0.0
    %881 = vmatprep.subr.mxu0 0.0
    %882 = vmatpush1.msra.mxu0 0.0
    %883 = vmatprep.subr.mxu0 0.0
    %884 = vmatpush1.msra.mxu0 0.0
    %885 = vmatprep.subr.mxu0 0.0
    %886 = vmatpush1.msra.mxu0 0.0
    %887 = vmatprep.subr.mxu0 0.0
    %888 = vmatpush1.msra.mxu0 0.0
    %889 = vmatprep.subr.mxu0 0.0
    %890 = vmatpush1.msra.mxu0 0.0
    %891 = vmatprep.subr.mxu0 0.0
    %892 = vmatpush1.msra.mxu0 0.0
    %893 = vmatprep.subr.mxu0 0.0
    %894 = vmatpush1.msra.mxu0 0.0
    %895 = vmatprep.subr.mxu0 0.0
    %896 = vmatpush1.msra.mxu0 0.0
    %897 = vmatprep.subr.mxu0 0.0
    %898 = vmatpush1.msra.mxu0 0.0
    %899 = vmatprep.subr.mxu0 0.0
    %900 = vmatpush1.msra.mxu0 0.0
    %901 = vmatprep.subr.mxu0 0.0
    %902 = vmatpush1.msra.mxu0 0.0
    %903 = vmatprep.subr.mxu0 0.0
    %904 = vmatpush1.msra.mxu0 0.0
    %905 = vmatprep.mubr.f32.mxu0 0.0
    %906 = vmatmul.mubr.f32.gmra.mrb[0].mxu0 %v836
    %v907 = vpop.f32.mrb[0].mxu0
    %v908 = vadd.f32 0.0, %v907
    %v909 = vpop.f32.mrb[0].mxu0
    %910 = vdwg.mxu0
    %v911 = vadd.f32 %v830, %v908
    %912 = vrot.lane.b32.xlu0 %v23, 117
    %v913 = vpop.permute.xlu0 %912
    %s914 = scalar_lea.vmem %s1, 88
    %v915 = vld [vmem:[%s914] sm:$0xff]
    %v917 = vsel %vm29, %v915, 0
    %v920 = vsel %vm33, %v913, 0
    %922 = vmatprep.subr.mxu0 0.0
    %923 = vmatpush1.msra.mxu0 %v920
    %924 = vmatprep.subr.mxu0 0.0
    %925 = vmatpush1.msra.mxu0 0.0
    %926 = vmatprep.subr.mxu0 0.0
    %927 = vmatpush1.msra.mxu0 0.0
    %928 = vmatprep.subr.mxu0 0.0
    %929 = vmatpush1.msra.mxu0 0.0
    %930 = vmatprep.subr.mxu0 0.0
    %931 = vmatpush1.msra.mxu0 0.0
    %932 = vmatprep.subr.mxu0 0.0
    %933 = vmatpush1.msra.mxu0 0.0
    %934 = vmatprep.subr.mxu0 0.0
    %935 = vmatpush1.msra.mxu0 0.0
    %936 = vmatprep.subr.mxu0 0.0
    %937 = vmatpush1.msra.mxu0 0.0
    %938 = vmatprep.subr.mxu0 0.0
    %939 = vmatpush1.msra.mxu0 0.0
    %940 = vmatprep.subr.mxu0 0.0
    %941 = vmatpush1.msra.mxu0 0.0
    %942 = vmatprep.subr.mxu0 0.0
    %943 = vmatpush1.msra.mxu0 0.0
    %944 = vmatprep.subr.mxu0 0.0
    %945 = vmatpush1.msra.mxu0 0.0
    %946 = vmatprep.subr.mxu0 0.0
    %947 = vmatpush1.msra.mxu0 0.0
    %948 = vmatprep.subr.mxu0 0.0
    %949 = vmatpush1.msra.mxu0 0.0
    %950 = vmatprep.subr.mxu0 0.0
    %951 = vmatpush1.msra.mxu0 0.0
    %952 = vmatprep.subr.mxu0 0.0
    %953 = vmatpush1.msra.mxu0 0.0
    %954 = vmatprep.subr.mxu0 0.0
    %955 = vmatpush1.msra.mxu0 0.0
    %956 = vmatprep.subr.mxu0 0.0
    %957 = vmatpush1.msra.mxu0 0.0
    %958 = vmatprep.subr.mxu0 0.0
    %959 = vmatpush1.msra.mxu0 0.0
    %960 = vmatprep.subr.mxu0 0.0
    %961 = vmatpush1.msra.mxu0 0.0
    %962 = vmatprep.subr.mxu0 0.0
    %963 = vmatpush1.msra.mxu0 0.0
    %964 = vmatprep.subr.mxu0 0.0
    %965 = vmatpush1.msra.mxu0 0.0
    %966 = vmatprep.subr.mxu0 0.0
    %967 = vmatpush1.msra.mxu0 0.0
    %968 = vmatprep.subr.mxu0 0.0
    %969 = vmatpush1.msra.mxu0 0.0
    %970 = vmatprep.subr.mxu0 0.0
    %971 = vmatpush1.msra.mxu0 0.0
    %972 = vmatprep.subr.mxu0 0.0
    %973 = vmatpush1.msra.mxu0 0.0
    %974 = vmatprep.subr.mxu0 0.0
    %975 = vmatpush1.msra.mxu0 0.0
    %976 = vmatprep.subr.mxu0 0.0
    %977 = vmatpush1.msra.mxu0 0.0
    %978 = vmatprep.subr.mxu0 0.0
    %979 = vmatpush1.msra.mxu0 0.0
    %980 = vmatprep.subr.mxu0 0.0
    %981 = vmatpush1.msra.mxu0 0.0
    %982 = vmatprep.subr.mxu0 0.0
    %983 = vmatpush1.msra.mxu0 0.0
    %984 = vmatprep.subr.mxu0 0.0
    %985 = vmatpush1.msra.mxu0 0.0
    %986 = vmatprep.mubr.f32.mxu0 0.0
    %987 = vmatmul.mubr.f32.gmra.mrb[0].mxu0 %v917
    %v988 = vpop.f32.mrb[0].mxu0
    %v989 = vadd.f32 0.0, %v988
    %v990 = vpop.f32.mrb[0].mxu0
    %991 = vdwg.mxu0
    %v992 = vadd.f32 %v911, %v989
    %993 = vrot.lane.b32.xlu0 %v23, 116
    %v994 = vpop.permute.xlu0 %993
    %s995 = scalar_lea.vmem %s1, 96
    %v996 = vld [vmem:[%s995] sm:$0xff]
    %v998 = vsel %vm29, %v996, 0
    %v1001 = vsel %vm33, %v994, 0
    %1003 = vmatprep.subr.mxu0 0.0
    %1004 = vmatpush1.msra.mxu0 %v1001
    %1005 = vmatprep.subr.mxu0 0.0
    %1006 = vmatpush1.msra.mxu0 0.0
    %1007 = vmatprep.subr.mxu0 0.0
    %1008 = vmatpush1.msra.mxu0 0.0
    %1009 = vmatprep.subr.mxu0 0.0
    %1010 = vmatpush1.msra.mxu0 0.0
    %1011 = vmatprep.subr.mxu0 0.0
    %1012 = vmatpush1.msra.mxu0 0.0
    %1013 = vmatprep.subr.mxu0 0.0
    %1014 = vmatpush1.msra.mxu0 0.0
    %1015 = vmatprep.subr.mxu0 0.0
    %1016 = vmatpush1.msra.mxu0 0.0
    %1017 = vmatprep.subr.mxu0 0.0
    %1018 = vmatpush1.msra.mxu0 0.0
    %1019 = vmatprep.subr.mxu0 0.0
    %1020 = vmatpush1.msra.mxu0 0.0
    %1021 = vmatprep.subr.mxu0 0.0
    %1022 = vmatpush1.msra.mxu0 0.0
    %1023 = vmatprep.subr.mxu0 0.0
    %1024 = vmatpush1.msra.mxu0 0.0
    %1025 = vmatprep.subr.mxu0 0.0
    %1026 = vmatpush1.msra.mxu0 0.0
    %1027 = vmatprep.subr.mxu0 0.0
    %1028 = vmatpush1.msra.mxu0 0.0
    %1029 = vmatprep.subr.mxu0 0.0
    %1030 = vmatpush1.msra.mxu0 0.0
    %1031 = vmatprep.subr.mxu0 0.0
    %1032 = vmatpush1.msra.mxu0 0.0
    %1033 = vmatprep.subr.mxu0 0.0
    %1034 = vmatpush1.msra.mxu0 0.0
    %1035 = vmatprep.subr.mxu0 0.0
    %1036 = vmatpush1.msra.mxu0 0.0
    %1037 = vmatprep.subr.mxu0 0.0
    %1038 = vmatpush1.msra.mxu0 0.0
    %1039 = vmatprep.subr.mxu0 0.0
    %1040 = vmatpush1.msra.mxu0 0.0
    %1041 = vmatprep.subr.mxu0 0.0
    %1042 = vmatpush1.msra.mxu0 0.0
    %1043 = vmatprep.subr.mxu0 0.0
    %1044 = vmatpush1.msra.mxu0 0.0
    %1045 = vmatprep.subr.mxu0 0.0
    %1046 = vmatpush1.msra.mxu0 0.0
    %1047 = vmatprep.subr.mxu0 0.0
    %1048 = vmatpush1.msra.mxu0 0.0
    %1049 = vmatprep.subr.mxu0 0.0
    %1050 = vmatpush1.msra.mxu0 0.0
    %1051 = vmatprep.subr.mxu0 0.0
    %1052 = vmatpush1.msra.mxu0 0.0
    %1053 = vmatprep.subr.mxu0 0.0
    %1054 = vmatpush1.msra.mxu0 0.0
    %1055 = vmatprep.subr.mxu0 0.0
    %1056 = vmatpush1.msra.mxu0 0.0
    %1057 = vmatprep.subr.mxu0 0.0
    %1058 = vmatpush1.msra.mxu0 0.0
    %1059 = vmatprep.subr.mxu0 0.0
    %1060 = vmatpush1.msra.mxu0 0.0
    %1061 = vmatprep.subr.mxu0 0.0
    %1062 = vmatpush1.msra.mxu0 0.0
    %1063 = vmatprep.subr.mxu0 0.0
    %1064 = vmatpush1.msra.mxu0 0.0
    %1065 = vmatprep.subr.mxu0 0.0
    %1066 = vmatpush1.msra.mxu0 0.0
    %1067 = vmatprep.mubr.f32.mxu0 0.0
    %1068 = vmatmul.mubr.f32.gmra.mrb[0].mxu0 %v998
    %v1069 = vpop.f32.mrb[0].mxu0
    %v1070 = vadd.f32 0.0, %v1069
    %v1071 = vpop.f32.mrb[0].mxu0
    %1072 = vdwg.mxu0
    %v1073 = vadd.f32 %v992, %v1070
    %1074 = vrot.lane.b32.xlu0 %v23, 115
    %v1075 = vpop.permute.xlu0 %1074
    %s1076 = scalar_lea.vmem %s1, 104
    %v1077 = vld [vmem:[%s1076] sm:$0xff]
    %v1079 = vsel %vm29, %v1077, 0
    %v1082 = vsel %vm33, %v1075, 0
    %1084 = vmatprep.subr.mxu0 0.0
    %1085 = vmatpush1.msra.mxu0 %v1082
    %1086 = vmatprep.subr.mxu0 0.0
    %1087 = vmatpush1.msra.mxu0 0.0
    %1088 = vmatprep.subr.mxu0 0.0
    %1089 = vmatpush1.msra.mxu0 0.0
    %1090 = vmatprep.subr.mxu0 0.0
    %1091 = vmatpush1.msra.mxu0 0.0
    %1092 = vmatprep.subr.mxu0 0.0
    %1093 = vmatpush1.msra.mxu0 0.0
    %1094 = vmatprep.subr.mxu0 0.0
    %1095 = vmatpush1.msra.mxu0 0.0
    %1096 = vmatprep.subr.mxu0 0.0
    %1097 = vmatpush1.msra.mxu0 0.0
    %1098 = vmatprep.subr.mxu0 0.0
    %1099 = vmatpush1.msra.mxu0 0.0
    %1100 = vmatprep.subr.mxu0 0.0
    %1101 = vmatpush1.msra.mxu0 0.0
    %1102 = vmatprep.subr.mxu0 0.0
    %1103 = vmatpush1.msra.mxu0 0.0
    %1104 = vmatprep.subr.mxu0 0.0
    %1105 = vmatpush1.msra.mxu0 0.0
    %1106 = vmatprep.subr.mxu0 0.0
    %1107 = vmatpush1.msra.mxu0 0.0
    %1108 = vmatprep.subr.mxu0 0.0
    %1109 = vmatpush1.msra.mxu0 0.0
    %1110 = vmatprep.subr.mxu0 0.0
    %1111 = vmatpush1.msra.mxu0 0.0
    %1112 = vmatprep.subr.mxu0 0.0
    %1113 = vmatpush1.msra.mxu0 0.0
    %1114 = vmatprep.subr.mxu0 0.0
    %1115 = vmatpush1.msra.mxu0 0.0
    %1116 = vmatprep.subr.mxu0 0.0
    %1117 = vmatpush1.msra.mxu0 0.0
    %1118 = vmatprep.subr.mxu0 0.0
    %1119 = vmatpush1.msra.mxu0 0.0
    %1120 = vmatprep.subr.mxu0 0.0
    %1121 = vmatpush1.msra.mxu0 0.0
    %1122 = vmatprep.subr.mxu0 0.0
    %1123 = vmatpush1.msra.mxu0 0.0
    %1124 = vmatprep.subr.mxu0 0.0
    %1125 = vmatpush1.msra.mxu0 0.0
    %1126 = vmatprep.subr.mxu0 0.0
    %1127 = vmatpush1.msra.mxu0 0.0
    %1128 = vmatprep.subr.mxu0 0.0
    %1129 = vmatpush1.msra.mxu0 0.0
    %1130 = vmatprep.subr.mxu0 0.0
    %1131 = vmatpush1.msra.mxu0 0.0
    %1132 = vmatprep.subr.mxu0 0.0
    %1133 = vmatpush1.msra.mxu0 0.0
    %1134 = vmatprep.subr.mxu0 0.0
    %1135 = vmatpush1.msra.mxu0 0.0
    %1136 = vmatprep.subr.mxu0 0.0
    %1137 = vmatpush1.msra.mxu0 0.0
    %1138 = vmatprep.subr.mxu0 0.0
    %1139 = vmatpush1.msra.mxu0 0.0
    %1140 = vmatprep.subr.mxu0 0.0
    %1141 = vmatpush1.msra.mxu0 0.0
    %1142 = vmatprep.subr.mxu0 0.0
    %1143 = vmatpush1.msra.mxu0 0.0
    %1144 = vmatprep.subr.mxu0 0.0
    %1145 = vmatpush1.msra.mxu0 0.0
    %1146 = vmatprep.subr.mxu0 0.0
    %1147 = vmatpush1.msra.mxu0 0.0
    %1148 = vmatprep.mubr.f32.mxu0 0.0
    %1149 = vmatmul.mubr.f32.gmra.mrb[0].mxu0 %v1079
    %v1150 = vpop.f32.mrb[0].mxu0
    %v1151 = vadd.f32 0.0, %v1150
    %v1152 = vpop.f32.mrb[0].mxu0
    %1153 = vdwg.mxu0
    %v1154 = vadd.f32 %v1073, %v1151
    %1155 = vrot.lane.b32.xlu0 %v23, 114
    %v1156 = vpop.permute.xlu0 %1155
    %s1157 = scalar_lea.vmem %s1, 112
    %v1158 = vld [vmem:[%s1157] sm:$0xff]
    %v1160 = vsel %vm29, %v1158, 0
    %v1163 = vsel %vm33, %v1156, 0
    %1165 = vmatprep.subr.mxu0 0.0
    %1166 = vmatpush1.msra.mxu0 %v1163
    %1167 = vmatprep.subr.mxu0 0.0
    %1168 = vmatpush1.msra.mxu0 0.0
    %1169 = vmatprep.subr.mxu0 0.0
    %1170 = vmatpush1.msra.mxu0 0.0
    %1171 = vmatprep.subr.mxu0 0.0
    %1172 = vmatpush1.msra.mxu0 0.0
    %1173 = vmatprep.subr.mxu0 0.0
    %1174 = vmatpush1.msra.mxu0 0.0
    %1175 = vmatprep.subr.mxu0 0.0
    %1176 = vmatpush1.msra.mxu0 0.0
    %1177 = vmatprep.subr.mxu0 0.0
    %1178 = vmatpush1.msra.mxu0 0.0
    %1179 = vmatprep.subr.mxu0 0.0
    %1180 = vmatpush1.msra.mxu0 0.0
    %1181 = vmatprep.subr.mxu0 0.0
    %1182 = vmatpush1.msra.mxu0 0.0
    %1183 = vmatprep.subr.mxu0 0.0
    %1184 = vmatpush1.msra.mxu0 0.0
    %1185 = vmatprep.subr.mxu0 0.0
    %1186 = vmatpush1.msra.mxu0 0.0
    %1187 = vmatprep.subr.mxu0 0.0
    %1188 = vmatpush1.msra.mxu0 0.0
    %1189 = vmatprep.subr.mxu0 0.0
    %1190 = vmatpush1.msra.mxu0 0.0
    %1191 = vmatprep.subr.mxu0 0.0
    %1192 = vmatpush1.msra.mxu0 0.0
    %1193 = vmatprep.subr.mxu0 0.0
    %1194 = vmatpush1.msra.mxu0 0.0
    %1195 = vmatprep.subr.mxu0 0.0
    %1196 = vmatpush1.msra.mxu0 0.0
    %1197 = vmatprep.subr.mxu0 0.0
    %1198 = vmatpush1.msra.mxu0 0.0
    %1199 = vmatprep.subr.mxu0 0.0
    %1200 = vmatpush1.msra.mxu0 0.0
    %1201 = vmatprep.subr.mxu0 0.0
    %1202 = vmatpush1.msra.mxu0 0.0
    %1203 = vmatprep.subr.mxu0 0.0
    %1204 = vmatpush1.msra.mxu0 0.0
    %1205 = vmatprep.subr.mxu0 0.0
    %1206 = vmatpush1.msra.mxu0 0.0
    %1207 = vmatprep.subr.mxu0 0.0
    %1208 = vmatpush1.msra.mxu0 0.0
    %1209 = vmatprep.subr.mxu0 0.0
    %1210 = vmatpush1.msra.mxu0 0.0
    %1211 = vmatprep.subr.mxu0 0.0
    %1212 = vmatpush1.msra.mxu0 0.0
    %1213 = vmatprep.subr.mxu0 0.0
    %1214 = vmatpush1.msra.mxu0 0.0
    %1215 = vmatprep.subr.mxu0 0.0
    %1216 = vmatpush1.msra.mxu0 0.0
    %1217 = vmatprep.subr.mxu0 0.0
    %1218 = vmatpush1.msra.mxu0 0.0
    %1219 = vmatprep.subr.mxu0 0.0
    %1220 = vmatpush1.msra.mxu0 0.0
    %1221 = vmatprep.subr.mxu0 0.0
    %1222 = vmatpush1.msra.mxu0 0.0
    %1223 = vmatprep.subr.mxu0 0.0
    %1224 = vmatpush1.msra.mxu0 0.0
    %1225 = vmatprep.subr.mxu0 0.0
    %1226 = vmatpush1.msra.mxu0 0.0
    %1227 = vmatprep.subr.mxu0 0.0
    %1228 = vmatpush1.msra.mxu0 0.0
    %1229 = vmatprep.mubr.f32.mxu0 0.0
    %1230 = vmatmul.mubr.f32.gmra.mrb[0].mxu0 %v1160
    %v1231 = vpop.f32.mrb[0].mxu0
    %v1232 = vadd.f32 0.0, %v1231
    %v1233 = vpop.f32.mrb[0].mxu0
    %1234 = vdwg.mxu0
    %v1235 = vadd.f32 %v1154, %v1232
    %1236 = vrot.lane.b32.xlu0 %v23, 113
    %v1237 = vpop.permute.xlu0 %1236
    %s1238 = scalar_lea.vmem %s1, 120
    %v1239 = vld [vmem:[%s1238] sm:$0xff]
    %v1241 = vsel %vm29, %v1239, 0
    %v1244 = vsel %vm33, %v1237, 0
    %1246 = vmatprep.subr.mxu0 0.0
    %1247 = vmatpush1.msra.mxu0 %v1244
    %1248 = vmatprep.subr.mxu0 0.0
    %1249 = vmatpush1.msra.mxu0 0.0
    %1250 = vmatprep.subr.mxu0 0.0
    %1251 = vmatpush1.msra.mxu0 0.0
    %1252 = vmatprep.subr.mxu0 0.0
    %1253 = vmatpush1.msra.mxu0 0.0
    %1254 = vmatprep.subr.mxu0 0.0
    %1255 = vmatpush1.msra.mxu0 0.0
    %1256 = vmatprep.subr.mxu0 0.0
    %1257 = vmatpush1.msra.mxu0 0.0
    %1258 = vmatprep.subr.mxu0 0.0
    %1259 = vmatpush1.msra.mxu0 0.0
    %1260 = vmatprep.subr.mxu0 0.0
    %1261 = vmatpush1.msra.mxu0 0.0
    %1262 = vmatprep.subr.mxu0 0.0
    %1263 = vmatpush1.msra.mxu0 0.0
    %1264 = vmatprep.subr.mxu0 0.0
    %1265 = vmatpush1.msra.mxu0 0.0
    %1266 = vmatprep.subr.mxu0 0.0
    %1267 = vmatpush1.msra.mxu0 0.0
    %1268 = vmatprep.subr.mxu0 0.0
    %1269 = vmatpush1.msra.mxu0 0.0
    %1270 = vmatprep.subr.mxu0 0.0
    %1271 = vmatpush1.msra.mxu0 0.0
    %1272 = vmatprep.subr.mxu0 0.0
    %1273 = vmatpush1.msra.mxu0 0.0
    %1274 = vmatprep.subr.mxu0 0.0
    %1275 = vmatpush1.msra.mxu0 0.0
    %1276 = vmatprep.subr.mxu0 0.0
    %1277 = vmatpush1.msra.mxu0 0.0
    %1278 = vmatprep.subr.mxu0 0.0
    %1279 = vmatpush1.msra.mxu0 0.0
    %1280 = vmatprep.subr.mxu0 0.0
    %1281 = vmatpush1.msra.mxu0 0.0
    %1282 = vmatprep.subr.mxu0 0.0
    %1283 = vmatpush1.msra.mxu0 0.0
    %1284 = vmatprep.subr.mxu0 0.0
    %1285 = vmatpush1.msra.mxu0 0.0
    %1286 = vmatprep.subr.mxu0 0.0
    %1287 = vmatpush1.msra.mxu0 0.0
    %1288 = vmatprep.subr.mxu0 0.0
    %1289 = vmatpush1.msra.mxu0 0.0
    %1290 = vmatprep.subr.mxu0 0.0
    %1291 = vmatpush1.msra.mxu0 0.0
    %1292 = vmatprep.subr.mxu0 0.0
    %1293 = vmatpush1.msra.mxu0 0.0
    %1294 = vmatprep.subr.mxu0 0.0
    %1295 = vmatpush1.msra.mxu0 0.0
    %1296 = vmatprep.subr.mxu0 0.0
    %1297 = vmatpush1.msra.mxu0 0.0
    %1298 = vmatprep.subr.mxu0 0.0
    %1299 = vmatpush1.msra.mxu0 0.0
    %1300 = vmatprep.subr.mxu0 0.0
    %1301 = vmatpush1.msra.mxu0 0.0
    %1302 = vmatprep.subr.mxu0 0.0
    %1303 = vmatpush1.msra.mxu0 0.0
    %1304 = vmatprep.subr.mxu0 0.0
    %1305 = vmatpush1.msra.mxu0 0.0
    %1306 = vmatprep.subr.mxu0 0.0
    %1307 = vmatpush1.msra.mxu0 0.0
    %1308 = vmatprep.subr.mxu0 0.0
    %1309 = vmatpush1.msra.mxu0 0.0
    %1310 = vmatprep.mubr.f32.mxu0 0.0
    %1311 = vmatmul.mubr.f32.gmra.mrb[0].mxu0 %v1241
    %v1312 = vpop.f32.mrb[0].mxu0
    %v1313 = vadd.f32 0.0, %v1312
    %v1314 = vpop.f32.mrb[0].mxu0
    %1315 = vdwg.mxu0
    %v1316 = vadd.f32 %v1235, %v1313
    %1317 = vrot.lane.b32.xlu0 %v23, 112
    %v1318 = vpop.permute.xlu0 %1317
    %s1319 = scalar_lea.vmem %s1, 128
    %v1320 = vld [vmem:[%s1319] sm:$0xff]
    %v1322 = vsel %vm29, %v1320, 0
    %v1325 = vsel %vm33, %v1318, 0
    %1327 = vmatprep.subr.mxu0 0.0
    %1328 = vmatpush1.msra.mxu0 %v1325
    %1329 = vmatprep.subr.mxu0 0.0
    %1330 = vmatpush1.msra.mxu0 0.0
    %1331 = vmatprep.subr.mxu0 0.0
    %1332 = vmatpush1.msra.mxu0 0.0
    %1333 = vmatprep.subr.mxu0 0.0
    %1334 = vmatpush1.msra.mxu0 0.0
    %1335 = vmatprep.subr.mxu0 0.0
    %1336 = vmatpush1.msra.mxu0 0.0
    %1337 = vmatprep.subr.mxu0 0.0
    %1338 = vmatpush1.msra.mxu0 0.0
    %1339 = vmatprep.subr.mxu0 0.0
    %1340 = vmatpush1.msra.mxu0 0.0
    %1341 = vmatprep.subr.mxu0 0.0
    %1342 = vmatpush1.msra.mxu0 0.0
    %1343 = vmatprep.subr.mxu0 0.0
    %1344 = vmatpush1.msra.mxu0 0.0
    %1345 = vmatprep.subr.mxu0 0.0
    %1346 = vmatpush1.msra.mxu0 0.0
    %1347 = vmatprep.subr.mxu0 0.0
    %1348 = vmatpush1.msra.mxu0 0.0
    %1349 = vmatprep.subr.mxu0 0.0
    %1350 = vmatpush1.msra.mxu0 0.0
    %1351 = vmatprep.subr.mxu0 0.0
    %1352 = vmatpush1.msra.mxu0 0.0
    %1353 = vmatprep.subr.mxu0 0.0
    %1354 = vmatpush1.msra.mxu0 0.0
    %1355 = vmatprep.subr.mxu0 0.0
    %1356 = vmatpush1.msra.mxu0 0.0
    %1357 = vmatprep.subr.mxu0 0.0
    %1358 = vmatpush1.msra.mxu0 0.0
    %1359 = vmatprep.subr.mxu0 0.0
    %1360 = vmatpush1.msra.mxu0 0.0
    %1361 = vmatprep.subr.mxu0 0.0
    %1362 = vmatpush1.msra.mxu0 0.0
    %1363 = vmatprep.subr.mxu0 0.0
    %1364 = vmatpush1.msra.mxu0 0.0
    %1365 = vmatprep.subr.mxu0 0.0
    %1366 = vmatpush1.msra.mxu0 0.0
    %1367 = vmatprep.subr.mxu0 0.0
    %1368 = vmatpush1.msra.mxu0 0.0
    %1369 = vmatprep.subr.mxu0 0.0
    %1370 = vmatpush1.msra.mxu0 0.0
    %1371 = vmatprep.subr.mxu0 0.0
    %1372 = vmatpush1.msra.mxu0 0.0
    %1373 = vmatprep.subr.mxu0 0.0
    %1374 = vmatpush1.msra.mxu0 0.0
    %1375 = vmatprep.subr.mxu0 0.0
    %1376 = vmatpush1.msra.mxu0 0.0
    %1377 = vmatprep.subr.mxu0 0.0
    %1378 = vmatpush1.msra.mxu0 0.0
    %1379 = vmatprep.subr.mxu0 0.0
    %1380 = vmatpush1.msra.mxu0 0.0
    %1381 = vmatprep.subr.mxu0 0.0
    %1382 = vmatpush1.msra.mxu0 0.0
    %1383 = vmatprep.subr.mxu0 0.0
    %1384 = vmatpush1.msra.mxu0 0.0
    %1385 = vmatprep.subr.mxu0 0.0
    %1386 = vmatpush1.msra.mxu0 0.0
    %1387 = vmatprep.subr.mxu0 0.0
    %1388 = vmatpush1.msra.mxu0 0.0
    %1389 = vmatprep.subr.mxu0 0.0
    %1390 = vmatpush1.msra.mxu0 0.0
    %1391 = vmatprep.mubr.f32.mxu0 0.0
    %1392 = vmatmul.mubr.f32.gmra.mrb[0].mxu0 %v1322
    %v1393 = vpop.f32.mrb[0].mxu0
    %v1394 = vadd.f32 0.0, %v1393
    %v1395 = vpop.f32.mrb[0].mxu0
    %1396 = vdwg.mxu0
    %v1397 = vadd.f32 %v1316, %v1394
    %1398 = vrot.lane.b32.xlu0 %v23, 111
    %v1399 = vpop.permute.xlu0 %1398
    %s1400 = scalar_lea.vmem %s1, 136
    %v1401 = vld [vmem:[%s1400] sm:$0xff]
    %v1403 = vsel %vm29, %v1401, 0
    %v1406 = vsel %vm33, %v1399, 0
    %1408 = vmatprep.subr.mxu0 0.0
    %1409 = vmatpush1.msra.mxu0 %v1406
    %1410 = vmatprep.subr.mxu0 0.0
    %1411 = vmatpush1.msra.mxu0 0.0
    %1412 = vmatprep.subr.mxu0 0.0
    %1413 = vmatpush1.msra.mxu0 0.0
    %1414 = vmatprep.subr.mxu0 0.0
    %1415 = vmatpush1.msra.mxu0 0.0
    %1416 = vmatprep.subr.mxu0 0.0
    %1417 = vmatpush1.msra.mxu0 0.0
    %1418 = vmatprep.subr.mxu0 0.0
    %1419 = vmatpush1.msra.mxu0 0.0
    %1420 = vmatprep.subr.mxu0 0.0
    %1421 = vmatpush1.msra.mxu0 0.0
    %1422 = vmatprep.subr.mxu0 0.0
    %1423 = vmatpush1.msra.mxu0 0.0
    %1424 = vmatprep.subr.mxu0 0.0
    %1425 = vmatpush1.msra.mxu0 0.0
    %1426 = vmatprep.subr.mxu0 0.0
    %1427 = vmatpush1.msra.mxu0 0.0
    %1428 = vmatprep.subr.mxu0 0.0
    %1429 = vmatpush1.msra.mxu0 0.0
    %1430 = vmatprep.subr.mxu0 0.0
    %1431 = vmatpush1.msra.mxu0 0.0
    %1432 = vmatprep.subr.mxu0 0.0
    %1433 = vmatpush1.msra.mxu0 0.0
    %1434 = vmatprep.subr.mxu0 0.0
    %1435 = vmatpush1.msra.mxu0 0.0
    %1436 = vmatprep.subr.mxu0 0.0
    %1437 = vmatpush1.msra.mxu0 0.0
    %1438 = vmatprep.subr.mxu0 0.0
    %1439 = vmatpush1.msra.mxu0 0.0
    %1440 = vmatprep.subr.mxu0 0.0
    %1441 = vmatpush1.msra.mxu0 0.0
    %1442 = vmatprep.subr.mxu0 0.0
    %1443 = vmatpush1.msra.mxu0 0.0
    %1444 = vmatprep.subr.mxu0 0.0
    %1445 = vmatpush1.msra.mxu0 0.0
    %1446 = vmatprep.subr.mxu0 0.0
    %1447 = vmatpush1.msra.mxu0 0.0
    %1448 = vmatprep.subr.mxu0 0.0
    %1449 = vmatpush1.msra.mxu0 0.0
    %1450 = vmatprep.subr.mxu0 0.0
    %1451 = vmatpush1.msra.mxu0 0.0
    %1452 = vmatprep.subr.mxu0 0.0
    %1453 = vmatpush1.msra.mxu0 0.0
    %1454 = vmatprep.subr.mxu0 0.0
    %1455 = vmatpush1.msra.mxu0 0.0
    %1456 = vmatprep.subr.mxu0 0.0
    %1457 = vmatpush1.msra.mxu0 0.0
    %1458 = vmatprep.subr.mxu0 0.0
    %1459 = vmatpush1.msra.mxu0 0.0
    %1460 = vmatprep.subr.mxu0 0.0
    %1461 = vmatpush1.msra.mxu0 0.0
    %1462 = vmatprep.subr.mxu0 0.0
    %1463 = vmatpush1.msra.mxu0 0.0
    %1464 = vmatprep.subr.mxu0 0.0
    %1465 = vmatpush1.msra.mxu0 0.0
    %1466 = vmatprep.subr.mxu0 0.0
    %1467 = vmatpush1.msra.mxu0 0.0
    %1468 = vmatprep.subr.mxu0 0.0
    %1469 = vmatpush1.msra.mxu0 0.0
    %1470 = vmatprep.subr.mxu0 0.0
    %1471 = vmatpush1.msra.mxu0 0.0
    %1472 = vmatprep.mubr.f32.mxu0 0.0
    %1473 = vmatmul.mubr.f32.gmra.mrb[0].mxu0 %v1403
    %v1474 = vpop.f32.mrb[0].mxu0
    %v1475 = vadd.f32 0.0, %v1474
    %v1476 = vpop.f32.mrb[0].mxu0
    %1477 = vdwg.mxu0
    %v1478 = vadd.f32 %v1397, %v1475
    %1479 = vrot.lane.b32.xlu0 %v23, 110
    %v1480 = vpop.permute.xlu0 %1479
    %s1481 = scalar_lea.vmem %s1, 144
    %v1482 = vld [vmem:[%s1481] sm:$0xff]
    %v1484 = vsel %vm29, %v1482, 0
    %v1487 = vsel %vm33, %v1480, 0
    %1489 = vmatprep.subr.mxu0 0.0
    %1490 = vmatpush1.msra.mxu0 %v1487
    %1491 = vmatprep.subr.mxu0 0.0
    %1492 = vmatpush1.msra.mxu0 0.0
    %1493 = vmatprep.subr.mxu0 0.0
    %1494 = vmatpush1.msra.mxu0 0.0
    %1495 = vmatprep.subr.mxu0 0.0
    %1496 = vmatpush1.msra.mxu0 0.0
    %1497 = vmatprep.subr.mxu0 0.0
    %1498 = vmatpush1.msra.mxu0 0.0
    %1499 = vmatprep.subr.mxu0 0.0
    %1500 = vmatpush1.msra.mxu0 0.0
    %1501 = vmatprep.subr.mxu0 0.0
    %1502 = vmatpush1.msra.mxu0 0.0
    %1503 = vmatprep.subr.mxu0 0.0
    %1504 = vmatpush1.msra.mxu0 0.0
    %1505 = vmatprep.subr.mxu0 0.0
    %1506 = vmatpush1.msra.mxu0 0.0
    %1507 = vmatprep.subr.mxu0 0.0
    %1508 = vmatpush1.msra.mxu0 0.0
    %1509 = vmatprep.subr.mxu0 0.0
    %1510 = vmatpush1.msra.mxu0 0.0
    %1511 = vmatprep.subr.mxu0 0.0
    %1512 = vmatpush1.msra.mxu0 0.0
    %1513 = vmatprep.subr.mxu0 0.0
    %1514 = vmatpush1.msra.mxu0 0.0
    %1515 = vmatprep.subr.mxu0 0.0
    %1516 = vmatpush1.msra.mxu0 0.0
    %1517 = vmatprep.subr.mxu0 0.0
    %1518 = vmatpush1.msra.mxu0 0.0
    %1519 = vmatprep.subr.mxu0 0.0
    %1520 = vmatpush1.msra.mxu0 0.0
    %1521 = vmatprep.subr.mxu0 0.0
    %1522 = vmatpush1.msra.mxu0 0.0
    %1523 = vmatprep.subr.mxu0 0.0
    %1524 = vmatpush1.msra.mxu0 0.0
    %1525 = vmatprep.subr.mxu0 0.0
    %1526 = vmatpush1.msra.mxu0 0.0
    %1527 = vmatprep.subr.mxu0 0.0
    %1528 = vmatpush1.msra.mxu0 0.0
    %1529 = vmatprep.subr.mxu0 0.0
    %1530 = vmatpush1.msra.mxu0 0.0
    %1531 = vmatprep.subr.mxu0 0.0
    %1532 = vmatpush1.msra.mxu0 0.0
    %1533 = vmatprep.subr.mxu0 0.0
    %1534 = vmatpush1.msra.mxu0 0.0
    %1535 = vmatprep.subr.mxu0 0.0
    %1536 = vmatpush1.msra.mxu0 0.0
    %1537 = vmatprep.subr.mxu0 0.0
    %1538 = vmatpush1.msra.mxu0 0.0
    %1539 = vmatprep.subr.mxu0 0.0
    %1540 = vmatpush1.msra.mxu0 0.0
    %1541 = vmatprep.subr.mxu0 0.0
    %1542 = vmatpush1.msra.mxu0 0.0
    %1543 = vmatprep.subr.mxu0 0.0
    %1544 = vmatpush1.msra.mxu0 0.0
    %1545 = vmatprep.subr.mxu0 0.0
    %1546 = vmatpush1.msra.mxu0 0.0
    %1547 = vmatprep.subr.mxu0 0.0
    %1548 = vmatpush1.msra.mxu0 0.0
    %1549 = vmatprep.subr.mxu0 0.0
    %1550 = vmatpush1.msra.mxu0 0.0
    %1551 = vmatprep.subr.mxu0 0.0
    %1552 = vmatpush1.msra.mxu0 0.0
    %1553 = vmatprep.mubr.f32.mxu0 0.0
    %1554 = vmatmul.mubr.f32.gmra.mrb[0].mxu0 %v1484
    %v1555 = vpop.f32.mrb[0].mxu0
    %v1556 = vadd.f32 0.0, %v1555
    %v1557 = vpop.f32.mrb[0].mxu0
    %1558 = vdwg.mxu0
    %v1559 = vadd.f32 %v1478, %v1556
    %1560 = vrot.lane.b32.xlu0 %v23, 109
    %v1561 = vpop.permute.xlu0 %1560
    %s1562 = scalar_lea.vmem %s1, 152
    %v1563 = vld [vmem:[%s1562] sm:$0xff]
    %v1565 = vsel %vm29, %v1563, 0
    %v1568 = vsel %vm33, %v1561, 0
    %1570 = vmatprep.subr.mxu0 0.0
    %1571 = vmatpush1.msra.mxu0 %v1568
    %1572 = vmatprep.subr.mxu0 0.0
    %1573 = vmatpush1.msra.mxu0 0.0
    %1574 = vmatprep.subr.mxu0 0.0
    %1575 = vmatpush1.msra.mxu0 0.0
    %1576 = vmatprep.subr.mxu0 0.0
    %1577 = vmatpush1.msra.mxu0 0.0
    %1578 = vmatprep.subr.mxu0 0.0
    %1579 = vmatpush1.msra.mxu0 0.0
    %1580 = vmatprep.subr.mxu0 0.0
    %1581 = vmatpush1.msra.mxu0 0.0
    %1582 = vmatprep.subr.mxu0 0.0
    %1583 = vmatpush1.msra.mxu0 0.0
    %1584 = vmatprep.subr.mxu0 0.0
    %1585 = vmatpush1.msra.mxu0 0.0
    %1586 = vmatprep.subr.mxu0 0.0
    %1587 = vmatpush1.msra.mxu0 0.0
    %1588 = vmatprep.subr.mxu0 0.0
    %1589 = vmatpush1.msra.mxu0 0.0
    %1590 = vmatprep.subr.mxu0 0.0
    %1591 = vmatpush1.msra.mxu0 0.0
    %1592 = vmatprep.subr.mxu0 0.0
    %1593 = vmatpush1.msra.mxu0 0.0
    %1594 = vmatprep.subr.mxu0 0.0
    %1595 = vmatpush1.msra.mxu0 0.0
    %1596 = vmatprep.subr.mxu0 0.0
    %1597 = vmatpush1.msra.mxu0 0.0
    %1598 = vmatprep.subr.mxu0 0.0
    %1599 = vmatpush1.msra.mxu0 0.0
    %1600 = vmatprep.subr.mxu0 0.0
    %1601 = vmatpush1.msra.mxu0 0.0
    %1602 = vmatprep.subr.mxu0 0.0
    %1603 = vmatpush1.msra.mxu0 0.0
    %1604 = vmatprep.subr.mxu0 0.0
    %1605 = vmatpush1.msra.mxu0 0.0
    %1606 = vmatprep.subr.mxu0 0.0
    %1607 = vmatpush1.msra.mxu0 0.0
    %1608 = vmatprep.subr.mxu0 0.0
    %1609 = vmatpush1.msra.mxu0 0.0
    %1610 = vmatprep.subr.mxu0 0.0
    %1611 = vmatpush1.msra.mxu0 0.0
    %1612 = vmatprep.subr.mxu0 0.0
    %1613 = vmatpush1.msra.mxu0 0.0
    %1614 = vmatprep.subr.mxu0 0.0
    %1615 = vmatpush1.msra.mxu0 0.0
    %1616 = vmatprep.subr.mxu0 0.0
    %1617 = vmatpush1.msra.mxu0 0.0
    %1618 = vmatprep.subr.mxu0 0.0
    %1619 = vmatpush1.msra.mxu0 0.0
    %1620 = vmatprep.subr.mxu0 0.0
    %1621 = vmatpush1.msra.mxu0 0.0
    %1622 = vmatprep.subr.mxu0 0.0
    %1623 = vmatpush1.msra.mxu0 0.0
    %1624 = vmatprep.subr.mxu0 0.0
    %1625 = vmatpush1.msra.mxu0 0.0
    %1626 = vmatprep.subr.mxu0 0.0
    %1627 = vmatpush1.msra.mxu0 0.0
    %1628 = vmatprep.subr.mxu0 0.0
    %1629 = vmatpush1.msra.mxu0 0.0
    %1630 = vmatprep.subr.mxu0 0.0
    %1631 = vmatpush1.msra.mxu0 0.0
    %1632 = vmatprep.subr.mxu0 0.0
    %1633 = vmatpush1.msra.mxu0 0.0
    %1634 = vmatprep.mubr.f32.mxu0 0.0
    %1635 = vmatmul.mubr.f32.gmra.mrb[0].mxu0 %v1565
    %v1636 = vpop.f32.mrb[0].mxu0
    %v1637 = vadd.f32 0.0, %v1636
    %v1638 = vpop.f32.mrb[0].mxu0
    %1639 = vdwg.mxu0
    %v1640 = vadd.f32 %v1559, %v1637
    %1641 = vrot.lane.b32.xlu0 %v23, 108
    %v1642 = vpop.permute.xlu0 %1641
    %s1643 = scalar_lea.vmem %s1, 160
    %v1644 = vld [vmem:[%s1643] sm:$0xff]
    %v1646 = vsel %vm29, %v1644, 0
    %v1649 = vsel %vm33, %v1642, 0
    %1651 = vmatprep.subr.mxu0 0.0
    %1652 = vmatpush1.msra.mxu0 %v1649
    %1653 = vmatprep.subr.mxu0 0.0
    %1654 = vmatpush1.msra.mxu0 0.0
    %1655 = vmatprep.subr.mxu0 0.0
    %1656 = vmatpush1.msra.mxu0 0.0
    %1657 = vmatprep.subr.mxu0 0.0
    %1658 = vmatpush1.msra.mxu0 0.0
    %1659 = vmatprep.subr.mxu0 0.0
    %1660 = vmatpush1.msra.mxu0 0.0
    %1661 = vmatprep.subr.mxu0 0.0
    %1662 = vmatpush1.msra.mxu0 0.0
    %1663 = vmatprep.subr.mxu0 0.0
    %1664 = vmatpush1.msra.mxu0 0.0
    %1665 = vmatprep.subr.mxu0 0.0
    %1666 = vmatpush1.msra.mxu0 0.0
    %1667 = vmatprep.subr.mxu0 0.0
    %1668 = vmatpush1.msra.mxu0 0.0
    %1669 = vmatprep.subr.mxu0 0.0
    %1670 = vmatpush1.msra.mxu0 0.0
    %1671 = vmatprep.subr.mxu0 0.0
    %1672 = vmatpush1.msra.mxu0 0.0
    %1673 = vmatprep.subr.mxu0 0.0
    %1674 = vmatpush1.msra.mxu0 0.0
    %1675 = vmatprep.subr.mxu0 0.0
    %1676 = vmatpush1.msra.mxu0 0.0
    %1677 = vmatprep.subr.mxu0 0.0
    %1678 = vmatpush1.msra.mxu0 0.0
    %1679 = vmatprep.subr.mxu0 0.0
    %1680 = vmatpush1.msra.mxu0 0.0
    %1681 = vmatprep.subr.mxu0 0.0
    %1682 = vmatpush1.msra.mxu0 0.0
    %1683 = vmatprep.subr.mxu0 0.0
    %1684 = vmatpush1.msra.mxu0 0.0
    %1685 = vmatprep.subr.mxu0 0.0
    %1686 = vmatpush1.msra.mxu0 0.0
    %1687 = vmatprep.subr.mxu0 0.0
    %1688 = vmatpush1.msra.mxu0 0.0
    %1689 = vmatprep.subr.mxu0 0.0
    %1690 = vmatpush1.msra.mxu0 0.0
    %1691 = vmatprep.subr.mxu0 0.0
    %1692 = vmatpush1.msra.mxu0 0.0
    %1693 = vmatprep.subr.mxu0 0.0
    %1694 = vmatpush1.msra.mxu0 0.0
    %1695 = vmatprep.subr.mxu0 0.0
    %1696 = vmatpush1.msra.mxu0 0.0
    %1697 = vmatprep.subr.mxu0 0.0
    %1698 = vmatpush1.msra.mxu0 0.0
    %1699 = vmatprep.subr.mxu0 0.0
    %1700 = vmatpush1.msra.mxu0 0.0
    %1701 = vmatprep.subr.mxu0 0.0
    %1702 = vmatpush1.msra.mxu0 0.0
    %1703 = vmatprep.subr.mxu0 0.0
    %1704 = vmatpush1.msra.mxu0 0.0
    %1705 = vmatprep.subr.mxu0 0.0
    %1706 = vmatpush1.msra.mxu0 0.0
    %1707 = vmatprep.subr.mxu0 0.0
    %1708 = vmatpush1.msra.mxu0 0.0
    %1709 = vmatprep.subr.mxu0 0.0
    %1710 = vmatpush1.msra.mxu0 0.0
    %1711 = vmatprep.subr.mxu0 0.0
    %1712 = vmatpush1.msra.mxu0 0.0
    %1713 = vmatprep.subr.mxu0 0.0
    %1714 = vmatpush1.msra.mxu0 0.0
    %1715 = vmatprep.mubr.f32.mxu0 0.0
    %1716 = vmatmul.mubr.f32.gmra.mrb[0].mxu0 %v1646
    %v1717 = vpop.f32.mrb[0].mxu0
    %v1718 = vadd.f32 0.0, %v1717
    %v1719 = vpop.f32.mrb[0].mxu0
    %1720 = vdwg.mxu0
    %v1721 = vadd.f32 %v1640, %v1718
    %1722 = vrot.lane.b32.xlu0 %v23, 107
    %v1723 = vpop.permute.xlu0 %1722
    %s1724 = scalar_lea.vmem %s1, 168
    %v1725 = vld [vmem:[%s1724] sm:$0xff]
    %v1727 = vsel %vm29, %v1725, 0
    %v1730 = vsel %vm33, %v1723, 0
    %1732 = vmatprep.subr.mxu0 0.0
    %1733 = vmatpush1.msra.mxu0 %v1730
    %1734 = vmatprep.subr.mxu0 0.0
    %1735 = vmatpush1.msra.mxu0 0.0
    %1736 = vmatprep.subr.mxu0 0.0
    %1737 = vmatpush1.msra.mxu0 0.0
    %1738 = vmatprep.subr.mxu0 0.0
    %1739 = vmatpush1.msra.mxu0 0.0
    %1740 = vmatprep.subr.mxu0 0.0
    %1741 = vmatpush1.msra.mxu0 0.0
    %1742 = vmatprep.subr.mxu0 0.0
    %1743 = vmatpush1.msra.mxu0 0.0
    %1744 = vmatprep.subr.mxu0 0.0
    %1745 = vmatpush1.msra.mxu0 0.0
    %1746 = vmatprep.subr.mxu0 0.0
    %1747 = vmatpush1.msra.mxu0 0.0
    %1748 = vmatprep.subr.mxu0 0.0
    %1749 = vmatpush1.msra.mxu0 0.0
    %1750 = vmatprep.subr.mxu0 0.0
    %1751 = vmatpush1.msra.mxu0 0.0
    %1752 = vmatprep.subr.mxu0 0.0
    %1753 = vmatpush1.msra.mxu0 0.0
    %1754 = vmatprep.subr.mxu0 0.0
    %1755 = vmatpush1.msra.mxu0 0.0
    %1756 = vmatprep.subr.mxu0 0.0
    %1757 = vmatpush1.msra.mxu0 0.0
    %1758 = vmatprep.subr.mxu0 0.0
    %1759 = vmatpush1.msra.mxu0 0.0
    %1760 = vmatprep.subr.mxu0 0.0
    %1761 = vmatpush1.msra.mxu0 0.0
    %1762 = vmatprep.subr.mxu0 0.0
    %1763 = vmatpush1.msra.mxu0 0.0
    %1764 = vmatprep.subr.mxu0 0.0
    %1765 = vmatpush1.msra.mxu0 0.0
    %1766 = vmatprep.subr.mxu0 0.0
    %1767 = vmatpush1.msra.mxu0 0.0
    %1768 = vmatprep.subr.mxu0 0.0
    %1769 = vmatpush1.msra.mxu0 0.0
    %1770 = vmatprep.subr.mxu0 0.0
    %1771 = vmatpush1.msra.mxu0 0.0
    %1772 = vmatprep.subr.mxu0 0.0
    %1773 = vmatpush1.msra.mxu0 0.0
    %1774 = vmatprep.subr.mxu0 0.0
    %1775 = vmatpush1.msra.mxu0 0.0
    %1776 = vmatprep.subr.mxu0 0.0
    %1777 = vmatpush1.msra.mxu0 0.0
    %1778 = vmatprep.subr.mxu0 0.0
    %1779 = vmatpush1.msra.mxu0 0.0
    %1780 = vmatprep.subr.mxu0 0.0
    %1781 = vmatpush1.msra.mxu0 0.0
    %1782 = vmatprep.subr.mxu0 0.0
    %1783 = vmatpush1.msra.mxu0 0.0
    %1784 = vmatprep.subr.mxu0 0.0
    %1785 = vmatpush1.msra.mxu0 0.0
    %1786 = vmatprep.subr.mxu0 0.0
    %1787 = vmatpush1.msra.mxu0 0.0
    %1788 = vmatprep.subr.mxu0 0.0
    %1789 = vmatpush1.msra.mxu0 0.0
    %1790 = vmatprep.subr.mxu0 0.0
    %1791 = vmatpush1.msra.mxu0 0.0
    %1792 = vmatprep.subr.mxu0 0.0
    %1793 = vmatpush1.msra.mxu0 0.0
    %1794 = vmatprep.subr.mxu0 0.0
    %1795 = vmatpush1.msra.mxu0 0.0
    %1796 = vmatprep.mubr.f32.mxu0 0.0
    %1797 = vmatmul.mubr.f32.gmra.mrb[0].mxu0 %v1727
    %v1798 = vpop.f32.mrb[0].mxu0
    %v1799 = vadd.f32 0.0, %v1798
    %v1800 = vpop.f32.mrb[0].mxu0
    %1801 = vdwg.mxu0
    %v1802 = vadd.f32 %v1721, %v1799
    %1803 = vrot.lane.b32.xlu0 %v23, 106
    %v1804 = vpop.permute.xlu0 %1803
    %s1805 = scalar_lea.vmem %s1, 176
    %v1806 = vld [vmem:[%s1805] sm:$0xff]
    %v1808 = vsel %vm29, %v1806, 0
    %v1811 = vsel %vm33, %v1804, 0
    %1813 = vmatprep.subr.mxu0 0.0
    %1814 = vmatpush1.msra.mxu0 %v1811
    %1815 = vmatprep.subr.mxu0 0.0
    %1816 = vmatpush1.msra.mxu0 0.0
    %1817 = vmatprep.subr.mxu0 0.0
    %1818 = vmatpush1.msra.mxu0 0.0
    %1819 = vmatprep.subr.mxu0 0.0
    %1820 = vmatpush1.msra.mxu0 0.0
    %1821 = vmatprep.subr.mxu0 0.0
    %1822 = vmatpush1.msra.mxu0 0.0
    %1823 = vmatprep.subr.mxu0 0.0
    %1824 = vmatpush1.msra.mxu0 0.0
    %1825 = vmatprep.subr.mxu0 0.0
    %1826 = vmatpush1.msra.mxu0 0.0
    %1827 = vmatprep.subr.mxu0 0.0
    %1828 = vmatpush1.msra.mxu0 0.0
    %1829 = vmatprep.subr.mxu0 0.0
    %1830 = vmatpush1.msra.mxu0 0.0
    %1831 = vmatprep.subr.mxu0 0.0
    %1832 = vmatpush1.msra.mxu0 0.0
    %1833 = vmatprep.subr.mxu0 0.0
    %1834 = vmatpush1.msra.mxu0 0.0
    %1835 = vmatprep.subr.mxu0 0.0
    %1836 = vmatpush1.msra.mxu0 0.0
    %1837 = vmatprep.subr.mxu0 0.0
    %1838 = vmatpush1.msra.mxu0 0.0
    %1839 = vmatprep.subr.mxu0 0.0
    %1840 = vmatpush1.msra.mxu0 0.0
    %1841 = vmatprep.subr.mxu0 0.0
    %1842 = vmatpush1.msra.mxu0 0.0
    %1843 = vmatprep.subr.mxu0 0.0
    %1844 = vmatpush1.msra.mxu0 0.0
    %1845 = vmatprep.subr.mxu0 0.0
    %1846 = vmatpush1.msra.mxu0 0.0
    %1847 = vmatprep.subr.mxu0 0.0
    %1848 = vmatpush1.msra.mxu0 0.0
    %1849 = vmatprep.subr.mxu0 0.0
    %1850 = vmatpush1.msra.mxu0 0.0
    %1851 = vmatprep.subr.mxu0 0.0
    %1852 = vmatpush1.msra.mxu0 0.0
    %1853 = vmatprep.subr.mxu0 0.0
    %1854 = vmatpush1.msra.mxu0 0.0
    %1855 = vmatprep.subr.mxu0 0.0
    %1856 = vmatpush1.msra.mxu0 0.0
    %1857 = vmatprep.subr.mxu0 0.0
    %1858 = vmatpush1.msra.mxu0 0.0
    %1859 = vmatprep.subr.mxu0 0.0
    %1860 = vmatpush1.msra.mxu0 0.0
    %1861 = vmatprep.subr.mxu0 0.0
    %1862 = vmatpush1.msra.mxu0 0.0
    %1863 = vmatprep.subr.mxu0 0.0
    %1864 = vmatpush1.msra.mxu0 0.0
    %1865 = vmatprep.subr.mxu0 0.0
    %1866 = vmatpush1.msra.mxu0 0.0
    %1867 = vmatprep.subr.mxu0 0.0
    %1868 = vmatpush1.msra.mxu0 0.0
    %1869 = vmatprep.subr.mxu0 0.0
    %1870 = vmatpush1.msra.mxu0 0.0
    %1871 = vmatprep.subr.mxu0 0.0
    %1872 = vmatpush1.msra.mxu0 0.0
    %1873 = vmatprep.subr.mxu0 0.0
    %1874 = vmatpush1.msra.mxu0 0.0
    %1875 = vmatprep.subr.mxu0 0.0
    %1876 = vmatpush1.msra.mxu0 0.0
    %1877 = vmatprep.mubr.f32.mxu0 0.0
    %1878 = vmatmul.mubr.f32.gmra.mrb[0].mxu0 %v1808
    %v1879 = vpop.f32.mrb[0].mxu0
    %v1880 = vadd.f32 0.0, %v1879
    %v1881 = vpop.f32.mrb[0].mxu0
    %1882 = vdwg.mxu0
    %v1883 = vadd.f32 %v1802, %v1880
    %1884 = vrot.lane.b32.xlu0 %v23, 105
    %v1885 = vpop.permute.xlu0 %1884
    %s1886 = scalar_lea.vmem %s1, 184
    %v1887 = vld [vmem:[%s1886] sm:$0xff]
    %v1889 = vsel %vm29, %v1887, 0
    %v1892 = vsel %vm33, %v1885, 0
    %1894 = vmatprep.subr.mxu0 0.0
    %1895 = vmatpush1.msra.mxu0 %v1892
    %1896 = vmatprep.subr.mxu0 0.0
    %1897 = vmatpush1.msra.mxu0 0.0
    %1898 = vmatprep.subr.mxu0 0.0
    %1899 = vmatpush1.msra.mxu0 0.0
    %1900 = vmatprep.subr.mxu0 0.0
    %1901 = vmatpush1.msra.mxu0 0.0
    %1902 = vmatprep.subr.mxu0 0.0
    %1903 = vmatpush1.msra.mxu0 0.0
    %1904 = vmatprep.subr.mxu0 0.0
    %1905 = vmatpush1.msra.mxu0 0.0
    %1906 = vmatprep.subr.mxu0 0.0
    %1907 = vmatpush1.msra.mxu0 0.0
    %1908 = vmatprep.subr.mxu0 0.0
    %1909 = vmatpush1.msra.mxu0 0.0
    %1910 = vmatprep.subr.mxu0 0.0
    %1911 = vmatpush1.msra.mxu0 0.0
    %1912 = vmatprep.subr.mxu0 0.0
    %1913 = vmatpush1.msra.mxu0 0.0
    %1914 = vmatprep.subr.mxu0 0.0
    %1915 = vmatpush1.msra.mxu0 0.0
    %1916 = vmatprep.subr.mxu0 0.0
    %1917 = vmatpush1.msra.mxu0 0.0
    %1918 = vmatprep.subr.mxu0 0.0
    %1919 = vmatpush1.msra.mxu0 0.0
    %1920 = vmatprep.subr.mxu0 0.0
    %1921 = vmatpush1.msra.mxu0 0.0
    %1922 = vmatprep.subr.mxu0 0.0
    %1923 = vmatpush1.msra.mxu0 0.0
    %1924 = vmatprep.subr.mxu0 0.0
    %1925 = vmatpush1.msra.mxu0 0.0
    %1926 = vmatprep.subr.mxu0 0.0
    %1927 = vmatpush1.msra.mxu0 0.0
    %1928 = vmatprep.subr.mxu0 0.0
    %1929 = vmatpush1.msra.mxu0 0.0
    %1930 = vmatprep.subr.mxu0 0.0
    %1931 = vmatpush1.msra.mxu0 0.0
    %1932 = vmatprep.subr.mxu0 0.0
    %1933 = vmatpush1.msra.mxu0 0.0
    %1934 = vmatprep.subr.mxu0 0.0
    %1935 = vmatpush1.msra.mxu0 0.0
    %1936 = vmatprep.subr.mxu0 0.0
    %1937 = vmatpush1.msra.mxu0 0.0
    %1938 = vmatprep.subr.mxu0 0.0
    %1939 = vmatpush1.msra.mxu0 0.0
    %1940 = vmatprep.subr.mxu0 0.0
    %1941 = vmatpush1.msra.mxu0 0.0
    %1942 = vmatprep.subr.mxu0 0.0
    %1943 = vmatpush1.msra.mxu0 0.0
    %1944 = vmatprep.subr.mxu0 0.0
    %1945 = vmatpush1.msra.mxu0 0.0
    %1946 = vmatprep.subr.mxu0 0.0
    %1947 = vmatpush1.msra.mxu0 0.0
    %1948 = vmatprep.subr.mxu0 0.0
    %1949 = vmatpush1.msra.mxu0 0.0
    %1950 = vmatprep.subr.mxu0 0.0
    %1951 = vmatpush1.msra.mxu0 0.0
    %1952 = vmatprep.subr.mxu0 0.0
    %1953 = vmatpush1.msra.mxu0 0.0
    %1954 = vmatprep.subr.mxu0 0.0
    %1955 = vmatpush1.msra.mxu0 0.0
    %1956 = vmatprep.subr.mxu0 0.0
    %1957 = vmatpush1.msra.mxu0 0.0
    %1958 = vmatprep.mubr.f32.mxu0 0.0
    %1959 = vmatmul.mubr.f32.gmra.mrb[0].mxu0 %v1889
    %v1960 = vpop.f32.mrb[0].mxu0
    %v1961 = vadd.f32 0.0, %v1960
    %v1962 = vpop.f32.mrb[0].mxu0
    %1963 = vdwg.mxu0
    %v1964 = vadd.f32 %v1883, %v1961
    %1965 = vrot.lane.b32.xlu0 %v23, 104
    %v1966 = vpop.permute.xlu0 %1965
    %s1967 = scalar_lea.vmem %s1, 192
    %v1968 = vld [vmem:[%s1967] sm:$0xff]
    %v1970 = vsel %vm29, %v1968, 0
    %v1973 = vsel %vm33, %v1966, 0
    %1975 = vmatprep.subr.mxu0 0.0
    %1976 = vmatpush1.msra.mxu0 %v1973
    %1977 = vmatprep.subr.mxu0 0.0
    %1978 = vmatpush1.msra.mxu0 0.0
    %1979 = vmatprep.subr.mxu0 0.0
    %1980 = vmatpush1.msra.mxu0 0.0
    %1981 = vmatprep.subr.mxu0 0.0
    %1982 = vmatpush1.msra.mxu0 0.0
    %1983 = vmatprep.subr.mxu0 0.0
    %1984 = vmatpush1.msra.mxu0 0.0
    %1985 = vmatprep.subr.mxu0 0.0
    %1986 = vmatpush1.msra.mxu0 0.0
    %1987 = vmatprep.subr.mxu0 0.0
    %1988 = vmatpush1.msra.mxu0 0.0
    %1989 = vmatprep.subr.mxu0 0.0
    %1990 = vmatpush1.msra.mxu0 0.0
    %1991 = vmatprep.subr.mxu0 0.0
    %1992 = vmatpush1.msra.mxu0 0.0
    %1993 = vmatprep.subr.mxu0 0.0
    %1994 = vmatpush1.msra.mxu0 0.0
    %1995 = vmatprep.subr.mxu0 0.0
    %1996 = vmatpush1.msra.mxu0 0.0
    %1997 = vmatprep.subr.mxu0 0.0
    %1998 = vmatpush1.msra.mxu0 0.0
    %1999 = vmatprep.subr.mxu0 0.0
    %2000 = vmatpush1.msra.mxu0 0.0
    %2001 = vmatprep.subr.mxu0 0.0
    %2002 = vmatpush1.msra.mxu0 0.0
    %2003 = vmatprep.subr.mxu0 0.0
    %2004 = vmatpush1.msra.mxu0 0.0
    %2005 = vmatprep.subr.mxu0 0.0
    %2006 = vmatpush1.msra.mxu0 0.0
    %2007 = vmatprep.subr.mxu0 0.0
    %2008 = vmatpush1.msra.mxu0 0.0
    %2009 = vmatprep.subr.mxu0 0.0
    %2010 = vmatpush1.msra.mxu0 0.0
    %2011 = vmatprep.subr.mxu0 0.0
    %2012 = vmatpush1.msra.mxu0 0.0
    %2013 = vmatprep.subr.mxu0 0.0
    %2014 = vmatpush1.msra.mxu0 0.0
    %2015 = vmatprep.subr.mxu0 0.0
    %2016 = vmatpush1.msra.mxu0 0.0
    %2017 = vmatprep.subr.mxu0 0.0
    %2018 = vmatpush1.msra.mxu0 0.0
    %2019 = vmatprep.subr.mxu0 0.0
    %2020 = vmatpush1.msra.mxu0 0.0
    %2021 = vmatprep.subr.mxu0 0.0
    %2022 = vmatpush1.msra.mxu0 0.0
    %2023 = vmatprep.subr.mxu0 0.0
    %2024 = vmatpush1.msra.mxu0 0.0
    %2025 = vmatprep.subr.mxu0 0.0
    %2026 = vmatpush1.msra.mxu0 0.0
    %2027 = vmatprep.subr.mxu0 0.0
    %2028 = vmatpush1.msra.mxu0 0.0
    %2029 = vmatprep.subr.mxu0 0.0
    %2030 = vmatpush1.msra.mxu0 0.0
    %2031 = vmatprep.subr.mxu0 0.0
    %2032 = vmatpush1.msra.mxu0 0.0
    %2033 = vmatprep.subr.mxu0 0.0
    %2034 = vmatpush1.msra.mxu0 0.0
    %2035 = vmatprep.subr.mxu0 0.0
    %2036 = vmatpush1.msra.mxu0 0.0
    %2037 = vmatprep.subr.mxu0 0.0
    %2038 = vmatpush1.msra.mxu0 0.0
    %2039 = vmatprep.mubr.f32.mxu0 0.0
    %2040 = vmatmul.mubr.f32.gmra.mrb[0].mxu0 %v1970
    %v2041 = vpop.f32.mrb[0].mxu0
    %v2042 = vadd.f32 0.0, %v2041
    %v2043 = vpop.f32.mrb[0].mxu0
    %2044 = vdwg.mxu0
    %v2045 = vadd.f32 %v1964, %v2042
    %2046 = vrot.lane.b32.xlu0 %v23, 103
    %v2047 = vpop.permute.xlu0 %2046
    %s2048 = scalar_lea.vmem %s1, 200
    %v2049 = vld [vmem:[%s2048] sm:$0xff]
    %v2051 = vsel %vm29, %v2049, 0
    %v2054 = vsel %vm33, %v2047, 0
    %2056 = vmatprep.subr.mxu0 0.0
    %2057 = vmatpush1.msra.mxu0 %v2054
    %2058 = vmatprep.subr.mxu0 0.0
    %2059 = vmatpush1.msra.mxu0 0.0
    %2060 = vmatprep.subr.mxu0 0.0
    %2061 = vmatpush1.msra.mxu0 0.0
    %2062 = vmatprep.subr.mxu0 0.0
    %2063 = vmatpush1.msra.mxu0 0.0
    %2064 = vmatprep.subr.mxu0 0.0
    %2065 = vmatpush1.msra.mxu0 0.0
    %2066 = vmatprep.subr.mxu0 0.0
    %2067 = vmatpush1.msra.mxu0 0.0
    %2068 = vmatprep.subr.mxu0 0.0
    %2069 = vmatpush1.msra.mxu0 0.0
    %2070 = vmatprep.subr.mxu0 0.0
    %2071 = vmatpush1.msra.mxu0 0.0
    %2072 = vmatprep.subr.mxu0 0.0
    %2073 = vmatpush1.msra.mxu0 0.0
    %2074 = vmatprep.subr.mxu0 0.0
    %2075 = vmatpush1.msra.mxu0 0.0
    %2076 = vmatprep.subr.mxu0 0.0
    %2077 = vmatpush1.msra.mxu0 0.0
    %2078 = vmatprep.subr.mxu0 0.0
    %2079 = vmatpush1.msra.mxu0 0.0
    %2080 = vmatprep.subr.mxu0 0.0
    %2081 = vmatpush1.msra.mxu0 0.0
    %2082 = vmatprep.subr.mxu0 0.0
    %2083 = vmatpush1.msra.mxu0 0.0
    %2084 = vmatprep.subr.mxu0 0.0
    %2085 = vmatpush1.msra.mxu0 0.0
    %2086 = vmatprep.subr.mxu0 0.0
    %2087 = vmatpush1.msra.mxu0 0.0
    %2088 = vmatprep.subr.mxu0 0.0
    %2089 = vmatpush1.msra.mxu0 0.0
    %2090 = vmatprep.subr.mxu0 0.0
    %2091 = vmatpush1.msra.mxu0 0.0
    %2092 = vmatprep.subr.mxu0 0.0
    %2093 = vmatpush1.msra.mxu0 0.0
    %2094 = vmatprep.subr.mxu0 0.0
    %2095 = vmatpush1.msra.mxu0 0.0
    %2096 = vmatprep.subr.mxu0 0.0
    %2097 = vmatpush1.msra.mxu0 0.0
    %2098 = vmatprep.subr.mxu0 0.0
    %2099 = vmatpush1.msra.mxu0 0.0
    %2100 = vmatprep.subr.mxu0 0.0
    %2101 = vmatpush1.msra.mxu0 0.0
    %2102 = vmatprep.subr.mxu0 0.0
    %2103 = vmatpush1.msra.mxu0 0.0
    %2104 = vmatprep.subr.mxu0 0.0
    %2105 = vmatpush1.msra.mxu0 0.0
    %2106 = vmatprep.subr.mxu0 0.0
    %2107 = vmatpush1.msra.mxu0 0.0
    %2108 = vmatprep.subr.mxu0 0.0
    %2109 = vmatpush1.msra.mxu0 0.0
    %2110 = vmatprep.subr.mxu0 0.0
    %2111 = vmatpush1.msra.mxu0 0.0
    %2112 = vmatprep.subr.mxu0 0.0
    %2113 = vmatpush1.msra.mxu0 0.0
    %2114 = vmatprep.subr.mxu0 0.0
    %2115 = vmatpush1.msra.mxu0 0.0
    %2116 = vmatprep.subr.mxu0 0.0
    %2117 = vmatpush1.msra.mxu0 0.0
    %2118 = vmatprep.subr.mxu0 0.0
    %2119 = vmatpush1.msra.mxu0 0.0
    %2120 = vmatprep.mubr.f32.mxu0 0.0
    %2121 = vmatmul.mubr.f32.gmra.mrb[0].mxu0 %v2051
    %v2122 = vpop.f32.mrb[0].mxu0
    %v2123 = vadd.f32 0.0, %v2122
    %v2124 = vpop.f32.mrb[0].mxu0
    %2125 = vdwg.mxu0
    %v2126 = vadd.f32 %v2045, %v2123
    %2127 = vrot.lane.b32.xlu0 %v23, 102
    %v2128 = vpop.permute.xlu0 %2127
    %s2129 = scalar_lea.vmem %s1, 208
    %v2130 = vld [vmem:[%s2129] sm:$0xff]
    %v2132 = vsel %vm29, %v2130, 0
    %v2135 = vsel %vm33, %v2128, 0
    %2137 = vmatprep.subr.mxu0 0.0
    %2138 = vmatpush1.msra.mxu0 %v2135
    %2139 = vmatprep.subr.mxu0 0.0
    %2140 = vmatpush1.msra.mxu0 0.0
    %2141 = vmatprep.subr.mxu0 0.0
    %2142 = vmatpush1.msra.mxu0 0.0
    %2143 = vmatprep.subr.mxu0 0.0
    %2144 = vmatpush1.msra.mxu0 0.0
    %2145 = vmatprep.subr.mxu0 0.0
    %2146 = vmatpush1.msra.mxu0 0.0
    %2147 = vmatprep.subr.mxu0 0.0
    %2148 = vmatpush1.msra.mxu0 0.0
    %2149 = vmatprep.subr.mxu0 0.0
    %2150 = vmatpush1.msra.mxu0 0.0
    %2151 = vmatprep.subr.mxu0 0.0
    %2152 = vmatpush1.msra.mxu0 0.0
    %2153 = vmatprep.subr.mxu0 0.0
    %2154 = vmatpush1.msra.mxu0 0.0
    %2155 = vmatprep.subr.mxu0 0.0
    %2156 = vmatpush1.msra.mxu0 0.0
    %2157 = vmatprep.subr.mxu0 0.0
    %2158 = vmatpush1.msra.mxu0 0.0
    %2159 = vmatprep.subr.mxu0 0.0
    %2160 = vmatpush1.msra.mxu0 0.0
    %2161 = vmatprep.subr.mxu0 0.0
    %2162 = vmatpush1.msra.mxu0 0.0
    %2163 = vmatprep.subr.mxu0 0.0
    %2164 = vmatpush1.msra.mxu0 0.0
    %2165 = vmatprep.subr.mxu0 0.0
    %2166 = vmatpush1.msra.mxu0 0.0
    %2167 = vmatprep.subr.mxu0 0.0
    %2168 = vmatpush1.msra.mxu0 0.0
    %2169 = vmatprep.subr.mxu0 0.0
    %2170 = vmatpush1.msra.mxu0 0.0
    %2171 = vmatprep.subr.mxu0 0.0
    %2172 = vmatpush1.msra.mxu0 0.0
    %2173 = vmatprep.subr.mxu0 0.0
    %2174 = vmatpush1.msra.mxu0 0.0
    %2175 = vmatprep.subr.mxu0 0.0
    %2176 = vmatpush1.msra.mxu0 0.0
    %2177 = vmatprep.subr.mxu0 0.0
    %2178 = vmatpush1.msra.mxu0 0.0
    %2179 = vmatprep.subr.mxu0 0.0
    %2180 = vmatpush1.msra.mxu0 0.0
    %2181 = vmatprep.subr.mxu0 0.0
    %2182 = vmatpush1.msra.mxu0 0.0
    %2183 = vmatprep.subr.mxu0 0.0
    %2184 = vmatpush1.msra.mxu0 0.0
    %2185 = vmatprep.subr.mxu0 0.0
    %2186 = vmatpush1.msra.mxu0 0.0
    %2187 = vmatprep.subr.mxu0 0.0
    %2188 = vmatpush1.msra.mxu0 0.0
    %2189 = vmatprep.subr.mxu0 0.0
    %2190 = vmatpush1.msra.mxu0 0.0
    %2191 = vmatprep.subr.mxu0 0.0
    %2192 = vmatpush1.msra.mxu0 0.0
    %2193 = vmatprep.subr.mxu0 0.0
    %2194 = vmatpush1.msra.mxu0 0.0
    %2195 = vmatprep.subr.mxu0 0.0
    %2196 = vmatpush1.msra.mxu0 0.0
    %2197 = vmatprep.subr.mxu0 0.0
    %2198 = vmatpush1.msra.mxu0 0.0
    %2199 = vmatprep.subr.mxu0 0.0
    %2200 = vmatpush1.msra.mxu0 0.0
    %2201 = vmatprep.mubr.f32.mxu0 0.0
    %2202 = vmatmul.mubr.f32.gmra.mrb[0].mxu0 %v2132
    %v2203 = vpop.f32.mrb[0].mxu0
    %v2204 = vadd.f32 0.0, %v2203
    %v2205 = vpop.f32.mrb[0].mxu0
    %2206 = vdwg.mxu0
    %v2207 = vadd.f32 %v2126, %v2204
    %2208 = vrot.lane.b32.xlu0 %v23, 101
    %v2209 = vpop.permute.xlu0 %2208
    %s2210 = scalar_lea.vmem %s1, 216
    %v2211 = vld [vmem:[%s2210] sm:$0xff]
    %v2213 = vsel %vm29, %v2211, 0
    %v2216 = vsel %vm33, %v2209, 0
    %2218 = vmatprep.subr.mxu0 0.0
    %2219 = vmatpush1.msra.mxu0 %v2216
    %2220 = vmatprep.subr.mxu0 0.0
    %2221 = vmatpush1.msra.mxu0 0.0
    %2222 = vmatprep.subr.mxu0 0.0
    %2223 = vmatpush1.msra.mxu0 0.0
    %2224 = vmatprep.subr.mxu0 0.0
    %2225 = vmatpush1.msra.mxu0 0.0
    %2226 = vmatprep.subr.mxu0 0.0
    %2227 = vmatpush1.msra.mxu0 0.0
    %2228 = vmatprep.subr.mxu0 0.0
    %2229 = vmatpush1.msra.mxu0 0.0
    %2230 = vmatprep.subr.mxu0 0.0
    %2231 = vmatpush1.msra.mxu0 0.0
    %2232 = vmatprep.subr.mxu0 0.0
    %2233 = vmatpush1.msra.mxu0 0.0
    %2234 = vmatprep.subr.mxu0 0.0
    %2235 = vmatpush1.msra.mxu0 0.0
    %2236 = vmatprep.subr.mxu0 0.0
    %2237 = vmatpush1.msra.mxu0 0.0
    %2238 = vmatprep.subr.mxu0 0.0
    %2239 = vmatpush1.msra.mxu0 0.0
    %2240 = vmatprep.subr.mxu0 0.0
    %2241 = vmatpush1.msra.mxu0 0.0
    %2242 = vmatprep.subr.mxu0 0.0
    %2243 = vmatpush1.msra.mxu0 0.0
    %2244 = vmatprep.subr.mxu0 0.0
    %2245 = vmatpush1.msra.mxu0 0.0
    %2246 = vmatprep.subr.mxu0 0.0
    %2247 = vmatpush1.msra.mxu0 0.0
    %2248 = vmatprep.subr.mxu0 0.0
    %2249 = vmatpush1.msra.mxu0 0.0
    %2250 = vmatprep.subr.mxu0 0.0
    %2251 = vmatpush1.msra.mxu0 0.0
    %2252 = vmatprep.subr.mxu0 0.0
    %2253 = vmatpush1.msra.mxu0 0.0
    %2254 = vmatprep.subr.mxu0 0.0
    %2255 = vmatpush1.msra.mxu0 0.0
    %2256 = vmatprep.subr.mxu0 0.0
    %2257 = vmatpush1.msra.mxu0 0.0
    %2258 = vmatprep.subr.mxu0 0.0
    %2259 = vmatpush1.msra.mxu0 0.0
    %2260 = vmatprep.subr.mxu0 0.0
    %2261 = vmatpush1.msra.mxu0 0.0
    %2262 = vmatprep.subr.mxu0 0.0
    %2263 = vmatpush1.msra.mxu0 0.0
    %2264 = vmatprep.subr.mxu0 0.0
    %2265 = vmatpush1.msra.mxu0 0.0
    %2266 = vmatprep.subr.mxu0 0.0
    %2267 = vmatpush1.msra.mxu0 0.0
    %2268 = vmatprep.subr.mxu0 0.0
    %2269 = vmatpush1.msra.mxu0 0.0
    %2270 = vmatprep.subr.mxu0 0.0
    %2271 = vmatpush1.msra.mxu0 0.0
    %2272 = vmatprep.subr.mxu0 0.0
    %2273 = vmatpush1.msra.mxu0 0.0
    %2274 = vmatprep.subr.mxu0 0.0
    %2275 = vmatpush1.msra.mxu0 0.0
    %2276 = vmatprep.subr.mxu0 0.0
    %2277 = vmatpush1.msra.mxu0 0.0
    %2278 = vmatprep.subr.mxu0 0.0
    %2279 = vmatpush1.msra.mxu0 0.0
    %2280 = vmatprep.subr.mxu0 0.0
    %2281 = vmatpush1.msra.mxu0 0.0
    %2282 = vmatprep.mubr.f32.mxu0 0.0
    %2283 = vmatmul.mubr.f32.gmra.mrb[0].mxu0 %v2213
    %v2284 = vpop.f32.mrb[0].mxu0
    %v2285 = vadd.f32 0.0, %v2284
    %v2286 = vpop.f32.mrb[0].mxu0
    %2287 = vdwg.mxu0
    %v2288 = vadd.f32 %v2207, %v2285
    %2289 = vrot.lane.b32.xlu0 %v23, 100
    %v2290 = vpop.permute.xlu0 %2289
    %s2291 = scalar_lea.vmem %s1, 224
    %v2292 = vld [vmem:[%s2291] sm:$0xff]
    %v2294 = vsel %vm29, %v2292, 0
    %v2297 = vsel %vm33, %v2290, 0
    %2299 = vmatprep.subr.mxu0 0.0
    %2300 = vmatpush1.msra.mxu0 %v2297
    %2301 = vmatprep.subr.mxu0 0.0
    %2302 = vmatpush1.msra.mxu0 0.0
    %2303 = vmatprep.subr.mxu0 0.0
    %2304 = vmatpush1.msra.mxu0 0.0
    %2305 = vmatprep.subr.mxu0 0.0
    %2306 = vmatpush1.msra.mxu0 0.0
    %2307 = vmatprep.subr.mxu0 0.0
    %2308 = vmatpush1.msra.mxu0 0.0
    %2309 = vmatprep.subr.mxu0 0.0
    %2310 = vmatpush1.msra.mxu0 0.0
    %2311 = vmatprep.subr.mxu0 0.0
    %2312 = vmatpush1.msra.mxu0 0.0
    %2313 = vmatprep.subr.mxu0 0.0
    %2314 = vmatpush1.msra.mxu0 0.0
    %2315 = vmatprep.subr.mxu0 0.0
    %2316 = vmatpush1.msra.mxu0 0.0
    %2317 = vmatprep.subr.mxu0 0.0
    %2318 = vmatpush1.msra.mxu0 0.0
    %2319 = vmatprep.subr.mxu0 0.0
    %2320 = vmatpush1.msra.mxu0 0.0
    %2321 = vmatprep.subr.mxu0 0.0
    %2322 = vmatpush1.msra.mxu0 0.0
    %2323 = vmatprep.subr.mxu0 0.0
    %2324 = vmatpush1.msra.mxu0 0.0
    %2325 = vmatprep.subr.mxu0 0.0
    %2326 = vmatpush1.msra.mxu0 0.0
    %2327 = vmatprep.subr.mxu0 0.0
    %2328 = vmatpush1.msra.mxu0 0.0
    %2329 = vmatprep.subr.mxu0 0.0
    %2330 = vmatpush1.msra.mxu0 0.0
    %2331 = vmatprep.subr.mxu0 0.0
    %2332 = vmatpush1.msra.mxu0 0.0
    %2333 = vmatprep.subr.mxu0 0.0
    %2334 = vmatpush1.msra.mxu0 0.0
    %2335 = vmatprep.subr.mxu0 0.0
    %2336 = vmatpush1.msra.mxu0 0.0
    %2337 = vmatprep.subr.mxu0 0.0
    %2338 = vmatpush1.msra.mxu0 0.0
    %2339 = vmatprep.subr.mxu0 0.0
    %2340 = vmatpush1.msra.mxu0 0.0
    %2341 = vmatprep.subr.mxu0 0.0
    %2342 = vmatpush1.msra.mxu0 0.0
    %2343 = vmatprep.subr.mxu0 0.0
    %2344 = vmatpush1.msra.mxu0 0.0
    %2345 = vmatprep.subr.mxu0 0.0
    %2346 = vmatpush1.msra.mxu0 0.0
    %2347 = vmatprep.subr.mxu0 0.0
    %2348 = vmatpush1.msra.mxu0 0.0
    %2349 = vmatprep.subr.mxu0 0.0
    %2350 = vmatpush1.msra.mxu0 0.0
    %2351 = vmatprep.subr.mxu0 0.0
    %2352 = vmatpush1.msra.mxu0 0.0
    %2353 = vmatprep.subr.mxu0 0.0
    %2354 = vmatpush1.msra.mxu0 0.0
    %2355 = vmatprep.subr.mxu0 0.0
    %2356 = vmatpush1.msra.mxu0 0.0
    %2357 = vmatprep.subr.mxu0 0.0
    %2358 = vmatpush1.msra.mxu0 0.0
    %2359 = vmatprep.subr.mxu0 0.0
    %2360 = vmatpush1.msra.mxu0 0.0
    %2361 = vmatprep.subr.mxu0 0.0
    %2362 = vmatpush1.msra.mxu0 0.0
    %2363 = vmatprep.mubr.f32.mxu0 0.0
    %2364 = vmatmul.mubr.f32.gmra.mrb[0].mxu0 %v2294
    %v2365 = vpop.f32.mrb[0].mxu0
    %v2366 = vadd.f32 0.0, %v2365
    %v2367 = vpop.f32.mrb[0].mxu0
    %2368 = vdwg.mxu0
    %v2369 = vadd.f32 %v2288, %v2366
    %2370 = vrot.lane.b32.xlu0 %v23, 99
    %v2371 = vpop.permute.xlu0 %2370
    %s2372 = scalar_lea.vmem %s1, 232
    %v2373 = vld [vmem:[%s2372] sm:$0xff]
    %v2375 = vsel %vm29, %v2373, 0
    %v2378 = vsel %vm33, %v2371, 0
    %2380 = vmatprep.subr.mxu0 0.0
    %2381 = vmatpush1.msra.mxu0 %v2378
    %2382 = vmatprep.subr.mxu0 0.0
    %2383 = vmatpush1.msra.mxu0 0.0
    %2384 = vmatprep.subr.mxu0 0.0
    %2385 = vmatpush1.msra.mxu0 0.0
    %2386 = vmatprep.subr.mxu0 0.0
    %2387 = vmatpush1.msra.mxu0 0.0
    %2388 = vmatprep.subr.mxu0 0.0
    %2389 = vmatpush1.msra.mxu0 0.0
    %2390 = vmatprep.subr.mxu0 0.0
    %2391 = vmatpush1.msra.mxu0 0.0
    %2392 = vmatprep.subr.mxu0 0.0
    %2393 = vmatpush1.msra.mxu0 0.0
    %2394 = vmatprep.subr.mxu0 0.0
    %2395 = vmatpush1.msra.mxu0 0.0
    %2396 = vmatprep.subr.mxu0 0.0
    %2397 = vmatpush1.msra.mxu0 0.0
    %2398 = vmatprep.subr.mxu0 0.0
    %2399 = vmatpush1.msra.mxu0 0.0
    %2400 = vmatprep.subr.mxu0 0.0
    %2401 = vmatpush1.msra.mxu0 0.0
    %2402 = vmatprep.subr.mxu0 0.0
    %2403 = vmatpush1.msra.mxu0 0.0
    %2404 = vmatprep.subr.mxu0 0.0
    %2405 = vmatpush1.msra.mxu0 0.0
    %2406 = vmatprep.subr.mxu0 0.0
    %2407 = vmatpush1.msra.mxu0 0.0
    %2408 = vmatprep.subr.mxu0 0.0
    %2409 = vmatpush1.msra.mxu0 0.0
    %2410 = vmatprep.subr.mxu0 0.0
    %2411 = vmatpush1.msra.mxu0 0.0
    %2412 = vmatprep.subr.mxu0 0.0
    %2413 = vmatpush1.msra.mxu0 0.0
    %2414 = vmatprep.subr.mxu0 0.0
    %2415 = vmatpush1.msra.mxu0 0.0
    %2416 = vmatprep.subr.mxu0 0.0
    %2417 = vmatpush1.msra.mxu0 0.0
    %2418 = vmatprep.subr.mxu0 0.0
    %2419 = vmatpush1.msra.mxu0 0.0
    %2420 = vmatprep.subr.mxu0 0.0
    %2421 = vmatpush1.msra.mxu0 0.0
    %2422 = vmatprep.subr.mxu0 0.0
    %2423 = vmatpush1.msra.mxu0 0.0
    %2424 = vmatprep.subr.mxu0 0.0
    %2425 = vmatpush1.msra.mxu0 0.0
    %2426 = vmatprep.subr.mxu0 0.0
    %2427 = vmatpush1.msra.mxu0 0.0
    %2428 = vmatprep.subr.mxu0 0.0
    %2429 = vmatpush1.msra.mxu0 0.0
    %2430 = vmatprep.subr.mxu0 0.0
    %2431 = vmatpush1.msra.mxu0 0.0
    %2432 = vmatprep.subr.mxu0 0.0
    %2433 = vmatpush1.msra.mxu0 0.0
    %2434 = vmatprep.subr.mxu0 0.0
    %2435 = vmatpush1.msra.mxu0 0.0
    %2436 = vmatprep.subr.mxu0 0.0
    %2437 = vmatpush1.msra.mxu0 0.0
    %2438 = vmatprep.subr.mxu0 0.0
    %2439 = vmatpush1.msra.mxu0 0.0
    %2440 = vmatprep.subr.mxu0 0.0
    %2441 = vmatpush1.msra.mxu0 0.0
    %2442 = vmatprep.subr.mxu0 0.0
    %2443 = vmatpush1.msra.mxu0 0.0
    %2444 = vmatprep.mubr.f32.mxu0 0.0
    %2445 = vmatmul.mubr.f32.gmra.mrb[0].mxu0 %v2375
    %v2446 = vpop.f32.mrb[0].mxu0
    %v2447 = vadd.f32 0.0, %v2446
    %v2448 = vpop.f32.mrb[0].mxu0
    %2449 = vdwg.mxu0
    %v2450 = vadd.f32 %v2369, %v2447
    %2451 = vrot.lane.b32.xlu0 %v23, 98
    %v2452 = vpop.permute.xlu0 %2451
    %s2453 = scalar_lea.vmem %s1, 240
    %v2454 = vld [vmem:[%s2453] sm:$0xff]
    %v2456 = vsel %vm29, %v2454, 0
    %v2459 = vsel %vm33, %v2452, 0
    %2461 = vmatprep.subr.mxu0 0.0
    %2462 = vmatpush1.msra.mxu0 %v2459
    %2463 = vmatprep.subr.mxu0 0.0
    %2464 = vmatpush1.msra.mxu0 0.0
    %2465 = vmatprep.subr.mxu0 0.0
    %2466 = vmatpush1.msra.mxu0 0.0
    %2467 = vmatprep.subr.mxu0 0.0
    %2468 = vmatpush1.msra.mxu0 0.0
    %2469 = vmatprep.subr.mxu0 0.0
    %2470 = vmatpush1.msra.mxu0 0.0
    %2471 = vmatprep.subr.mxu0 0.0
    %2472 = vmatpush1.msra.mxu0 0.0
    %2473 = vmatprep.subr.mxu0 0.0
    %2474 = vmatpush1.msra.mxu0 0.0
    %2475 = vmatprep.subr.mxu0 0.0
    %2476 = vmatpush1.msra.mxu0 0.0
    %2477 = vmatprep.subr.mxu0 0.0
    %2478 = vmatpush1.msra.mxu0 0.0
    %2479 = vmatprep.subr.mxu0 0.0
    %2480 = vmatpush1.msra.mxu0 0.0
    %2481 = vmatprep.subr.mxu0 0.0
    %2482 = vmatpush1.msra.mxu0 0.0
    %2483 = vmatprep.subr.mxu0 0.0
    %2484 = vmatpush1.msra.mxu0 0.0
    %2485 = vmatprep.subr.mxu0 0.0
    %2486 = vmatpush1.msra.mxu0 0.0
    %2487 = vmatprep.subr.mxu0 0.0
    %2488 = vmatpush1.msra.mxu0 0.0
    %2489 = vmatprep.subr.mxu0 0.0
    %2490 = vmatpush1.msra.mxu0 0.0
    %2491 = vmatprep.subr.mxu0 0.0
    %2492 = vmatpush1.msra.mxu0 0.0
    %2493 = vmatprep.subr.mxu0 0.0
    %2494 = vmatpush1.msra.mxu0 0.0
    %2495 = vmatprep.subr.mxu0 0.0
    %2496 = vmatpush1.msra.mxu0 0.0
    %2497 = vmatprep.subr.mxu0 0.0
    %2498 = vmatpush1.msra.mxu0 0.0
    %2499 = vmatprep.subr.mxu0 0.0
    %2500 = vmatpush1.msra.mxu0 0.0
    %2501 = vmatprep.subr.mxu0 0.0
    %2502 = vmatpush1.msra.mxu0 0.0
    %2503 = vmatprep.subr.mxu0 0.0
    %2504 = vmatpush1.msra.mxu0 0.0
    %2505 = vmatprep.subr.mxu0 0.0
    %2506 = vmatpush1.msra.mxu0 0.0
    %2507 = vmatprep.subr.mxu0 0.0
    %2508 = vmatpush1.msra.mxu0 0.0
    %2509 = vmatprep.subr.mxu0 0.0
    %2510 = vmatpush1.msra.mxu0 0.0
    %2511 = vmatprep.subr.mxu0 0.0
    %2512 = vmatpush1.msra.mxu0 0.0
    %2513 = vmatprep.subr.mxu0 0.0
    %2514 = vmatpush1.msra.mxu0 0.0
    %2515 = vmatprep.subr.mxu0 0.0
    %2516 = vmatpush1.msra.mxu0 0.0
    %2517 = vmatprep.subr.mxu0 0.0
    %2518 = vmatpush1.msra.mxu0 0.0
    %2519 = vmatprep.subr.mxu0 0.0
    %2520 = vmatpush1.msra.mxu0 0.0
    %2521 = vmatprep.subr.mxu0 0.0
    %2522 = vmatpush1.msra.mxu0 0.0
    %2523 = vmatprep.subr.mxu0 0.0
    %2524 = vmatpush1.msra.mxu0 0.0
    %2525 = vmatprep.mubr.f32.mxu0 0.0
    %2526 = vmatmul.mubr.f32.gmra.mrb[0].mxu0 %v2456
    %v2527 = vpop.f32.mrb[0].mxu0
    %v2528 = vadd.f32 0.0, %v2527
    %v2529 = vpop.f32.mrb[0].mxu0
    %2530 = vdwg.mxu0
    %v2531 = vadd.f32 %v2450, %v2528
    %2532 = vrot.lane.b32.xlu0 %v23, 97
    %v2533 = vpop.permute.xlu0 %2532
    %s2534 = scalar_lea.vmem %s1, 248
    %v2535 = vld [vmem:[%s2534] sm:$0xff]
    %v2537 = vsel %vm29, %v2535, 0
    %v2540 = vsel %vm33, %v2533, 0
    %2542 = vmatprep.subr.mxu0 0.0
    %2543 = vmatpush1.msra.mxu0 %v2540
    %2544 = vmatprep.subr.mxu0 0.0
    %2545 = vmatpush1.msra.mxu0 0.0
    %2546 = vmatprep.subr.mxu0 0.0
    %2547 = vmatpush1.msra.mxu0 0.0
    %2548 = vmatprep.subr.mxu0 0.0
    %2549 = vmatpush1.msra.mxu0 0.0
    %2550 = vmatprep.subr.mxu0 0.0
    %2551 = vmatpush1.msra.mxu0 0.0
    %2552 = vmatprep.subr.mxu0 0.0
    %2553 = vmatpush1.msra.mxu0 0.0
    %2554 = vmatprep.subr.mxu0 0.0
    %2555 = vmatpush1.msra.mxu0 0.0
    %2556 = vmatprep.subr.mxu0 0.0
    %2557 = vmatpush1.msra.mxu0 0.0
    %2558 = vmatprep.subr.mxu0 0.0
    %2559 = vmatpush1.msra.mxu0 0.0
    %2560 = vmatprep.subr.mxu0 0.0
    %2561 = vmatpush1.msra.mxu0 0.0
    %2562 = vmatprep.subr.mxu0 0.0
    %2563 = vmatpush1.msra.mxu0 0.0
    %2564 = vmatprep.subr.mxu0 0.0
    %2565 = vmatpush1.msra.mxu0 0.0
    %2566 = vmatprep.subr.mxu0 0.0
    %2567 = vmatpush1.msra.mxu0 0.0
    %2568 = vmatprep.subr.mxu0 0.0
    %2569 = vmatpush1.msra.mxu0 0.0
    %2570 = vmatprep.subr.mxu0 0.0
    %2571 = vmatpush1.msra.mxu0 0.0
    %2572 = vmatprep.subr.mxu0 0.0
    %2573 = vmatpush1.msra.mxu0 0.0
    %2574 = vmatprep.subr.mxu0 0.0
    %2575 = vmatpush1.msra.mxu0 0.0
    %2576 = vmatprep.subr.mxu0 0.0
    %2577 = vmatpush1.msra.mxu0 0.0
    %2578 = vmatprep.subr.mxu0 0.0
    %2579 = vmatpush1.msra.mxu0 0.0
    %2580 = vmatprep.subr.mxu0 0.0
    %2581 = vmatpush1.msra.mxu0 0.0
    %2582 = vmatprep.subr.mxu0 0.0
    %2583 = vmatpush1.msra.mxu0 0.0
    %2584 = vmatprep.subr.mxu0 0.0
    %2585 = vmatpush1.msra.mxu0 0.0
    %2586 = vmatprep.subr.mxu0 0.0
    %2587 = vmatpush1.msra.mxu0 0.0
    %2588 = vmatprep.subr.mxu0 0.0
    %2589 = vmatpush1.msra.mxu0 0.0
    %2590 = vmatprep.subr.mxu0 0.0
    %2591 = vmatpush1.msra.mxu0 0.0
    %2592 = vmatprep.subr.mxu0 0.0
    %2593 = vmatpush1.msra.mxu0 0.0
    %2594 = vmatprep.subr.mxu0 0.0
    %2595 = vmatpush1.msra.mxu0 0.0
    %2596 = vmatprep.subr.mxu0 0.0
    %2597 = vmatpush1.msra.mxu0 0.0
    %2598 = vmatprep.subr.mxu0 0.0
    %2599 = vmatpush1.msra.mxu0 0.0
    %2600 = vmatprep.subr.mxu0 0.0
    %2601 = vmatpush1.msra.mxu0 0.0
    %2602 = vmatprep.subr.mxu0 0.0
    %2603 = vmatpush1.msra.mxu0 0.0
    %2604 = vmatprep.subr.mxu0 0.0
    %2605 = vmatpush1.msra.mxu0 0.0
    %2606 = vmatprep.mubr.f32.mxu0 0.0
    %2607 = vmatmul.mubr.f32.gmra.mrb[0].mxu0 %v2537
    %v2608 = vpop.f32.mrb[0].mxu0
    %v2609 = vadd.f32 0.0, %v2608
    %v2610 = vpop.f32.mrb[0].mxu0
    %2611 = vdwg.mxu0
    %v2612 = vadd.f32 %v2531, %v2609
    %2613 = vrot.lane.b32.xlu0 %v23, 96
    %v2614 = vpop.permute.xlu0 %2613
    %s2615 = scalar_lea.vmem %s1, 256
    %v2616 = vld [vmem:[%s2615] sm:$0xff]
    %v2618 = vsel %vm29, %v2616, 0
    %v2621 = vsel %vm33, %v2614, 0
    %2623 = vmatprep.subr.mxu0 0.0
    %2624 = vmatpush1.msra.mxu0 %v2621
    %2625 = vmatprep.subr.mxu0 0.0
    %2626 = vmatpush1.msra.mxu0 0.0
    %2627 = vmatprep.subr.mxu0 0.0
    %2628 = vmatpush1.msra.mxu0 0.0
    %2629 = vmatprep.subr.mxu0 0.0
    %2630 = vmatpush1.msra.mxu0 0.0
    %2631 = vmatprep.subr.mxu0 0.0
    %2632 = vmatpush1.msra.mxu0 0.0
    %2633 = vmatprep.subr.mxu0 0.0
    %2634 = vmatpush1.msra.mxu0 0.0
    %2635 = vmatprep.subr.mxu0 0.0
    %2636 = vmatpush1.msra.mxu0 0.0
    %2637 = vmatprep.subr.mxu0 0.0
    %2638 = vmatpush1.msra.mxu0 0.0
    %2639 = vmatprep.subr.mxu0 0.0
    %2640 = vmatpush1.msra.mxu0 0.0
    %2641 = vmatprep.subr.mxu0 0.0
    %2642 = vmatpush1.msra.mxu0 0.0
    %2643 = vmatprep.subr.mxu0 0.0
    %2644 = vmatpush1.msra.mxu0 0.0
    %2645 = vmatprep.subr.mxu0 0.0
    %2646 = vmatpush1.msra.mxu0 0.0
    %2647 = vmatprep.subr.mxu0 0.0
    %2648 = vmatpush1.msra.mxu0 0.0
    %2649 = vmatprep.subr.mxu0 0.0
    %2650 = vmatpush1.msra.mxu0 0.0
    %2651 = vmatprep.subr.mxu0 0.0
    %2652 = vmatpush1.msra.mxu0 0.0
    %2653 = vmatprep.subr.mxu0 0.0
    %2654 = vmatpush1.msra.mxu0 0.0
    %2655 = vmatprep.subr.mxu0 0.0
    %2656 = vmatpush1.msra.mxu0 0.0
    %2657 = vmatprep.subr.mxu0 0.0
    %2658 = vmatpush1.msra.mxu0 0.0
    %2659 = vmatprep.subr.mxu0 0.0
    %2660 = vmatpush1.msra.mxu0 0.0
    %2661 = vmatprep.subr.mxu0 0.0
    %2662 = vmatpush1.msra.mxu0 0.0
    %2663 = vmatprep.subr.mxu0 0.0
    %2664 = vmatpush1.msra.mxu0 0.0
    %2665 = vmatprep.subr.mxu0 0.0
    %2666 = vmatpush1.msra.mxu0 0.0
    %2667 = vmatprep.subr.mxu0 0.0
    %2668 = vmatpush1.msra.mxu0 0.0
    %2669 = vmatprep.subr.mxu0 0.0
    %2670 = vmatpush1.msra.mxu0 0.0
    %2671 = vmatprep.subr.mxu0 0.0
    %2672 = vmatpush1.msra.mxu0 0.0
    %2673 = vmatprep.subr.mxu0 0.0
    %2674 = vmatpush1.msra.mxu0 0.0
    %2675 = vmatprep.subr.mxu0 0.0
    %2676 = vmatpush1.msra.mxu0 0.0
    %2677 = vmatprep.subr.mxu0 0.0
    %2678 = vmatpush1.msra.mxu0 0.0
    %2679 = vmatprep.subr.mxu0 0.0
    %2680 = vmatpush1.msra.mxu0 0.0
    %2681 = vmatprep.subr.mxu0 0.0
    %2682 = vmatpush1.msra.mxu0 0.0
    %2683 = vmatprep.subr.mxu0 0.0
    %2684 = vmatpush1.msra.mxu0 0.0
    %2685 = vmatprep.subr.mxu0 0.0
    %2686 = vmatpush1.msra.mxu0 0.0
    %2687 = vmatprep.mubr.f32.mxu0 0.0
    %2688 = vmatmul.mubr.f32.gmra.mrb[0].mxu0 %v2618
    %v2689 = vpop.f32.mrb[0].mxu0
    %v2690 = vadd.f32 0.0, %v2689
    %v2691 = vpop.f32.mrb[0].mxu0
    %2692 = vdwg.mxu0
    %v2693 = vadd.f32 %v2612, %v2690
    %2694 = vrot.lane.b32.xlu0 %v23, 95
    %v2695 = vpop.permute.xlu0 %2694
    %s2696 = scalar_lea.vmem %s1, 264
    %v2697 = vld [vmem:[%s2696] sm:$0xff]
    %v2699 = vsel %vm29, %v2697, 0
    %v2702 = vsel %vm33, %v2695, 0
    %2704 = vmatprep.subr.mxu0 0.0
    %2705 = vmatpush1.msra.mxu0 %v2702
    %2706 = vmatprep.subr.mxu0 0.0
    %2707 = vmatpush1.msra.mxu0 0.0
    %2708 = vmatprep.subr.mxu0 0.0
    %2709 = vmatpush1.msra.mxu0 0.0
    %2710 = vmatprep.subr.mxu0 0.0
    %2711 = vmatpush1.msra.mxu0 0.0
    %2712 = vmatprep.subr.mxu0 0.0
    %2713 = vmatpush1.msra.mxu0 0.0
    %2714 = vmatprep.subr.mxu0 0.0
    %2715 = vmatpush1.msra.mxu0 0.0
    %2716 = vmatprep.subr.mxu0 0.0
    %2717 = vmatpush1.msra.mxu0 0.0
    %2718 = vmatprep.subr.mxu0 0.0
    %2719 = vmatpush1.msra.mxu0 0.0
    %2720 = vmatprep.subr.mxu0 0.0
    %2721 = vmatpush1.msra.mxu0 0.0
    %2722 = vmatprep.subr.mxu0 0.0
    %2723 = vmatpush1.msra.mxu0 0.0
    %2724 = vmatprep.subr.mxu0 0.0
    %2725 = vmatpush1.msra.mxu0 0.0
    %2726 = vmatprep.subr.mxu0 0.0
    %2727 = vmatpush1.msra.mxu0 0.0
    %2728 = vmatprep.subr.mxu0 0.0
    %2729 = vmatpush1.msra.mxu0 0.0
    %2730 = vmatprep.subr.mxu0 0.0
    %2731 = vmatpush1.msra.mxu0 0.0
    %2732 = vmatprep.subr.mxu0 0.0
    %2733 = vmatpush1.msra.mxu0 0.0
    %2734 = vmatprep.subr.mxu0 0.0
    %2735 = vmatpush1.msra.mxu0 0.0
    %2736 = vmatprep.subr.mxu0 0.0
    %2737 = vmatpush1.msra.mxu0 0.0
    %2738 = vmatprep.subr.mxu0 0.0
    %2739 = vmatpush1.msra.mxu0 0.0
    %2740 = vmatprep.subr.mxu0 0.0
    %2741 = vmatpush1.msra.mxu0 0.0
    %2742 = vmatprep.subr.mxu0 0.0
    %2743 = vmatpush1.msra.mxu0 0.0
    %2744 = vmatprep.subr.mxu0 0.0
    %2745 = vmatpush1.msra.mxu0 0.0
    %2746 = vmatprep.subr.mxu0 0.0
    %2747 = vmatpush1.msra.mxu0 0.0
    %2748 = vmatprep.subr.mxu0 0.0
    %2749 = vmatpush1.msra.mxu0 0.0
    %2750 = vmatprep.subr.mxu0 0.0
    %2751 = vmatpush1.msra.mxu0 0.0
    %2752 = vmatprep.subr.mxu0 0.0
    %2753 = vmatpush1.msra.mxu0 0.0
    %2754 = vmatprep.subr.mxu0 0.0
    %2755 = vmatpush1.msra.mxu0 0.0
    %2756 = vmatprep.subr.mxu0 0.0
    %2757 = vmatpush1.msra.mxu0 0.0
    %2758 = vmatprep.subr.mxu0 0.0
    %2759 = vmatpush1.msra.mxu0 0.0
    %2760 = vmatprep.subr.mxu0 0.0
    %2761 = vmatpush1.msra.mxu0 0.0
    %2762 = vmatprep.subr.mxu0 0.0
    %2763 = vmatpush1.msra.mxu0 0.0
    %2764 = vmatprep.subr.mxu0 0.0
    %2765 = vmatpush1.msra.mxu0 0.0
    %2766 = vmatprep.subr.mxu0 0.0
    %2767 = vmatpush1.msra.mxu0 0.0
    %2768 = vmatprep.mubr.f32.mxu0 0.0
    %2769 = vmatmul.mubr.f32.gmra.mrb[0].mxu0 %v2699
    %v2770 = vpop.f32.mrb[0].mxu0
    %v2771 = vadd.f32 0.0, %v2770
    %v2772 = vpop.f32.mrb[0].mxu0
    %2773 = vdwg.mxu0
    %v2774 = vadd.f32 %v2693, %v2771
    %2775 = vrot.lane.b32.xlu0 %v23, 94
    %v2776 = vpop.permute.xlu0 %2775
    %s2777 = scalar_lea.vmem %s1, 272
    %v2778 = vld [vmem:[%s2777] sm:$0xff]
    %v2780 = vsel %vm29, %v2778, 0
    %v2783 = vsel %vm33, %v2776, 0
    %2785 = vmatprep.subr.mxu0 0.0
    %2786 = vmatpush1.msra.mxu0 %v2783
    %2787 = vmatprep.subr.mxu0 0.0
    %2788 = vmatpush1.msra.mxu0 0.0
    %2789 = vmatprep.subr.mxu0 0.0
    %2790 = vmatpush1.msra.mxu0 0.0
    %2791 = vmatprep.subr.mxu0 0.0
    %2792 = vmatpush1.msra.mxu0 0.0
    %2793 = vmatprep.subr.mxu0 0.0
    %2794 = vmatpush1.msra.mxu0 0.0
    %2795 = vmatprep.subr.mxu0 0.0
    %2796 = vmatpush1.msra.mxu0 0.0
    %2797 = vmatprep.subr.mxu0 0.0
    %2798 = vmatpush1.msra.mxu0 0.0
    %2799 = vmatprep.subr.mxu0 0.0
    %2800 = vmatpush1.msra.mxu0 0.0
    %2801 = vmatprep.subr.mxu0 0.0
    %2802 = vmatpush1.msra.mxu0 0.0
    %2803 = vmatprep.subr.mxu0 0.0
    %2804 = vmatpush1.msra.mxu0 0.0
    %2805 = vmatprep.subr.mxu0 0.0
    %2806 = vmatpush1.msra.mxu0 0.0
    %2807 = vmatprep.subr.mxu0 0.0
    %2808 = vmatpush1.msra.mxu0 0.0
    %2809 = vmatprep.subr.mxu0 0.0
    %2810 = vmatpush1.msra.mxu0 0.0
    %2811 = vmatprep.subr.mxu0 0.0
    %2812 = vmatpush1.msra.mxu0 0.0
    %2813 = vmatprep.subr.mxu0 0.0
    %2814 = vmatpush1.msra.mxu0 0.0
    %2815 = vmatprep.subr.mxu0 0.0
    %2816 = vmatpush1.msra.mxu0 0.0
    %2817 = vmatprep.subr.mxu0 0.0
    %2818 = vmatpush1.msra.mxu0 0.0
    %2819 = vmatprep.subr.mxu0 0.0
    %2820 = vmatpush1.msra.mxu0 0.0
    %2821 = vmatprep.subr.mxu0 0.0
    %2822 = vmatpush1.msra.mxu0 0.0
    %2823 = vmatprep.subr.mxu0 0.0
    %2824 = vmatpush1.msra.mxu0 0.0
    %2825 = vmatprep.subr.mxu0 0.0
    %2826 = vmatpush1.msra.mxu0 0.0
    %2827 = vmatprep.subr.mxu0 0.0
    %2828 = vmatpush1.msra.mxu0 0.0
    %2829 = vmatprep.subr.mxu0 0.0
    %2830 = vmatpush1.msra.mxu0 0.0
    %2831 = vmatprep.subr.mxu0 0.0
    %2832 = vmatpush1.msra.mxu0 0.0
    %2833 = vmatprep.subr.mxu0 0.0
    %2834 = vmatpush1.msra.mxu0 0.0
    %2835 = vmatprep.subr.mxu0 0.0
    %2836 = vmatpush1.msra.mxu0 0.0
    %2837 = vmatprep.subr.mxu0 0.0
    %2838 = vmatpush1.msra.mxu0 0.0
    %2839 = vmatprep.subr.mxu0 0.0
    %2840 = vmatpush1.msra.mxu0 0.0
    %2841 = vmatprep.subr.mxu0 0.0
    %2842 = vmatpush1.msra.mxu0 0.0
    %2843 = vmatprep.subr.mxu0 0.0
    %2844 = vmatpush1.msra.mxu0 0.0
    %2845 = vmatprep.subr.mxu0 0.0
    %2846 = vmatpush1.msra.mxu0 0.0
    %2847 = vmatprep.subr.mxu0 0.0
    %2848 = vmatpush1.msra.mxu0 0.0
    %2849 = vmatprep.mubr.f32.mxu0 0.0
    %2850 = vmatmul.mubr.f32.gmra.mrb[0].mxu0 %v2780
    %v2851 = vpop.f32.mrb[0].mxu0
    %v2852 = vadd.f32 0.0, %v2851
    %v2853 = vpop.f32.mrb[0].mxu0
    %2854 = vdwg.mxu0
    %v2855 = vadd.f32 %v2774, %v2852
    %2856 = vrot.lane.b32.xlu0 %v23, 93
    %v2857 = vpop.permute.xlu0 %2856
    %s2858 = scalar_lea.vmem %s1, 280
    %v2859 = vld [vmem:[%s2858] sm:$0xff]
    %v2861 = vsel %vm29, %v2859, 0
    %v2864 = vsel %vm33, %v2857, 0
    %2866 = vmatprep.subr.mxu0 0.0
    %2867 = vmatpush1.msra.mxu0 %v2864
    %2868 = vmatprep.subr.mxu0 0.0
    %2869 = vmatpush1.msra.mxu0 0.0
    %2870 = vmatprep.subr.mxu0 0.0
    %2871 = vmatpush1.msra.mxu0 0.0
    %2872 = vmatprep.subr.mxu0 0.0
    %2873 = vmatpush1.msra.mxu0 0.0
    %2874 = vmatprep.subr.mxu0 0.0
    %2875 = vmatpush1.msra.mxu0 0.0
    %2876 = vmatprep.subr.mxu0 0.0
    %2877 = vmatpush1.msra.mxu0 0.0
    %2878 = vmatprep.subr.mxu0 0.0
    %2879 = vmatpush1.msra.mxu0 0.0
    %2880 = vmatprep.subr.mxu0 0.0
    %2881 = vmatpush1.msra.mxu0 0.0
    %2882 = vmatprep.subr.mxu0 0.0
    %2883 = vmatpush1.msra.mxu0 0.0
    %2884 = vmatprep.subr.mxu0 0.0
    %2885 = vmatpush1.msra.mxu0 0.0
    %2886 = vmatprep.subr.mxu0 0.0
    %2887 = vmatpush1.msra.mxu0 0.0
    %2888 = vmatprep.subr.mxu0 0.0
    %2889 = vmatpush1.msra.mxu0 0.0
    %2890 = vmatprep.subr.mxu0 0.0
    %2891 = vmatpush1.msra.mxu0 0.0
    %2892 = vmatprep.subr.mxu0 0.0
    %2893 = vmatpush1.msra.mxu0 0.0
    %2894 = vmatprep.subr.mxu0 0.0
    %2895 = vmatpush1.msra.mxu0 0.0
    %2896 = vmatprep.subr.mxu0 0.0
    %2897 = vmatpush1.msra.mxu0 0.0
    %2898 = vmatprep.subr.mxu0 0.0
    %2899 = vmatpush1.msra.mxu0 0.0
    %2900 = vmatprep.subr.mxu0 0.0
    %2901 = vmatpush1.msra.mxu0 0.0
    %2902 = vmatprep.subr.mxu0 0.0
    %2903 = vmatpush1.msra.mxu0 0.0
    %2904 = vmatprep.subr.mxu0 0.0
    %2905 = vmatpush1.msra.mxu0 0.0
    %2906 = vmatprep.subr.mxu0 0.0
    %2907 = vmatpush1.msra.mxu0 0.0
    %2908 = vmatprep.subr.mxu0 0.0
    %2909 = vmatpush1.msra.mxu0 0.0
    %2910 = vmatprep.subr.mxu0 0.0
    %2911 = vmatpush1.msra.mxu0 0.0
    %2912 = vmatprep.subr.mxu0 0.0
    %2913 = vmatpush1.msra.mxu0 0.0
    %2914 = vmatprep.subr.mxu0 0.0
    %2915 = vmatpush1.msra.mxu0 0.0
    %2916 = vmatprep.subr.mxu0 0.0
    %2917 = vmatpush1.msra.mxu0 0.0
    %2918 = vmatprep.subr.mxu0 0.0
    %2919 = vmatpush1.msra.mxu0 0.0
    %2920 = vmatprep.subr.mxu0 0.0
    %2921 = vmatpush1.msra.mxu0 0.0
    %2922 = vmatprep.subr.mxu0 0.0
    %2923 = vmatpush1.msra.mxu0 0.0
    %2924 = vmatprep.subr.mxu0 0.0
    %2925 = vmatpush1.msra.mxu0 0.0
    %2926 = vmatprep.subr.mxu0 0.0
    %2927 = vmatpush1.msra.mxu0 0.0
    %2928 = vmatprep.subr.mxu0 0.0
    %2929 = vmatpush1.msra.mxu0 0.0
    %2930 = vmatprep.mubr.f32.mxu0 0.0
    %2931 = vmatmul.mubr.f32.gmra.mrb[0].mxu0 %v2861
    %v2932 = vpop.f32.mrb[0].mxu0
    %v2933 = vadd.f32 0.0, %v2932
    %v2934 = vpop.f32.mrb[0].mxu0
    %2935 = vdwg.mxu0
    %v2936 = vadd.f32 %v2855, %v2933
    %v2937 = vld [vmem:[%s2] sm:$0xff]
    %2939 = vset.pattern.permute.xlu0 0
    %2940 = vperm.xlu0 %2939, %v2937
    %v2941 = vpop.permute.xlu0 %2940
    %v2943 = vadd.f32 %v2936, %v2941
    %vm2944 = vcmask 236544
    %2945 = vst.msk [vmem:[#allocation2] sm:$0xff] %vm2944, %v2943
    %2947 = vrot.lane.b32.xlu0 %v2943, 64
    %v2948 = vpop.permute.xlu0 %2947
    %s2950 = scalar_lea.vmem [#allocation2], 8
    %2951 = vst.msk [vmem:[%s2950] sm:$0xff] %vm2944, %v2948
    // Predicated region
    $region14: #{tpu_custom_call.1} parent=1 // pred_check
      _
    $region15: #{tpu_custom_call.1} parent=1 // pred_check_branch
      %2953 = sbr.rel (0) target = $region17
    $region16: #{tpu_custom_call.1} parent=1 // pred_region
      %s2955 = ssub.s32 256, 256
      %2956 = vsyncadd [#allocation3], %s2955
      %s2957 = sshll.u32 [#allocation2], 4
      %s2958 = int_to_ptr.vmem [resolvable:$true] %s2957
      %2963 = dma.vmem_to_hbm [thread:$0]  %s2958, 256, %s3, [#allocation3], 128, 128, 8
    $region17: #{tpu_custom_call.1} parent=1 // pred_fallthru
      _
    // Predicated region
    $region18: #{tpu_custom_call.1} parent=1 // pred_check
      _
    $region19: #{tpu_custom_call.1} parent=1 // pred_check_branch
      %2965 = sbr.rel (0) target = $region21
    $region20: #{tpu_custom_call.1} parent=1 // pred_region
      %2966 = dma.done [#allocation3], 256
    $region21: #{tpu_custom_call.1} parent=1 // pred_fallthru
      _
    %2967 = vsyncpa [#allocation3], 1

</llo_original>
